<compile_context>
chip_gen: v6e
topology: v6e:2x2x1
jax: 0.10.0
libtpu: 0.0.40
codegen_flags: <defaults>
</compile_context>

<pallas_src>
import functools

import jax
import jax.numpy as jnp
from jax import lax
from jax.experimental import pallas as pl
from jax.experimental.pallas import tpu as pltpu


def _round_up(n, m):
    return ((n + m - 1) // m) * m


def _pick_tk(d_per_split, tk_max):
    """Largest multiple of 128 that divides d_per_split and is <= tk_max."""
    units = d_per_split // 128
    max_units = max(1, min(units, max(1, tk_max // 128)))
    for d in range(max_units, 0, -1):
        if units % d == 0:
            return d * 128
    return 128


def _tpu_defaults():
    """(n_split, vmem_limit_bytes) per TPU generation; conservative fallback."""
    try:
        kind = jax.devices()[0].device_kind.lower()
    except Exception:
        kind = ""
    if "v7" in kind:
        return 2, 40 * 1024 * 1024   # 2 TensorCores; only 64 MiB physical VMEM
    return 1, 64 * 1024 * 1024       # single-TC v5e/v6e; 128 MiB physical VMEM


def partial_logits_kernel(x_ref, w1_ref, w2_ref, o_ref, *, fuse_logsoftmax):
    """One tk-wide slice of the d_model reduction for one split."""
    k = pl.program_id(1)

    @pl.when(k == 0)
    def _():
        o_ref[...] = jnp.zeros_like(o_ref)

    # h = relu(x @ W1_chunk.T) -> [B_pad, tk]   (f32 MXU accumulation)
    h = lax.dot_general(
        x_ref[...], w1_ref[...],
        dimension_numbers=(((1,), (1,)), ((), ())),
        preferred_element_type=jnp.float32)
    h = jnp.maximum(h, 0.0)

    # partial logits += h @ W2_chunk.T -> [B_pad, out_dim]  (f32 accumulation)
    o_ref[...] += lax.dot_general(
        h.astype(w2_ref.dtype), w2_ref[...],
        dimension_numbers=(((1,), (1,)), ((), ())),
        preferred_element_type=jnp.float32)

    if fuse_logsoftmax:
        # Single-split path: logits are fully reduced in the resident output
        # block at the last reduction step; finalize in place (no epilogue
        # pallas_call, no partials round-trip through HBM).
        @pl.when(k == pl.num_programs(1) - 1)
        def _():
            logits = o_ref[...]
            m = jnp.max(logits, axis=1, keepdims=True)
            lse = jnp.log(jnp.sum(jnp.exp(logits - m), axis=1, keepdims=True)) + m
            o_ref[...] = logits - lse


def prepare_weights(w1, w2, *, weight_dtype=jnp.bfloat16):
    """One-time weight layout prep (run once, NOT per forward call).

    Pads the 784 contraction dim of W1 to 896 (7*128 lanes) and d_model to a
    multiple of 256 (supports n_split in {1,2} with 128-aligned chunks), and
    casts both weights to `weight_dtype` (default bf16: halves HBM traffic on
    this weight-streaming-bound kernel; the kernel still accumulates in f32).
    Zero padding contributes exactly zero to the result."""
    d_model, inp_dim = w1.shape
    out_dim, d_model2 = w2.shape
    assert d_model == d_model2
    inp_pad = _round_up(inp_dim, 128)
    d_model_pad = _round_up(d_model, 256)
    w1p = jnp.pad(w1, ((0, d_model_pad - d_model), (0, inp_pad - inp_dim)))
    w2p = jnp.pad(w2, ((0, 0), (0, d_model_pad - d_model)))
    return w1p.astype(weight_dtype), w2p.astype(weight_dtype)


def mpfc2_forward(x_nchw, w1p, w2p, *, tk=None, n_split=None,
                  vmem_limit_bytes=None):
    """x_nchw: [B,1,28,28]; w1p: [d_model_pad, inp_pad]; w2p: [out_dim, d_model_pad]."""
    default_split, default_vmem = _tpu_defaults()
    if n_split is None:
        n_split = default_split
    if vmem_limit_bytes is None:
        vmem_limit_bytes = default_vmem

    B = x_nchw.shape[0]
    x = x_nchw.reshape(B, -1)
    inp_dim = x.shape[1]
    d_model, inp_pad = w1p.shape
    out_dim, d_model2 = w2p.shape
    assert d_model == d_model2 and inp_pad >= inp_dim

    # Chunk size: keep each double-buffered W1 chunk around 7-15 MB.
    if tk is None:
        tk = 4096 if jnp.dtype(w1p.dtype).itemsize <= 2 else 2048

    if d_model % (n_split * 128) != 0:
        n_split = 1                       # fall back instead of rejecting shapes
    d_per_split = d_model // n_split
    tk_eff = _pick_tk(d_per_split, tk)
    n_k = d_per_split // tk_eff

    # Pad batch to a sublane multiple, features to the padded lane width.
    # Note: activations are cast to the weight dtype (bf16 by default); for
    # MNIST-scale inputs this stays well inside the bf16-weight tolerance.
    B_pad = _round_up(B, 8)
    x = jnp.pad(x, ((0, B_pad - B), (0, inp_pad - inp_dim))).astype(w1p.dtype)

    fuse = (n_split == 1)
    kernel = functools.partial(partial_logits_kernel, fuse_logsoftmax=fuse)

    partials = pl.pallas_call(
        kernel,
        out_shape=jax.ShapeDtypeStruct((n_split, B_pad, out_dim), jnp.float32),
        grid_spec=pltpu.PrefetchScalarGridSpec(
            num_scalar_prefetch=0,
            grid=(n_split, n_k),
            in_specs=[
                pl.BlockSpec((B_pad, inp_pad), lambda s, k: (0, 0)),             # x (full, resident)
                pl.BlockSpec((tk_eff, inp_pad), lambda s, k: (s * n_k + k, 0)),  # W1 chunk [tk, 896]
                pl.BlockSpec((out_dim, tk_eff), lambda s, k: (0, s * n_k + k)),  # W2 chunk [10, tk]
            ],
            out_specs=pl.BlockSpec((None, B_pad, out_dim),
                                   lambda s, k: (s, 0, 0)),                      # resident accumulator
        ),
        compiler_params=pltpu.CompilerParams(
            dimension_semantics=("parallel", "arbitrary"),
            vmem_limit_bytes=vmem_limit_bytes,
        ),
    )(x, w1p, w2p)

    if fuse:
        out = partials[0]                      # log_softmax already applied in-kernel
    else:
        logits = jnp.sum(partials, axis=0)     # tiny [n_split, B_pad, 10] reduce
        out = jax.nn.log_softmax(logits, axis=1)
    return out[:B]


def mpfc2_reference(x_nchw, w1, w2):
    B = x_nchw.shape[0]
    x = x_nchw.reshape(B, -1)
    h = jnp.maximum(x @ w1.T, 0.0)
    logits = h @ w2.T
    return jax.nn.log_softmax(logits, axis=1)


if __name__ == "__main__":
    # Small, deterministic shapes consistent with the module:
    # inp_dim = 28*28 = 784 (fixed by the module), out_dim = 10,
    # d_model shrunk from 40960 to 1024 for a small runnable example.
    B = 2
    inp_dim = 28 * 28
    d_model = 1024
    out_dim = 10

    key = jax.random.PRNGKey(0)
    kx, k1, k2 = jax.random.split(key, 3)
    x = jax.random.normal(kx, (B, 1, 28, 28), dtype=jnp.float32)
    w1 = jax.random.normal(k1, (d_model, inp_dim), dtype=jnp.float32) * 0.02
    w2 = jax.random.normal(k2, (out_dim, d_model), dtype=jnp.float32) * 0.02

    ref = mpfc2_reference(x, w1, w2)

    # Default path: bf16 weights, generation-aware n_split / vmem limit.
    w1b, w2b = prepare_weights(w1, w2)
    out_bf16 = jax.block_until_ready(mpfc2_forward(x, w1b, w2b))
    assert out_bf16.shape == (B, out_dim)
    assert jnp.allclose(out_bf16, ref, atol=5e-2, rtol=5e-2)

    # Multi-chunk reduction path (small tk) with the fused log_softmax epilogue.
    out_multi = jax.block_until_ready(mpfc2_forward(x, w1b, w2b, tk=128, n_split=1))
    assert jnp.allclose(out_multi, ref, atol=5e-2, rtol=5e-2)

    # Explicit 2-way split (v7x megacore layout) -> JAX-side sum + log_softmax.
    out_split = jax.block_until_ready(mpfc2_forward(x, w1b, w2b, n_split=2))
    assert jnp.allclose(out_split, ref, atol=5e-2, rtol=5e-2)

    # Full-precision weight path (tight-tolerance check of the kernel math).
    w1f, w2f = prepare_weights(w1, w2, weight_dtype=jnp.float32)
    out_f32 = jax.block_until_ready(mpfc2_forward(x, w1f, w2f))
    assert jnp.allclose(out_f32, ref, atol=1e-4, rtol=1e-4)

    print("KERNEL_OK")
</pallas_src>

<mosaic_0001>
module attributes {stable_mosaic.version = 11 : i64} {
  func.func @partial_logits_kernel(%arg0: i32, %arg1: i32, %arg2: memref<8x896xbf16, #tpu.memory_space<vmem>>, %arg3: memref<1024x896xbf16, #tpu.memory_space<vmem>>, %arg4: memref<10x1024xbf16, #tpu.memory_space<vmem>>, %arg5: memref<1x8x10xf32, #tpu.memory_space<vmem>>) attributes {dimension_semantics = [#tpu.dimension_semantics<parallel>, #tpu.dimension_semantics<arbitrary>], iteration_bounds = array<i64: 1, 1>, scalar_prefetch = 0 : i64, scratch_operands = 0 : i64, tpu.core_type = #tpu.core_type<tc>, window_params = [{pipeline_mode = #tpu.pipeline_mode<synchronous>, transform_indices = @transform_0, window_bounds = array<i64: 8, 896>}, {transform_indices = @transform_1, window_bounds = array<i64: 1024, 896>}, {transform_indices = @transform_2, window_bounds = array<i64: 10, 1024>}, {transform_indices = @transform_3, window_bounds = array<i64: 1, 8, 10>}]} {
    %c0_i32 = arith.constant 0 : i32
    %0 = arith.cmpi eq, %arg1, %c0_i32 : i32
    %1 = arith.extui %0 : i1 to i32
    %c0_i32_0 = arith.constant 0 : i32
    %2 = arith.cmpi ne, %1, %c0_i32_0 : i32
    scf.if %2 {
      %cst_16 = arith.constant 0.000000e+00 : f32
      %20 = vector.broadcast %cst_16 : f32 to vector<8x10xf32>
      %c0_17 = arith.constant 0 : index
      %c0_18 = arith.constant 0 : index
      %c0_19 = arith.constant 0 : index
      %21 = vector.load %arg5[%c0_17, %c0_18, %c0_19] : memref<1x8x10xf32, #tpu.memory_space<vmem>>, vector<1x8x10xf32>
      %22 = vector.shape_cast %21 : vector<1x8x10xf32> to vector<8x10xf32>
      %23 = vector.shape_cast %20 : vector<8x10xf32> to vector<1x8x10xf32>
      tpu.vector_store %arg5[%c0_17, %c0_18, %c0_19], %23 {strides = array<i32>} : memref<1x8x10xf32, #tpu.memory_space<vmem>>, vector<1x8x10xf32>,
    } else {
    }
    %c0 = arith.constant 0 : index
    %c0_1 = arith.constant 0 : index
    %3 = vector.load %arg2[%c0, %c0_1] : memref<8x896xbf16, #tpu.memory_space<vmem>>, vector<8x896xbf16>
    %c0_2 = arith.constant 0 : index
    %c0_3 = arith.constant 0 : index
    %4 = vector.load %arg3[%c0_2, %c0_3] : memref<1024x896xbf16, #tpu.memory_space<vmem>>, vector<1024x896xbf16>
    %cst = arith.constant dense<0.000000e+00> : vector<8x1024xf32>
    %5 = tpu.matmul %3, %4, %cst {dimension_numbers = #tpu.dot_dimension_numbers<[1], [1], [0], [0], [0, 0, 1, 0], [], []>} : vector<8x896xbf16>, vector<1024x896xbf16>, vector<8x1024xf32> -> vector<8x1024xf32>
    %cst_4 = arith.constant 0.000000e+00 : f32
    %6 = vector.broadcast %cst_4 : f32 to vector<8x1024xf32>
    %7 = arith.maximumf %5, %6 : vector<8x1024xf32>
    %c0_5 = arith.constant 0 : index
    %c0_6 = arith.constant 0 : index
    %c0_7 = arith.constant 0 : index
    %8 = vector.load %arg5[%c0_5, %c0_6, %c0_7] : memref<1x8x10xf32, #tpu.memory_space<vmem>>, vector<1x8x10xf32>
    %9 = vector.shape_cast %8 : vector<1x8x10xf32> to vector<8x10xf32>
    %10 = arith.truncf %7 : vector<8x1024xf32> to vector<8x1024xbf16>
    %c0_8 = arith.constant 0 : index
    %c0_9 = arith.constant 0 : index
    %11 = vector.load %arg4[%c0_8, %c0_9] : memref<10x1024xbf16, #tpu.memory_space<vmem>>, vector<10x1024xbf16>
    %cst_10 = arith.constant dense<0.000000e+00> : vector<8x10xf32>
    %12 = tpu.matmul %10, %11, %cst_10 {dimension_numbers = #tpu.dot_dimension_numbers<[1], [1], [0], [0], [0, 0, 1, 0], [], []>} : vector<8x1024xbf16>, vector<10x1024xbf16>, vector<8x10xf32> -> vector<8x10xf32>
    %13 = arith.addf %9, %12 : vector<8x10xf32>
    %c0_11 = arith.constant 0 : index
    %c0_12 = arith.constant 0 : index
    %c0_13 = arith.constant 0 : index
    %14 = vector.load %arg5[%c0_11, %c0_12, %c0_13] : memref<1x8x10xf32, #tpu.memory_space<vmem>>, vector<1x8x10xf32>
    %15 = vector.shape_cast %14 : vector<1x8x10xf32> to vector<8x10xf32>
    %16 = vector.shape_cast %13 : vector<8x10xf32> to vector<1x8x10xf32>
    tpu.vector_store %arg5[%c0_11, %c0_12, %c0_13], %16 {strides = array<i32>} : memref<1x8x10xf32, #tpu.memory_space<vmem>>, vector<1x8x10xf32>,
    %c0_i32_14 = arith.constant 0 : i32
    %17 = arith.cmpi eq, %arg1, %c0_i32_14 : i32
    %18 = arith.extui %17 : i1 to i32
    %c0_i32_15 = arith.constant 0 : i32
    %19 = arith.cmpi ne, %18, %c0_i32_15 : i32
    scf.if %19 {
      %c0_16 = arith.constant 0 : index
      %c0_17 = arith.constant 0 : index
      %c0_18 = arith.constant 0 : index
      %20 = vector.load %arg5[%c0_16, %c0_17, %c0_18] : memref<1x8x10xf32, #tpu.memory_space<vmem>>, vector<1x8x10xf32>
      %21 = vector.shape_cast %20 : vector<1x8x10xf32> to vector<8x10xf32>
      %cst_19 = arith.constant dense<0xFF800000> : vector<8xf32>
      %22 = vector.multi_reduction <maximumf>, %21, %cst_19 [1] : vector<8x10xf32> to vector<8xf32>
      %23 = vector.shape_cast %22 : vector<8xf32> to vector<8x1xf32>
      %24 = vector.broadcast %23 : vector<8x1xf32> to vector<8x10xf32>
      %25 = arith.subf %21, %24 : vector<8x10xf32>
      %26 = math.exp %25 : vector<8x10xf32>
      %cst_20 = arith.constant dense<0.000000e+00> : vector<8xf32>
      %27 = vector.multi_reduction <add>, %26, %cst_20 [1] : vector<8x10xf32> to vector<8xf32>
      %28 = vector.shape_cast %27 : vector<8xf32> to vector<8x1xf32>
      %29 = math.log %28 : vector<8x1xf32>
      %30 = arith.addf %29, %23 : vector<8x1xf32>
      %31 = vector.broadcast %30 : vector<8x1xf32> to vector<8x10xf32>
      %32 = arith.subf %21, %31 : vector<8x10xf32>
      %c0_21 = arith.constant 0 : index
      %c0_22 = arith.constant 0 : index
      %c0_23 = arith.constant 0 : index
      %33 = vector.load %arg5[%c0_21, %c0_22, %c0_23] : memref<1x8x10xf32, #tpu.memory_space<vmem>>, vector<1x8x10xf32>
      %34 = vector.shape_cast %33 : vector<1x8x10xf32> to vector<8x10xf32>
      %35 = vector.shape_cast %32 : vector<8x10xf32> to vector<1x8x10xf32>
      tpu.vector_store %arg5[%c0_21, %c0_22, %c0_23], %35 {strides = array<i32>} : memref<1x8x10xf32, #tpu.memory_space<vmem>>, vector<1x8x10xf32>,
    } else {
    }
    return
  }
  func.func @transform_0(%arg0: i32, %arg1: i32) -> (i32, i32) {
    %c0_i32 = arith.constant 0 : i32
    %c0_i32_0 = arith.constant 0 : i32
    %c0_i32_1 = arith.constant 0 : i32
    return %c0_i32, %c0_i32_0 : i32, i32
  }
  func.func @transform_1(%arg0: i32, %arg1: i32) -> (i32, i32) {
    %c1_i32 = arith.constant 1 : i32
    %0 = arith.muli %arg0, %c1_i32 : i32
    %1 = arith.addi %0, %arg1 : i32
    %c0_i32 = arith.constant 0 : i32
    %c0_i32_0 = arith.constant 0 : i32
    return %1, %c0_i32 : i32, i32
  }
  func.func @transform_2(%arg0: i32, %arg1: i32) -> (i32, i32) {
    %c1_i32 = arith.constant 1 : i32
    %0 = arith.muli %arg0, %c1_i32 : i32
    %1 = arith.addi %0, %arg1 : i32
    %c0_i32 = arith.constant 0 : i32
    %c0_i32_0 = arith.constant 0 : i32
    return %c0_i32, %1 : i32, i32
  }
  func.func @transform_3(%arg0: i32, %arg1: i32) -> (i32, i32, i32) {
    %c0_i32 = arith.constant 0 : i32
    %c0_i32_0 = arith.constant 0 : i32
    %c0_i32_1 = arith.constant 0 : i32
    return %arg0, %c0_i32, %c0_i32_0 : i32, i32, i32
  }
}

</mosaic_0001>

<llo_original>
// kernel: tpu_custom_call.1
$region0: #{tpu_custom_call.1}
  #allocation0 [shape = 'u32[]', space=smem, size = 0x4, offset = 0x4, fixed_abs, tag = 'smem constant byte address 0x4 - core index']
  #allocation1 [shape = 'u32[144,128]{1,0:T(1,128)}', space=vmem, size = 0x12000, scoped, tag = 'internal scratch']
  %s0 = inlined_call_operand.hbm [shape: bf16[8,896], index: 0, kind: input, shape index: {}]
  %s1 = inlined_call_operand.hbm [shape: bf16[1024,896], index: 1, kind: input, shape index: {}]
  %s2 = inlined_call_operand.hbm [shape: bf16[10,1024], index: 2, kind: input, shape index: {}]
  %s3 = inlined_call_operand.hbm [shape: f32[1,8,10], index: 3, kind: output, shape index: {}]
  %s4 = sld [smem:[#allocation0]]
  $region42: #{tpu_custom_call.1} parent=0
    _
  %s6 = ssub.s32 1, %s4
  %s7 = scalar_select 0, %s6, %s4
  $region1: #{tpu_custom_call.1} parent=0
    #allocation2 [shape = 'u8[14336]{0}', space=vmem, size = 0x3800, scoped, tag = 'input window, operand 0, single buffered']
    #allocation3 [shape = 's32[1]{0}', space=sflag, size = 0x4, scoped, tag = 'scoped memory for tpu_custom_call.1']
    #allocation4 [shape = 's32[1]{0}', space=sflag, size = 0x4, scoped, tag = 'scoped memory for tpu_custom_call.1']
    #allocation5 [shape = 'u8[1835008]{0}', space=vmem, size = 0x1c0000, scoped, tag = 'input window, operand 1, single buffered']
    #allocation6 [shape = 's32[1]{0}', space=sflag, size = 0x4, scoped, tag = 'scoped memory for tpu_custom_call.1']
    #allocation7 [shape = 'u8[32768]{0}', space=vmem, size = 0x8000, scoped, tag = 'input window, operand 2, single buffered']
    #allocation8 [shape = 'u8[4096]{0}', space=vmem, size = 0x1000, scoped, tag = 'output window, operand 0, single buffered']
    %8 = vsyncpa [#allocation3], 0
    %9 = vsyncpa [#allocation6], 0
    %10 = vsyncpa [#allocation4], 0
    // Predicated region
    $region2: #{tpu_custom_call.1} parent=1 // pred_check
      _
    $region3: #{tpu_custom_call.1} parent=1 // pred_check_branch
      %12 = sbr.rel (0) target = $region5
    $region4: #{tpu_custom_call.1} parent=1 // pred_region
      %s14 = ssub.s32 448, 448
      %15 = vsyncadd [#allocation3], %s14
      %s17 = sshll.u32 [#allocation2], 4
      %s18 = int_to_ptr.vmem [resolvable:$true] %s17
      %20 = dma.hbm_to_vmem [thread:$0]  %s0, 448, %s18, [#allocation3]
    $region5: #{tpu_custom_call.1} parent=1 // pred_fallthru
      _
    // Predicated region
    $region6: #{tpu_custom_call.1} parent=1 // pred_check
      _
    $region7: #{tpu_custom_call.1} parent=1 // pred_check_branch
      %22 = sbr.rel (0) target = $region9
    $region8: #{tpu_custom_call.1} parent=1 // pred_region
      %s23 = sadd.s32 0, 0
      %s24 = smul.u32 128, %s23
      %s26 = ssub.s32 57344, 57344
      %27 = vsyncadd [#allocation6], %s26
      %s28 = smul.addr %s24, 7
      %s29 = smul.addr %s28, 64
      %s30 = scalar_lea.hbm %s1, %s29
      %s31 = sshll.u32 [#allocation5], 4
      %s32 = int_to_ptr.vmem [resolvable:$true] %s31
      %37 = dma.hbm_to_vmem [thread:$0]  %s30, 57344, %s32, [#allocation6], 448, 448, 28
    $region9: #{tpu_custom_call.1} parent=1 // pred_fallthru
      _
    // Predicated region
    $region10: #{tpu_custom_call.1} parent=1 // pred_check
      _
    $region11: #{tpu_custom_call.1} parent=1 // pred_check_branch
      %39 = sbr.rel (0) target = $region13
    $region12: #{tpu_custom_call.1} parent=1 // pred_region
      %s40 = sadd.s32 0, 0
      %s41 = smul.u32 8, %s40
      %s43 = ssub.s32 1024, 1024
      %44 = vsyncadd [#allocation6], %s43
      %s45 = smul.addr %s41, 64
      %s46 = scalar_lea.hbm %s2, %s45
      %s47 = sshll.u32 [#allocation7], 4
      %s48 = int_to_ptr.vmem [resolvable:$true] %s47
      %53 = dma.hbm_to_vmem [thread:$0]  %s46, 1024, %s48, [#allocation6], 512, 512, 32
    $region13: #{tpu_custom_call.1} parent=1 // pred_fallthru
      _
    // Predicated region
    $region14: #{tpu_custom_call.1} parent=1 // pred_check
      _
    $region15: #{tpu_custom_call.1} parent=1 // pred_check_branch
      %55 = sbr.rel (0) target = $region17
    $region16: #{tpu_custom_call.1} parent=1 // pred_region
      %56 = dma.done [#allocation3], 448
    $region17: #{tpu_custom_call.1} parent=1 // pred_fallthru
      _
    // Predicated region
    $region18: #{tpu_custom_call.1} parent=1 // pred_check
      _
    $region19: #{tpu_custom_call.1} parent=1 // pred_check_branch
      %58 = sbr.rel (0) target = $region21
    $region20: #{tpu_custom_call.1} parent=1 // pred_region
      %59 = dma.done [#allocation6], 57344
    $region21: #{tpu_custom_call.1} parent=1 // pred_fallthru
      _
    // Predicated region
    $region22: #{tpu_custom_call.1} parent=1 // pred_check
      _
    $region23: #{tpu_custom_call.1} parent=1 // pred_check_branch
      %61 = sbr.rel (0) target = $region25
    $region24: #{tpu_custom_call.1} parent=1 // pred_region
      %62 = dma.done [#allocation6], 1024
    $region25: #{tpu_custom_call.1} parent=1 // pred_fallthru
      _
    %s63 = sadd.s32 0, 0
    %s64 = smul.u32 128, %s63
    %s65 = sadd.s32 0, 0
    %s66 = smul.u32 8, %s65
    %p68 = scmp.eq.s32.totalorder 0, 0
    // Predicated region
    $region26: #{tpu_custom_call.1} parent=1 // pred_check
      %p69 = pneg %p68
    $region27: #{tpu_custom_call.1} parent=1 // pred_check_branch
      %71 = sbr.rel (%p69) target = $region29
    $region28: #{tpu_custom_call.1} parent=1 // pred_region
      %vm72 = vcmask 80896
      %73 = vst.msk [vmem:[#allocation8] sm:$0xff] %vm72, 0.0
    $region29: #{tpu_custom_call.1} parent=1 // pred_fallthru
      _
    %v74 = vld [vmem:[#allocation2] sm:$0xff]
    %v75 = vld [vmem:[#allocation2 + $0x8] sm:$0xff]
    %v76 = vld [vmem:[#allocation2 + $0x10] sm:$0xff]
    %v77 = vld [vmem:[#allocation2 + $0x18] sm:$0xf]
    %v78 = vld [vmem:[#allocation5] sm:$0xff]
    %v79 = vld [vmem:[#allocation5 + $0x8] sm:$0xff]
    %v80 = vld [vmem:[#allocation5 + $0x10] sm:$0xff]
    %v81 = vld [vmem:[#allocation5 + $0x18] sm:$0xf]
    %v82 = vld [vmem:[#allocation5 + $0x1c] sm:$0xff]
    %v83 = vld [vmem:[#allocation5 + $0x24] sm:$0xff]
    %v84 = vld [vmem:[#allocation5 + $0x2c] sm:$0xff]
    %v85 = vld [vmem:[#allocation5 + $0x34] sm:$0xf]
    %v86 = vld [vmem:[#allocation5 + $0x38] sm:$0xff]
    %v87 = vld [vmem:[#allocation5 + $0x40] sm:$0xff]
    %v88 = vld [vmem:[#allocation5 + $0x48] sm:$0xff]
    %v89 = vld [vmem:[#allocation5 + $0x50] sm:$0xf]
    %v90 = vld [vmem:[#allocation5 + $0x54] sm:$0xff]
    %v91 = vld [vmem:[#allocation5 + $0x5c] sm:$0xff]
    %v92 = vld [vmem:[#allocation5 + $0x64] sm:$0xff]
    %v93 = vld [vmem:[#allocation5 + $0x6c] sm:$0xf]
    %v94 = vld [vmem:[#allocation5 + $0x70] sm:$0xff]
    %v95 = vld [vmem:[#allocation5 + $0x78] sm:$0xff]
    %v96 = vld [vmem:[#allocation5 + $0x80] sm:$0xff]
    %v97 = vld [vmem:[#allocation5 + $0x88] sm:$0xf]
    %v98 = vld [vmem:[#allocation5 + $0x8c] sm:$0xff]
    %v99 = vld [vmem:[#allocation5 + $0x94] sm:$0xff]
    %v100 = vld [vmem:[#allocation5 + $0x9c] sm:$0xff]
    %v101 = vld [vmem:[#allocation5 + $0xa4] sm:$0xf]
    %v102 = vld [vmem:[#allocation5 + $0xa8] sm:$0xff]
    %v103 = vld [vmem:[#allocation5 + $0xb0] sm:$0xff]
    %v104 = vld [vmem:[#allocation5 + $0xb8] sm:$0xff]
    %v105 = vld [vmem:[#allocation5 + $0xc0] sm:$0xf]
    %v106 = vld [vmem:[#allocation5 + $0xc4] sm:$0xff]
    %v107 = vld [vmem:[#allocation5 + $0xcc] sm:$0xff]
    %v108 = vld [vmem:[#allocation5 + $0xd4] sm:$0xff]
    %v109 = vld [vmem:[#allocation5 + $0xdc] sm:$0xf]
    %v110 = vld [vmem:[#allocation5 + $0xe0] sm:$0xff]
    %v111 = vld [vmem:[#allocation5 + $0xe8] sm:$0xff]
    %v112 = vld [vmem:[#allocation5 + $0xf0] sm:$0xff]
    %v113 = vld [vmem:[#allocation5 + $0xf8] sm:$0xf]
    %v114 = vld [vmem:[#allocation5 + $0xfc] sm:$0xff]
    %v115 = vld [vmem:[#allocation5 + $0x104] sm:$0xff]
    %v116 = vld [vmem:[#allocation5 + $0x10c] sm:$0xff]
    %v117 = vld [vmem:[#allocation5 + $0x114] sm:$0xf]
    %v118 = vld [vmem:[#allocation5 + $0x118] sm:$0xff]
    %v119 = vld [vmem:[#allocation5 + $0x120] sm:$0xff]
    %v120 = vld [vmem:[#allocation5 + $0x128] sm:$0xff]
    %v121 = vld [vmem:[#allocation5 + $0x130] sm:$0xf]
    %v122 = vld [vmem:[#allocation5 + $0x134] sm:$0xff]
    %v123 = vld [vmem:[#allocation5 + $0x13c] sm:$0xff]
    %v124 = vld [vmem:[#allocation5 + $0x144] sm:$0xff]
    %v125 = vld [vmem:[#allocation5 + $0x14c] sm:$0xf]
    %v126 = vld [vmem:[#allocation5 + $0x150] sm:$0xff]
    %v127 = vld [vmem:[#allocation5 + $0x158] sm:$0xff]
    %v128 = vld [vmem:[#allocation5 + $0x160] sm:$0xff]
    %v129 = vld [vmem:[#allocation5 + $0x168] sm:$0xf]
    %v130 = vld [vmem:[#allocation5 + $0x16c] sm:$0xff]
    %v131 = vld [vmem:[#allocation5 + $0x174] sm:$0xff]
    %v132 = vld [vmem:[#allocation5 + $0x17c] sm:$0xff]
    %v133 = vld [vmem:[#allocation5 + $0x184] sm:$0xf]
    %v134 = vld [vmem:[#allocation5 + $0x188] sm:$0xff]
    %v135 = vld [vmem:[#allocation5 + $0x190] sm:$0xff]
    %v136 = vld [vmem:[#allocation5 + $0x198] sm:$0xff]
    %v137 = vld [vmem:[#allocation5 + $0x1a0] sm:$0xf]
    %v138 = vld [vmem:[#allocation5 + $0x1a4] sm:$0xff]
    %v139 = vld [vmem:[#allocation5 + $0x1ac] sm:$0xff]
    %v140 = vld [vmem:[#allocation5 + $0x1b4] sm:$0xff]
    %v141 = vld [vmem:[#allocation5 + $0x1bc] sm:$0xf]
    %v142 = vld [vmem:[#allocation5 + $0x1c0] sm:$0xff]
    %v143 = vld [vmem:[#allocation5 + $0x1c8] sm:$0xff]
    %v144 = vld [vmem:[#allocation5 + $0x1d0] sm:$0xff]
    %v145 = vld [vmem:[#allocation5 + $0x1d8] sm:$0xf]
    %v146 = vld [vmem:[#allocation5 + $0x1dc] sm:$0xff]
    %v147 = vld [vmem:[#allocation5 + $0x1e4] sm:$0xff]
    %v148 = vld [vmem:[#allocation5 + $0x1ec] sm:$0xff]
    %v149 = vld [vmem:[#allocation5 + $0x1f4] sm:$0xf]
    %v150 = vld [vmem:[#allocation5 + $0x1f8] sm:$0xff]
    %v151 = vld [vmem:[#allocation5 + $0x200] sm:$0xff]
    %v152 = vld [vmem:[#allocation5 + $0x208] sm:$0xff]
    %v153 = vld [vmem:[#allocation5 + $0x210] sm:$0xf]
    %v154 = vld [vmem:[#allocation5 + $0x214] sm:$0xff]
    %v155 = vld [vmem:[#allocation5 + $0x21c] sm:$0xff]
    %v156 = vld [vmem:[#allocation5 + $0x224] sm:$0xff]
    %v157 = vld [vmem:[#allocation5 + $0x22c] sm:$0xf]
    %v158 = vld [vmem:[#allocation5 + $0x230] sm:$0xff]
    %v159 = vld [vmem:[#allocation5 + $0x238] sm:$0xff]
    %v160 = vld [vmem:[#allocation5 + $0x240] sm:$0xff]
    %v161 = vld [vmem:[#allocation5 + $0x248] sm:$0xf]
    %v162 = vld [vmem:[#allocation5 + $0x24c] sm:$0xff]
    %v163 = vld [vmem:[#allocation5 + $0x254] sm:$0xff]
    %v164 = vld [vmem:[#allocation5 + $0x25c] sm:$0xff]
    %v165 = vld [vmem:[#allocation5 + $0x264] sm:$0xf]
    %v166 = vld [vmem:[#allocation5 + $0x268] sm:$0xff]
    %v167 = vld [vmem:[#allocation5 + $0x270] sm:$0xff]
    %v168 = vld [vmem:[#allocation5 + $0x278] sm:$0xff]
    %v169 = vld [vmem:[#allocation5 + $0x280] sm:$0xf]
    %v170 = vld [vmem:[#allocation5 + $0x284] sm:$0xff]
    %v171 = vld [vmem:[#allocation5 + $0x28c] sm:$0xff]
    %v172 = vld [vmem:[#allocation5 + $0x294] sm:$0xff]
    %v173 = vld [vmem:[#allocation5 + $0x29c] sm:$0xf]
    %v174 = vld [vmem:[#allocation5 + $0x2a0] sm:$0xff]
    %v175 = vld [vmem:[#allocation5 + $0x2a8] sm:$0xff]
    %v176 = vld [vmem:[#allocation5 + $0x2b0] sm:$0xff]
    %v177 = vld [vmem:[#allocation5 + $0x2b8] sm:$0xf]
    %v178 = vld [vmem:[#allocation5 + $0x2bc] sm:$0xff]
    %v179 = vld [vmem:[#allocation5 + $0x2c4] sm:$0xff]
    %v180 = vld [vmem:[#allocation5 + $0x2cc] sm:$0xff]
    %v181 = vld [vmem:[#allocation5 + $0x2d4] sm:$0xf]
    %v182 = vld [vmem:[#allocation5 + $0x2d8] sm:$0xff]
    %v183 = vld [vmem:[#allocation5 + $0x2e0] sm:$0xff]
    %v184 = vld [vmem:[#allocation5 + $0x2e8] sm:$0xff]
    %v185 = vld [vmem:[#allocation5 + $0x2f0] sm:$0xf]
    %v186 = vld [vmem:[#allocation5 + $0x2f4] sm:$0xff]
    %v187 = vld [vmem:[#allocation5 + $0x2fc] sm:$0xff]
    %v188 = vld [vmem:[#allocation5 + $0x304] sm:$0xff]
    %v189 = vld [vmem:[#allocation5 + $0x30c] sm:$0xf]
    %v190 = vld [vmem:[#allocation5 + $0x310] sm:$0xff]
    %v191 = vld [vmem:[#allocation5 + $0x318] sm:$0xff]
    %v192 = vld [vmem:[#allocation5 + $0x320] sm:$0xff]
    %v193 = vld [vmem:[#allocation5 + $0x328] sm:$0xf]
    %v194 = vld [vmem:[#allocation5 + $0x32c] sm:$0xff]
    %v195 = vld [vmem:[#allocation5 + $0x334] sm:$0xff]
    %v196 = vld [vmem:[#allocation5 + $0x33c] sm:$0xff]
    %v197 = vld [vmem:[#allocation5 + $0x344] sm:$0xf]
    %v198 = vld [vmem:[#allocation5 + $0x348] sm:$0xff]
    %v199 = vld [vmem:[#allocation5 + $0x350] sm:$0xff]
    %v200 = vld [vmem:[#allocation5 + $0x358] sm:$0xff]
    %v201 = vld [vmem:[#allocation5 + $0x360] sm:$0xf]
    %v202 = vld [vmem:[#allocation5 + $0x364] sm:$0xff]
    %v203 = vld [vmem:[#allocation5 + $0x36c] sm:$0xff]
    %v204 = vld [vmem:[#allocation5 + $0x374] sm:$0xff]
    %v205 = vld [vmem:[#allocation5 + $0x37c] sm:$0xf]
    %v206 = vld [vmem:[#allocation5 + $0x380] sm:$0xff]
    %v207 = vld [vmem:[#allocation5 + $0x388] sm:$0xff]
    %v208 = vld [vmem:[#allocation5 + $0x390] sm:$0xff]
    %v209 = vld [vmem:[#allocation5 + $0x398] sm:$0xf]
    %v210 = vld [vmem:[#allocation5 + $0x39c] sm:$0xff]
    %v211 = vld [vmem:[#allocation5 + $0x3a4] sm:$0xff]
    %v212 = vld [vmem:[#allocation5 + $0x3ac] sm:$0xff]
    %v213 = vld [vmem:[#allocation5 + $0x3b4] sm:$0xf]
    %v214 = vld [vmem:[#allocation5 + $0x3b8] sm:$0xff]
    %v215 = vld [vmem:[#allocation5 + $0x3c0] sm:$0xff]
    %v216 = vld [vmem:[#allocation5 + $0x3c8] sm:$0xff]
    %v217 = vld [vmem:[#allocation5 + $0x3d0] sm:$0xf]
    %v218 = vld [vmem:[#allocation5 + $0x3d4] sm:$0xff]
    %v219 = vld [vmem:[#allocation5 + $0x3dc] sm:$0xff]
    %v220 = vld [vmem:[#allocation5 + $0x3e4] sm:$0xff]
    %v221 = vld [vmem:[#allocation5 + $0x3ec] sm:$0xf]
    %v222 = vld [vmem:[#allocation5 + $0x3f0] sm:$0xff]
    %v223 = vld [vmem:[#allocation5 + $0x3f8] sm:$0xff]
    %v224 = vld [vmem:[#allocation5 + $0x400] sm:$0xff]
    %v225 = vld [vmem:[#allocation5 + $0x408] sm:$0xf]
    %v226 = vld [vmem:[#allocation5 + $0x40c] sm:$0xff]
    %v227 = vld [vmem:[#allocation5 + $0x414] sm:$0xff]
    %v228 = vld [vmem:[#allocation5 + $0x41c] sm:$0xff]
    %v229 = vld [vmem:[#allocation5 + $0x424] sm:$0xf]
    %v230 = vld [vmem:[#allocation5 + $0x428] sm:$0xff]
    %v231 = vld [vmem:[#allocation5 + $0x430] sm:$0xff]
    %v232 = vld [vmem:[#allocation5 + $0x438] sm:$0xff]
    %v233 = vld [vmem:[#allocation5 + $0x440] sm:$0xf]
    %v234 = vld [vmem:[#allocation5 + $0x444] sm:$0xff]
    %v235 = vld [vmem:[#allocation5 + $0x44c] sm:$0xff]
    %v236 = vld [vmem:[#allocation5 + $0x454] sm:$0xff]
    %v237 = vld [vmem:[#allocation5 + $0x45c] sm:$0xf]
    %v238 = vld [vmem:[#allocation5 + $0x460] sm:$0xff]
    %v239 = vld [vmem:[#allocation5 + $0x468] sm:$0xff]
    %v240 = vld [vmem:[#allocation5 + $0x470] sm:$0xff]
    %v241 = vld [vmem:[#allocation5 + $0x478] sm:$0xf]
    %v242 = vld [vmem:[#allocation5 + $0x47c] sm:$0xff]
    %v243 = vld [vmem:[#allocation5 + $0x484] sm:$0xff]
    %v244 = vld [vmem:[#allocation5 + $0x48c] sm:$0xff]
    %v245 = vld [vmem:[#allocation5 + $0x494] sm:$0xf]
    %v246 = vld [vmem:[#allocation5 + $0x498] sm:$0xff]
    %v247 = vld [vmem:[#allocation5 + $0x4a0] sm:$0xff]
    %v248 = vld [vmem:[#allocation5 + $0x4a8] sm:$0xff]
    %v249 = vld [vmem:[#allocation5 + $0x4b0] sm:$0xf]
    %v250 = vld [vmem:[#allocation5 + $0x4b4] sm:$0xff]
    %v251 = vld [vmem:[#allocation5 + $0x4bc] sm:$0xff]
    %v252 = vld [vmem:[#allocation5 + $0x4c4] sm:$0xff]
    %v253 = vld [vmem:[#allocation5 + $0x4cc] sm:$0xf]
    %v254 = vld [vmem:[#allocation5 + $0x4d0] sm:$0xff]
    %v255 = vld [vmem:[#allocation5 + $0x4d8] sm:$0xff]
    %v256 = vld [vmem:[#allocation5 + $0x4e0] sm:$0xff]
    %v257 = vld [vmem:[#allocation5 + $0x4e8] sm:$0xf]
    %v258 = vld [vmem:[#allocation5 + $0x4ec] sm:$0xff]
    %v259 = vld [vmem:[#allocation5 + $0x4f4] sm:$0xff]
    %v260 = vld [vmem:[#allocation5 + $0x4fc] sm:$0xff]
    %v261 = vld [vmem:[#allocation5 + $0x504] sm:$0xf]
    %v262 = vld [vmem:[#allocation5 + $0x508] sm:$0xff]
    %v263 = vld [vmem:[#allocation5 + $0x510] sm:$0xff]
    %v264 = vld [vmem:[#allocation5 + $0x518] sm:$0xff]
    %v265 = vld [vmem:[#allocation5 + $0x520] sm:$0xf]
    %v266 = vld [vmem:[#allocation5 + $0x524] sm:$0xff]
    %v267 = vld [vmem:[#allocation5 + $0x52c] sm:$0xff]
    %v268 = vld [vmem:[#allocation5 + $0x534] sm:$0xff]
    %v269 = vld [vmem:[#allocation5 + $0x53c] sm:$0xf]
    %v270 = vld [vmem:[#allocation5 + $0x540] sm:$0xff]
    %v271 = vld [vmem:[#allocation5 + $0x548] sm:$0xff]
    %v272 = vld [vmem:[#allocation5 + $0x550] sm:$0xff]
    %v273 = vld [vmem:[#allocation5 + $0x558] sm:$0xf]
    %v274 = vld [vmem:[#allocation5 + $0x55c] sm:$0xff]
    %v275 = vld [vmem:[#allocation5 + $0x564] sm:$0xff]
    %v276 = vld [vmem:[#allocation5 + $0x56c] sm:$0xff]
    %v277 = vld [vmem:[#allocation5 + $0x574] sm:$0xf]
    %v278 = vld [vmem:[#allocation5 + $0x578] sm:$0xff]
    %v279 = vld [vmem:[#allocation5 + $0x580] sm:$0xff]
    %v280 = vld [vmem:[#allocation5 + $0x588] sm:$0xff]
    %v281 = vld [vmem:[#allocation5 + $0x590] sm:$0xf]
    %v282 = vld [vmem:[#allocation5 + $0x594] sm:$0xff]
    %v283 = vld [vmem:[#allocation5 + $0x59c] sm:$0xff]
    %v284 = vld [vmem:[#allocation5 + $0x5a4] sm:$0xff]
    %v285 = vld [vmem:[#allocation5 + $0x5ac] sm:$0xf]
    %v286 = vld [vmem:[#allocation5 + $0x5b0] sm:$0xff]
    %v287 = vld [vmem:[#allocation5 + $0x5b8] sm:$0xff]
    %v288 = vld [vmem:[#allocation5 + $0x5c0] sm:$0xff]
    %v289 = vld [vmem:[#allocation5 + $0x5c8] sm:$0xf]
    %v290 = vld [vmem:[#allocation5 + $0x5cc] sm:$0xff]
    %v291 = vld [vmem:[#allocation5 + $0x5d4] sm:$0xff]
    %v292 = vld [vmem:[#allocation5 + $0x5dc] sm:$0xff]
    %v293 = vld [vmem:[#allocation5 + $0x5e4] sm:$0xf]
    %v294 = vld [vmem:[#allocation5 + $0x5e8] sm:$0xff]
    %v295 = vld [vmem:[#allocation5 + $0x5f0] sm:$0xff]
    %v296 = vld [vmem:[#allocation5 + $0x5f8] sm:$0xff]
    %v297 = vld [vmem:[#allocation5 + $0x600] sm:$0xf]
    %v298 = vld [vmem:[#allocation5 + $0x604] sm:$0xff]
    %v299 = vld [vmem:[#allocation5 + $0x60c] sm:$0xff]
    %v300 = vld [vmem:[#allocation5 + $0x614] sm:$0xff]
    %v301 = vld [vmem:[#allocation5 + $0x61c] sm:$0xf]
    %v302 = vld [vmem:[#allocation5 + $0x620] sm:$0xff]
    %v303 = vld [vmem:[#allocation5 + $0x628] sm:$0xff]
    %v304 = vld [vmem:[#allocation5 + $0x630] sm:$0xff]
    %v305 = vld [vmem:[#allocation5 + $0x638] sm:$0xf]
    %v306 = vld [vmem:[#allocation5 + $0x63c] sm:$0xff]
    %v307 = vld [vmem:[#allocation5 + $0x644] sm:$0xff]
    %v308 = vld [vmem:[#allocation5 + $0x64c] sm:$0xff]
    %v309 = vld [vmem:[#allocation5 + $0x654] sm:$0xf]
    %v310 = vld [vmem:[#allocation5 + $0x658] sm:$0xff]
    %v311 = vld [vmem:[#allocation5 + $0x660] sm:$0xff]
    %v312 = vld [vmem:[#allocation5 + $0x668] sm:$0xff]
    %v313 = vld [vmem:[#allocation5 + $0x670] sm:$0xf]
    %v314 = vld [vmem:[#allocation5 + $0x674] sm:$0xff]
    %v315 = vld [vmem:[#allocation5 + $0x67c] sm:$0xff]
    %v316 = vld [vmem:[#allocation5 + $0x684] sm:$0xff]
    %v317 = vld [vmem:[#allocation5 + $0x68c] sm:$0xf]
    %v318 = vld [vmem:[#allocation5 + $0x690] sm:$0xff]
    %v319 = vld [vmem:[#allocation5 + $0x698] sm:$0xff]
    %v320 = vld [vmem:[#allocation5 + $0x6a0] sm:$0xff]
    %v321 = vld [vmem:[#allocation5 + $0x6a8] sm:$0xf]
    %v322 = vld [vmem:[#allocation5 + $0x6ac] sm:$0xff]
    %v323 = vld [vmem:[#allocation5 + $0x6b4] sm:$0xff]
    %v324 = vld [vmem:[#allocation5 + $0x6bc] sm:$0xff]
    %v325 = vld [vmem:[#allocation5 + $0x6c4] sm:$0xf]
    %v326 = vld [vmem:[#allocation5 + $0x6c8] sm:$0xff]
    %v327 = vld [vmem:[#allocation5 + $0x6d0] sm:$0xff]
    %v328 = vld [vmem:[#allocation5 + $0x6d8] sm:$0xff]
    %v329 = vld [vmem:[#allocation5 + $0x6e0] sm:$0xf]
    %v330 = vld [vmem:[#allocation5 + $0x6e4] sm:$0xff]
    %v331 = vld [vmem:[#allocation5 + $0x6ec] sm:$0xff]
    %v332 = vld [vmem:[#allocation5 + $0x6f4] sm:$0xff]
    %v333 = vld [vmem:[#allocation5 + $0x6fc] sm:$0xf]
    %v334 = vld [vmem:[#allocation5 + $0x700] sm:$0xff]
    %v335 = vld [vmem:[#allocation5 + $0x708] sm:$0xff]
    %v336 = vld [vmem:[#allocation5 + $0x710] sm:$0xff]
    %v337 = vld [vmem:[#allocation5 + $0x718] sm:$0xf]
    %v338 = vld [vmem:[#allocation5 + $0x71c] sm:$0xff]
    %v339 = vld [vmem:[#allocation5 + $0x724] sm:$0xff]
    %v340 = vld [vmem:[#allocation5 + $0x72c] sm:$0xff]
    %v341 = vld [vmem:[#allocation5 + $0x734] sm:$0xf]
    %v342 = vld [vmem:[#allocation5 + $0x738] sm:$0xff]
    %v343 = vld [vmem:[#allocation5 + $0x740] sm:$0xff]
    %v344 = vld [vmem:[#allocation5 + $0x748] sm:$0xff]
    %v345 = vld [vmem:[#allocation5 + $0x750] sm:$0xf]
    %v346 = vld [vmem:[#allocation5 + $0x754] sm:$0xff]
    %v347 = vld [vmem:[#allocation5 + $0x75c] sm:$0xff]
    %v348 = vld [vmem:[#allocation5 + $0x764] sm:$0xff]
    %v349 = vld [vmem:[#allocation5 + $0x76c] sm:$0xf]
    %v350 = vld [vmem:[#allocation5 + $0x770] sm:$0xff]
    %v351 = vld [vmem:[#allocation5 + $0x778] sm:$0xff]
    %v352 = vld [vmem:[#allocation5 + $0x780] sm:$0xff]
    %v353 = vld [vmem:[#allocation5 + $0x788] sm:$0xf]
    %v354 = vld [vmem:[#allocation5 + $0x78c] sm:$0xff]
    %v355 = vld [vmem:[#allocation5 + $0x794] sm:$0xff]
    %v356 = vld [vmem:[#allocation5 + $0x79c] sm:$0xff]
    %v357 = vld [vmem:[#allocation5 + $0x7a4] sm:$0xf]
    %v358 = vld [vmem:[#allocation5 + $0x7a8] sm:$0xff]
    %v359 = vld [vmem:[#allocation5 + $0x7b0] sm:$0xff]
    %v360 = vld [vmem:[#allocation5 + $0x7b8] sm:$0xff]
    %v361 = vld [vmem:[#allocation5 + $0x7c0] sm:$0xf]
    %v362 = vld [vmem:[#allocation5 + $0x7c4] sm:$0xff]
    %v363 = vld [vmem:[#allocation5 + $0x7cc] sm:$0xff]
    %v364 = vld [vmem:[#allocation5 + $0x7d4] sm:$0xff]
    %v365 = vld [vmem:[#allocation5 + $0x7dc] sm:$0xf]
    %v366 = vld [vmem:[#allocation5 + $0x7e0] sm:$0xff]
    %v367 = vld [vmem:[#allocation5 + $0x7e8] sm:$0xff]
    %v368 = vld [vmem:[#allocation5 + $0x7f0] sm:$0xff]
    %v369 = vld [vmem:[#allocation5 + $0x7f8] sm:$0xf]
    %v370 = vld [vmem:[#allocation5 + $0x7fc] sm:$0xff]
    %v371 = vld [vmem:[#allocation5 + $0x804] sm:$0xff]
    %v372 = vld [vmem:[#allocation5 + $0x80c] sm:$0xff]
    %v373 = vld [vmem:[#allocation5 + $0x814] sm:$0xf]
    %v374 = vld [vmem:[#allocation5 + $0x818] sm:$0xff]
    %v375 = vld [vmem:[#allocation5 + $0x820] sm:$0xff]
    %v376 = vld [vmem:[#allocation5 + $0x828] sm:$0xff]
    %v377 = vld [vmem:[#allocation5 + $0x830] sm:$0xf]
    %v378 = vld [vmem:[#allocation5 + $0x834] sm:$0xff]
    %v379 = vld [vmem:[#allocation5 + $0x83c] sm:$0xff]
    %v380 = vld [vmem:[#allocation5 + $0x844] sm:$0xff]
    %v381 = vld [vmem:[#allocation5 + $0x84c] sm:$0xf]
    %v382 = vld [vmem:[#allocation5 + $0x850] sm:$0xff]
    %v383 = vld [vmem:[#allocation5 + $0x858] sm:$0xff]
    %v384 = vld [vmem:[#allocation5 + $0x860] sm:$0xff]
    %v385 = vld [vmem:[#allocation5 + $0x868] sm:$0xf]
    %v386 = vld [vmem:[#allocation5 + $0x86c] sm:$0xff]
    %v387 = vld [vmem:[#allocation5 + $0x874] sm:$0xff]
    %v388 = vld [vmem:[#allocation5 + $0x87c] sm:$0xff]
    %v389 = vld [vmem:[#allocation5 + $0x884] sm:$0xf]
    %v390 = vld [vmem:[#allocation5 + $0x888] sm:$0xff]
    %v391 = vld [vmem:[#allocation5 + $0x890] sm:$0xff]
    %v392 = vld [vmem:[#allocation5 + $0x898] sm:$0xff]
    %v393 = vld [vmem:[#allocation5 + $0x8a0] sm:$0xf]
    %v394 = vld [vmem:[#allocation5 + $0x8a4] sm:$0xff]
    %v395 = vld [vmem:[#allocation5 + $0x8ac] sm:$0xff]
    %v396 = vld [vmem:[#allocation5 + $0x8b4] sm:$0xff]
    %v397 = vld [vmem:[#allocation5 + $0x8bc] sm:$0xf]
    %v398 = vld [vmem:[#allocation5 + $0x8c0] sm:$0xff]
    %v399 = vld [vmem:[#allocation5 + $0x8c8] sm:$0xff]
    %v400 = vld [vmem:[#allocation5 + $0x8d0] sm:$0xff]
    %v401 = vld [vmem:[#allocation5 + $0x8d8] sm:$0xf]
    %v402 = vld [vmem:[#allocation5 + $0x8dc] sm:$0xff]
    %v403 = vld [vmem:[#allocation5 + $0x8e4] sm:$0xff]
    %v404 = vld [vmem:[#allocation5 + $0x8ec] sm:$0xff]
    %v405 = vld [vmem:[#allocation5 + $0x8f4] sm:$0xf]
    %v406 = vld [vmem:[#allocation5 + $0x8f8] sm:$0xff]
    %v407 = vld [vmem:[#allocation5 + $0x900] sm:$0xff]
    %v408 = vld [vmem:[#allocation5 + $0x908] sm:$0xff]
    %v409 = vld [vmem:[#allocation5 + $0x910] sm:$0xf]
    %v410 = vld [vmem:[#allocation5 + $0x914] sm:$0xff]
    %v411 = vld [vmem:[#allocation5 + $0x91c] sm:$0xff]
    %v412 = vld [vmem:[#allocation5 + $0x924] sm:$0xff]
    %v413 = vld [vmem:[#allocation5 + $0x92c] sm:$0xf]
    %v414 = vld [vmem:[#allocation5 + $0x930] sm:$0xff]
    %v415 = vld [vmem:[#allocation5 + $0x938] sm:$0xff]
    %v416 = vld [vmem:[#allocation5 + $0x940] sm:$0xff]
    %v417 = vld [vmem:[#allocation5 + $0x948] sm:$0xf]
    %v418 = vld [vmem:[#allocation5 + $0x94c] sm:$0xff]
    %v419 = vld [vmem:[#allocation5 + $0x954] sm:$0xff]
    %v420 = vld [vmem:[#allocation5 + $0x95c] sm:$0xff]
    %v421 = vld [vmem:[#allocation5 + $0x964] sm:$0xf]
    %v422 = vld [vmem:[#allocation5 + $0x968] sm:$0xff]
    %v423 = vld [vmem:[#allocation5 + $0x970] sm:$0xff]
    %v424 = vld [vmem:[#allocation5 + $0x978] sm:$0xff]
    %v425 = vld [vmem:[#allocation5 + $0x980] sm:$0xf]
    %v426 = vld [vmem:[#allocation5 + $0x984] sm:$0xff]
    %v427 = vld [vmem:[#allocation5 + $0x98c] sm:$0xff]
    %v428 = vld [vmem:[#allocation5 + $0x994] sm:$0xff]
    %v429 = vld [vmem:[#allocation5 + $0x99c] sm:$0xf]
    %v430 = vld [vmem:[#allocation5 + $0x9a0] sm:$0xff]
    %v431 = vld [vmem:[#allocation5 + $0x9a8] sm:$0xff]
    %v432 = vld [vmem:[#allocation5 + $0x9b0] sm:$0xff]
    %v433 = vld [vmem:[#allocation5 + $0x9b8] sm:$0xf]
    %v434 = vld [vmem:[#allocation5 + $0x9bc] sm:$0xff]
    %v435 = vld [vmem:[#allocation5 + $0x9c4] sm:$0xff]
    %v436 = vld [vmem:[#allocation5 + $0x9cc] sm:$0xff]
    %v437 = vld [vmem:[#allocation5 + $0x9d4] sm:$0xf]
    %v438 = vld [vmem:[#allocation5 + $0x9d8] sm:$0xff]
    %v439 = vld [vmem:[#allocation5 + $0x9e0] sm:$0xff]
    %v440 = vld [vmem:[#allocation5 + $0x9e8] sm:$0xff]
    %v441 = vld [vmem:[#allocation5 + $0x9f0] sm:$0xf]
    %v442 = vld [vmem:[#allocation5 + $0x9f4] sm:$0xff]
    %v443 = vld [vmem:[#allocation5 + $0x9fc] sm:$0xff]
    %v444 = vld [vmem:[#allocation5 + $0xa04] sm:$0xff]
    %v445 = vld [vmem:[#allocation5 + $0xa0c] sm:$0xf]
    %v446 = vld [vmem:[#allocation5 + $0xa10] sm:$0xff]
    %v447 = vld [vmem:[#allocation5 + $0xa18] sm:$0xff]
    %v448 = vld [vmem:[#allocation5 + $0xa20] sm:$0xff]
    %v449 = vld [vmem:[#allocation5 + $0xa28] sm:$0xf]
    %v450 = vld [vmem:[#allocation5 + $0xa2c] sm:$0xff]
    %v451 = vld [vmem:[#allocation5 + $0xa34] sm:$0xff]
    %v452 = vld [vmem:[#allocation5 + $0xa3c] sm:$0xff]
    %v453 = vld [vmem:[#allocation5 + $0xa44] sm:$0xf]
    %v454 = vld [vmem:[#allocation5 + $0xa48] sm:$0xff]
    %v455 = vld [vmem:[#allocation5 + $0xa50] sm:$0xff]
    %v456 = vld [vmem:[#allocation5 + $0xa58] sm:$0xff]
    %v457 = vld [vmem:[#allocation5 + $0xa60] sm:$0xf]
    %v458 = vld [vmem:[#allocation5 + $0xa64] sm:$0xff]
    %v459 = vld [vmem:[#allocation5 + $0xa6c] sm:$0xff]
    %v460 = vld [vmem:[#allocation5 + $0xa74] sm:$0xff]
    %v461 = vld [vmem:[#allocation5 + $0xa7c] sm:$0xf]
    %v462 = vld [vmem:[#allocation5 + $0xa80] sm:$0xff]
    %v463 = vld [vmem:[#allocation5 + $0xa88] sm:$0xff]
    %v464 = vld [vmem:[#allocation5 + $0xa90] sm:$0xff]
    %v465 = vld [vmem:[#allocation5 + $0xa98] sm:$0xf]
    %v466 = vld [vmem:[#allocation5 + $0xa9c] sm:$0xff]
    %v467 = vld [vmem:[#allocation5 + $0xaa4] sm:$0xff]
    %v468 = vld [vmem:[#allocation5 + $0xaac] sm:$0xff]
    %v469 = vld [vmem:[#allocation5 + $0xab4] sm:$0xf]
    %v470 = vld [vmem:[#allocation5 + $0xab8] sm:$0xff]
    %v471 = vld [vmem:[#allocation5 + $0xac0] sm:$0xff]
    %v472 = vld [vmem:[#allocation5 + $0xac8] sm:$0xff]
    %v473 = vld [vmem:[#allocation5 + $0xad0] sm:$0xf]
    %v474 = vld [vmem:[#allocation5 + $0xad4] sm:$0xff]
    %v475 = vld [vmem:[#allocation5 + $0xadc] sm:$0xff]
    %v476 = vld [vmem:[#allocation5 + $0xae4] sm:$0xff]
    %v477 = vld [vmem:[#allocation5 + $0xaec] sm:$0xf]
    %v478 = vld [vmem:[#allocation5 + $0xaf0] sm:$0xff]
    %v479 = vld [vmem:[#allocation5 + $0xaf8] sm:$0xff]
    %v480 = vld [vmem:[#allocation5 + $0xb00] sm:$0xff]
    %v481 = vld [vmem:[#allocation5 + $0xb08] sm:$0xf]
    %v482 = vld [vmem:[#allocation5 + $0xb0c] sm:$0xff]
    %v483 = vld [vmem:[#allocation5 + $0xb14] sm:$0xff]
    %v484 = vld [vmem:[#allocation5 + $0xb1c] sm:$0xff]
    %v485 = vld [vmem:[#allocation5 + $0xb24] sm:$0xf]
    %v486 = vld [vmem:[#allocation5 + $0xb28] sm:$0xff]
    %v487 = vld [vmem:[#allocation5 + $0xb30] sm:$0xff]
    %v488 = vld [vmem:[#allocation5 + $0xb38] sm:$0xff]
    %v489 = vld [vmem:[#allocation5 + $0xb40] sm:$0xf]
    %v490 = vld [vmem:[#allocation5 + $0xb44] sm:$0xff]
    %v491 = vld [vmem:[#allocation5 + $0xb4c] sm:$0xff]
    %v492 = vld [vmem:[#allocation5 + $0xb54] sm:$0xff]
    %v493 = vld [vmem:[#allocation5 + $0xb5c] sm:$0xf]
    %v494 = vld [vmem:[#allocation5 + $0xb60] sm:$0xff]
    %v495 = vld [vmem:[#allocation5 + $0xb68] sm:$0xff]
    %v496 = vld [vmem:[#allocation5 + $0xb70] sm:$0xff]
    %v497 = vld [vmem:[#allocation5 + $0xb78] sm:$0xf]
    %v498 = vld [vmem:[#allocation5 + $0xb7c] sm:$0xff]
    %v499 = vld [vmem:[#allocation5 + $0xb84] sm:$0xff]
    %v500 = vld [vmem:[#allocation5 + $0xb8c] sm:$0xff]
    %v501 = vld [vmem:[#allocation5 + $0xb94] sm:$0xf]
    %v502 = vld [vmem:[#allocation5 + $0xb98] sm:$0xff]
    %v503 = vld [vmem:[#allocation5 + $0xba0] sm:$0xff]
    %v504 = vld [vmem:[#allocation5 + $0xba8] sm:$0xff]
    %v505 = vld [vmem:[#allocation5 + $0xbb0] sm:$0xf]
    %v506 = vld [vmem:[#allocation5 + $0xbb4] sm:$0xff]
    %v507 = vld [vmem:[#allocation5 + $0xbbc] sm:$0xff]
    %v508 = vld [vmem:[#allocation5 + $0xbc4] sm:$0xff]
    %v509 = vld [vmem:[#allocation5 + $0xbcc] sm:$0xf]
    %v510 = vld [vmem:[#allocation5 + $0xbd0] sm:$0xff]
    %v511 = vld [vmem:[#allocation5 + $0xbd8] sm:$0xff]
    %v512 = vld [vmem:[#allocation5 + $0xbe0] sm:$0xff]
    %v513 = vld [vmem:[#allocation5 + $0xbe8] sm:$0xf]
    %v514 = vld [vmem:[#allocation5 + $0xbec] sm:$0xff]
    %v515 = vld [vmem:[#allocation5 + $0xbf4] sm:$0xff]
    %v516 = vld [vmem:[#allocation5 + $0xbfc] sm:$0xff]
    %v517 = vld [vmem:[#allocation5 + $0xc04] sm:$0xf]
    %v518 = vld [vmem:[#allocation5 + $0xc08] sm:$0xff]
    %v519 = vld [vmem:[#allocation5 + $0xc10] sm:$0xff]
    %v520 = vld [vmem:[#allocation5 + $0xc18] sm:$0xff]
    %v521 = vld [vmem:[#allocation5 + $0xc20] sm:$0xf]
    %v522 = vld [vmem:[#allocation5 + $0xc24] sm:$0xff]
    %v523 = vld [vmem:[#allocation5 + $0xc2c] sm:$0xff]
    %v524 = vld [vmem:[#allocation5 + $0xc34] sm:$0xff]
    %v525 = vld [vmem:[#allocation5 + $0xc3c] sm:$0xf]
    %v526 = vld [vmem:[#allocation5 + $0xc40] sm:$0xff]
    %v527 = vld [vmem:[#allocation5 + $0xc48] sm:$0xff]
    %v528 = vld [vmem:[#allocation5 + $0xc50] sm:$0xff]
    %v529 = vld [vmem:[#allocation5 + $0xc58] sm:$0xf]
    %v530 = vld [vmem:[#allocation5 + $0xc5c] sm:$0xff]
    %v531 = vld [vmem:[#allocation5 + $0xc64] sm:$0xff]
    %v532 = vld [vmem:[#allocation5 + $0xc6c] sm:$0xff]
    %v533 = vld [vmem:[#allocation5 + $0xc74] sm:$0xf]
    %v534 = vld [vmem:[#allocation5 + $0xc78] sm:$0xff]
    %v535 = vld [vmem:[#allocation5 + $0xc80] sm:$0xff]
    %v536 = vld [vmem:[#allocation5 + $0xc88] sm:$0xff]
    %v537 = vld [vmem:[#allocation5 + $0xc90] sm:$0xf]
    %v538 = vld [vmem:[#allocation5 + $0xc94] sm:$0xff]
    %v539 = vld [vmem:[#allocation5 + $0xc9c] sm:$0xff]
    %v540 = vld [vmem:[#allocation5 + $0xca4] sm:$0xff]
    %v541 = vld [vmem:[#allocation5 + $0xcac] sm:$0xf]
    %v542 = vld [vmem:[#allocation5 + $0xcb0] sm:$0xff]
    %v543 = vld [vmem:[#allocation5 + $0xcb8] sm:$0xff]
    %v544 = vld [vmem:[#allocation5 + $0xcc0] sm:$0xff]
    %v545 = vld [vmem:[#allocation5 + $0xcc8] sm:$0xf]
    %v546 = vld [vmem:[#allocation5 + $0xccc] sm:$0xff]
    %v547 = vld [vmem:[#allocation5 + $0xcd4] sm:$0xff]
    %v548 = vld [vmem:[#allocation5 + $0xcdc] sm:$0xff]
    %v549 = vld [vmem:[#allocation5 + $0xce4] sm:$0xf]
    %v550 = vld [vmem:[#allocation5 + $0xce8] sm:$0xff]
    %v551 = vld [vmem:[#allocation5 + $0xcf0] sm:$0xff]
    %v552 = vld [vmem:[#allocation5 + $0xcf8] sm:$0xff]
    %v553 = vld [vmem:[#allocation5 + $0xd00] sm:$0xf]
    %v554 = vld [vmem:[#allocation5 + $0xd04] sm:$0xff]
    %v555 = vld [vmem:[#allocation5 + $0xd0c] sm:$0xff]
    %v556 = vld [vmem:[#allocation5 + $0xd14] sm:$0xff]
    %v557 = vld [vmem:[#allocation5 + $0xd1c] sm:$0xf]
    %v558 = vld [vmem:[#allocation5 + $0xd20] sm:$0xff]
    %v559 = vld [vmem:[#allocation5 + $0xd28] sm:$0xff]
    %v560 = vld [vmem:[#allocation5 + $0xd30] sm:$0xff]
    %v561 = vld [vmem:[#allocation5 + $0xd38] sm:$0xf]
    %v562 = vld [vmem:[#allocation5 + $0xd3c] sm:$0xff]
    %v563 = vld [vmem:[#allocation5 + $0xd44] sm:$0xff]
    %v564 = vld [vmem:[#allocation5 + $0xd4c] sm:$0xff]
    %v565 = vld [vmem:[#allocation5 + $0xd54] sm:$0xf]
    %v566 = vld [vmem:[#allocation5 + $0xd58] sm:$0xff]
    %v567 = vld [vmem:[#allocation5 + $0xd60] sm:$0xff]
    %v568 = vld [vmem:[#allocation5 + $0xd68] sm:$0xff]
    %v569 = vld [vmem:[#allocation5 + $0xd70] sm:$0xf]
    %v570 = vld [vmem:[#allocation5 + $0xd74] sm:$0xff]
    %v571 = vld [vmem:[#allocation5 + $0xd7c] sm:$0xff]
    %v572 = vld [vmem:[#allocation5 + $0xd84] sm:$0xff]
    %v573 = vld [vmem:[#allocation5 + $0xd8c] sm:$0xf]
    %v574 = vld [vmem:[#allocation5 + $0xd90] sm:$0xff]
    %v575 = vld [vmem:[#allocation5 + $0xd98] sm:$0xff]
    %v576 = vld [vmem:[#allocation5 + $0xda0] sm:$0xff]
    %v577 = vld [vmem:[#allocation5 + $0xda8] sm:$0xf]
    %v578 = vld [vmem:[#allocation5 + $0xdac] sm:$0xff]
    %v579 = vld [vmem:[#allocation5 + $0xdb4] sm:$0xff]
    %v580 = vld [vmem:[#allocation5 + $0xdbc] sm:$0xff]
    %v581 = vld [vmem:[#allocation5 + $0xdc4] sm:$0xf]
    %v582 = vld [vmem:[#allocation5 + $0xdc8] sm:$0xff]
    %v583 = vld [vmem:[#allocation5 + $0xdd0] sm:$0xff]
    %v584 = vld [vmem:[#allocation5 + $0xdd8] sm:$0xff]
    %v585 = vld [vmem:[#allocation5 + $0xde0] sm:$0xf]
    %v586 = vld [vmem:[#allocation5 + $0xde4] sm:$0xff]
    %v587 = vld [vmem:[#allocation5 + $0xdec] sm:$0xff]
    %v588 = vld [vmem:[#allocation5 + $0xdf4] sm:$0xff]
    %v589 = vld [vmem:[#allocation5 + $0xdfc] sm:$0xf]
    %v594 = vunpack.c.l.b16 %v74
    %v595 = vunpack.c.h.b16 %v74
    %v596 = vunpack.c.l.b16 %v75
    %v597 = vunpack.c.h.b16 %v75
    %v598 = vunpack.c.l.b16 %v76
    %v599 = vunpack.c.h.b16 %v76
    %v600 = vunpack.c.l.b16 %v77
    %v601 = vpack.c.b16 %v594, %v594
    %v602 = vpack.c.b16 %v595, %v595
    %v603 = vpack.c.b16 %v596, %v596
    %v604 = vpack.c.b16 %v597, %v597
    %v605 = vpack.c.b16 %v598, %v598
    %v606 = vpack.c.b16 %v599, %v599
    %v607 = vpack.c.b16 %v600, %v600
    %v1127 = vunpack.c.l.b16 %v78
    %v1128 = vunpack.c.h.b16 %v78
    %v1129 = vunpack.c.l.b16 %v79
    %v1130 = vunpack.c.h.b16 %v79
    %v1131 = vunpack.c.l.b16 %v80
    %v1132 = vunpack.c.h.b16 %v80
    %v1133 = vunpack.c.l.b16 %v81
    %v1134 = vunpack.c.l.b16 %v82
    %v1135 = vunpack.c.h.b16 %v82
    %v1136 = vunpack.c.l.b16 %v83
    %v1137 = vunpack.c.h.b16 %v83
    %v1138 = vunpack.c.l.b16 %v84
    %v1139 = vunpack.c.h.b16 %v84
    %v1140 = vunpack.c.l.b16 %v85
    %v1141 = vunpack.c.l.b16 %v86
    %v1142 = vunpack.c.h.b16 %v86
    %v1143 = vunpack.c.l.b16 %v87
    %v1144 = vunpack.c.h.b16 %v87
    %v1145 = vunpack.c.l.b16 %v88
    %v1146 = vunpack.c.h.b16 %v88
    %v1147 = vunpack.c.l.b16 %v89
    %v1148 = vunpack.c.l.b16 %v90
    %v1149 = vunpack.c.h.b16 %v90
    %v1150 = vunpack.c.l.b16 %v91
    %v1151 = vunpack.c.h.b16 %v91
    %v1152 = vunpack.c.l.b16 %v92
    %v1153 = vunpack.c.h.b16 %v92
    %v1154 = vunpack.c.l.b16 %v93
    %v1155 = vunpack.c.l.b16 %v94
    %v1156 = vunpack.c.h.b16 %v94
    %v1157 = vunpack.c.l.b16 %v95
    %v1158 = vunpack.c.h.b16 %v95
    %v1159 = vunpack.c.l.b16 %v96
    %v1160 = vunpack.c.h.b16 %v96
    %v1161 = vunpack.c.l.b16 %v97
    %v1162 = vunpack.c.l.b16 %v98
    %v1163 = vunpack.c.h.b16 %v98
    %v1164 = vunpack.c.l.b16 %v99
    %v1165 = vunpack.c.h.b16 %v99
    %v1166 = vunpack.c.l.b16 %v100
    %v1167 = vunpack.c.h.b16 %v100
    %v1168 = vunpack.c.l.b16 %v101
    %v1169 = vunpack.c.l.b16 %v102
    %v1170 = vunpack.c.h.b16 %v102
    %v1171 = vunpack.c.l.b16 %v103
    %v1172 = vunpack.c.h.b16 %v103
    %v1173 = vunpack.c.l.b16 %v104
    %v1174 = vunpack.c.h.b16 %v104
    %v1175 = vunpack.c.l.b16 %v105
    %v1176 = vunpack.c.l.b16 %v106
    %v1177 = vunpack.c.h.b16 %v106
    %v1178 = vunpack.c.l.b16 %v107
    %v1179 = vunpack.c.h.b16 %v107
    %v1180 = vunpack.c.l.b16 %v108
    %v1181 = vunpack.c.h.b16 %v108
    %v1182 = vunpack.c.l.b16 %v109
    %v1183 = vunpack.c.l.b16 %v110
    %v1184 = vunpack.c.h.b16 %v110
    %v1185 = vunpack.c.l.b16 %v111
    %v1186 = vunpack.c.h.b16 %v111
    %v1187 = vunpack.c.l.b16 %v112
    %v1188 = vunpack.c.h.b16 %v112
    %v1189 = vunpack.c.l.b16 %v113
    %v1190 = vunpack.c.l.b16 %v114
    %v1191 = vunpack.c.h.b16 %v114
    %v1192 = vunpack.c.l.b16 %v115
    %v1193 = vunpack.c.h.b16 %v115
    %v1194 = vunpack.c.l.b16 %v116
    %v1195 = vunpack.c.h.b16 %v116
    %v1196 = vunpack.c.l.b16 %v117
    %v1197 = vunpack.c.l.b16 %v118
    %v1198 = vunpack.c.h.b16 %v118
    %v1199 = vunpack.c.l.b16 %v119
    %v1200 = vunpack.c.h.b16 %v119
    %v1201 = vunpack.c.l.b16 %v120
    %v1202 = vunpack.c.h.b16 %v120
    %v1203 = vunpack.c.l.b16 %v121
    %v1204 = vunpack.c.l.b16 %v122
    %v1205 = vunpack.c.h.b16 %v122
    %v1206 = vunpack.c.l.b16 %v123
    %v1207 = vunpack.c.h.b16 %v123
    %v1208 = vunpack.c.l.b16 %v124
    %v1209 = vunpack.c.h.b16 %v124
    %v1210 = vunpack.c.l.b16 %v125
    %v1211 = vunpack.c.l.b16 %v126
    %v1212 = vunpack.c.h.b16 %v126
    %v1213 = vunpack.c.l.b16 %v127
    %v1214 = vunpack.c.h.b16 %v127
    %v1215 = vunpack.c.l.b16 %v128
    %v1216 = vunpack.c.h.b16 %v128
    %v1217 = vunpack.c.l.b16 %v129
    %v1218 = vunpack.c.l.b16 %v130
    %v1219 = vunpack.c.h.b16 %v130
    %v1220 = vunpack.c.l.b16 %v131
    %v1221 = vunpack.c.h.b16 %v131
    %v1222 = vunpack.c.l.b16 %v132
    %v1223 = vunpack.c.h.b16 %v132
    %v1224 = vunpack.c.l.b16 %v133
    %v1225 = vunpack.c.l.b16 %v134
    %v1226 = vunpack.c.h.b16 %v134
    %v1227 = vunpack.c.l.b16 %v135
    %v1228 = vunpack.c.h.b16 %v135
    %v1229 = vunpack.c.l.b16 %v136
    %v1230 = vunpack.c.h.b16 %v136
    %v1231 = vunpack.c.l.b16 %v137
    %v1232 = vunpack.c.l.b16 %v138
    %v1233 = vunpack.c.h.b16 %v138
    %v1234 = vunpack.c.l.b16 %v139
    %v1235 = vunpack.c.h.b16 %v139
    %v1236 = vunpack.c.l.b16 %v140
    %v1237 = vunpack.c.h.b16 %v140
    %v1238 = vunpack.c.l.b16 %v141
    %v1239 = vunpack.c.l.b16 %v142
    %v1240 = vunpack.c.h.b16 %v142
    %v1241 = vunpack.c.l.b16 %v143
    %v1242 = vunpack.c.h.b16 %v143
    %v1243 = vunpack.c.l.b16 %v144
    %v1244 = vunpack.c.h.b16 %v144
    %v1245 = vunpack.c.l.b16 %v145
    %v1246 = vunpack.c.l.b16 %v146
    %v1247 = vunpack.c.h.b16 %v146
    %v1248 = vunpack.c.l.b16 %v147
    %v1249 = vunpack.c.h.b16 %v147
    %v1250 = vunpack.c.l.b16 %v148
    %v1251 = vunpack.c.h.b16 %v148
    %v1252 = vunpack.c.l.b16 %v149
    %v1253 = vunpack.c.l.b16 %v150
    %v1254 = vunpack.c.h.b16 %v150
    %v1255 = vunpack.c.l.b16 %v151
    %v1256 = vunpack.c.h.b16 %v151
    %v1257 = vunpack.c.l.b16 %v152
    %v1258 = vunpack.c.h.b16 %v152
    %v1259 = vunpack.c.l.b16 %v153
    %v1260 = vunpack.c.l.b16 %v154
    %v1261 = vunpack.c.h.b16 %v154
    %v1262 = vunpack.c.l.b16 %v155
    %v1263 = vunpack.c.h.b16 %v155
    %v1264 = vunpack.c.l.b16 %v156
    %v1265 = vunpack.c.h.b16 %v156
    %v1266 = vunpack.c.l.b16 %v157
    %v1267 = vunpack.c.l.b16 %v158
    %v1268 = vunpack.c.h.b16 %v158
    %v1269 = vunpack.c.l.b16 %v159
    %v1270 = vunpack.c.h.b16 %v159
    %v1271 = vunpack.c.l.b16 %v160
    %v1272 = vunpack.c.h.b16 %v160
    %v1273 = vunpack.c.l.b16 %v161
    %v1274 = vunpack.c.l.b16 %v162
    %v1275 = vunpack.c.h.b16 %v162
    %v1276 = vunpack.c.l.b16 %v163
    %v1277 = vunpack.c.h.b16 %v163
    %v1278 = vunpack.c.l.b16 %v164
    %v1279 = vunpack.c.h.b16 %v164
    %v1280 = vunpack.c.l.b16 %v165
    %v1281 = vunpack.c.l.b16 %v166
    %v1282 = vunpack.c.h.b16 %v166
    %v1283 = vunpack.c.l.b16 %v167
    %v1284 = vunpack.c.h.b16 %v167
    %v1285 = vunpack.c.l.b16 %v168
    %v1286 = vunpack.c.h.b16 %v168
    %v1287 = vunpack.c.l.b16 %v169
    %v1288 = vunpack.c.l.b16 %v170
    %v1289 = vunpack.c.h.b16 %v170
    %v1290 = vunpack.c.l.b16 %v171
    %v1291 = vunpack.c.h.b16 %v171
    %v1292 = vunpack.c.l.b16 %v172
    %v1293 = vunpack.c.h.b16 %v172
    %v1294 = vunpack.c.l.b16 %v173
    %v1295 = vunpack.c.l.b16 %v174
    %v1296 = vunpack.c.h.b16 %v174
    %v1297 = vunpack.c.l.b16 %v175
    %v1298 = vunpack.c.h.b16 %v175
    %v1299 = vunpack.c.l.b16 %v176
    %v1300 = vunpack.c.h.b16 %v176
    %v1301 = vunpack.c.l.b16 %v177
    %v1302 = vunpack.c.l.b16 %v178
    %v1303 = vunpack.c.h.b16 %v178
    %v1304 = vunpack.c.l.b16 %v179
    %v1305 = vunpack.c.h.b16 %v179
    %v1306 = vunpack.c.l.b16 %v180
    %v1307 = vunpack.c.h.b16 %v180
    %v1308 = vunpack.c.l.b16 %v181
    %v1309 = vunpack.c.l.b16 %v182
    %v1310 = vunpack.c.h.b16 %v182
    %v1311 = vunpack.c.l.b16 %v183
    %v1312 = vunpack.c.h.b16 %v183
    %v1313 = vunpack.c.l.b16 %v184
    %v1314 = vunpack.c.h.b16 %v184
    %v1315 = vunpack.c.l.b16 %v185
    %v1316 = vunpack.c.l.b16 %v186
    %v1317 = vunpack.c.h.b16 %v186
    %v1318 = vunpack.c.l.b16 %v187
    %v1319 = vunpack.c.h.b16 %v187
    %v1320 = vunpack.c.l.b16 %v188
    %v1321 = vunpack.c.h.b16 %v188
    %v1322 = vunpack.c.l.b16 %v189
    %v1323 = vunpack.c.l.b16 %v190
    %v1324 = vunpack.c.h.b16 %v190
    %v1325 = vunpack.c.l.b16 %v191
    %v1326 = vunpack.c.h.b16 %v191
    %v1327 = vunpack.c.l.b16 %v192
    %v1328 = vunpack.c.h.b16 %v192
    %v1329 = vunpack.c.l.b16 %v193
    %v1330 = vunpack.c.l.b16 %v194
    %v1331 = vunpack.c.h.b16 %v194
    %v1332 = vunpack.c.l.b16 %v195
    %v1333 = vunpack.c.h.b16 %v195
    %v1334 = vunpack.c.l.b16 %v196
    %v1335 = vunpack.c.h.b16 %v196
    %v1336 = vunpack.c.l.b16 %v197
    %v1337 = vunpack.c.l.b16 %v198
    %v1338 = vunpack.c.h.b16 %v198
    %v1339 = vunpack.c.l.b16 %v199
    %v1340 = vunpack.c.h.b16 %v199
    %v1341 = vunpack.c.l.b16 %v200
    %v1342 = vunpack.c.h.b16 %v200
    %v1343 = vunpack.c.l.b16 %v201
    %v1344 = vunpack.c.l.b16 %v202
    %v1345 = vunpack.c.h.b16 %v202
    %v1346 = vunpack.c.l.b16 %v203
    %v1347 = vunpack.c.h.b16 %v203
    %v1348 = vunpack.c.l.b16 %v204
    %v1349 = vunpack.c.h.b16 %v204
    %v1350 = vunpack.c.l.b16 %v205
    %v1351 = vunpack.c.l.b16 %v206
    %v1352 = vunpack.c.h.b16 %v206
    %v1353 = vunpack.c.l.b16 %v207
    %v1354 = vunpack.c.h.b16 %v207
    %v1355 = vunpack.c.l.b16 %v208
    %v1356 = vunpack.c.h.b16 %v208
    %v1357 = vunpack.c.l.b16 %v209
    %v1358 = vunpack.c.l.b16 %v210
    %v1359 = vunpack.c.h.b16 %v210
    %v1360 = vunpack.c.l.b16 %v211
    %v1361 = vunpack.c.h.b16 %v211
    %v1362 = vunpack.c.l.b16 %v212
    %v1363 = vunpack.c.h.b16 %v212
    %v1364 = vunpack.c.l.b16 %v213
    %v1365 = vunpack.c.l.b16 %v214
    %v1366 = vunpack.c.h.b16 %v214
    %v1367 = vunpack.c.l.b16 %v215
    %v1368 = vunpack.c.h.b16 %v215
    %v1369 = vunpack.c.l.b16 %v216
    %v1370 = vunpack.c.h.b16 %v216
    %v1371 = vunpack.c.l.b16 %v217
    %v1372 = vunpack.c.l.b16 %v218
    %v1373 = vunpack.c.h.b16 %v218
    %v1374 = vunpack.c.l.b16 %v219
    %v1375 = vunpack.c.h.b16 %v219
    %v1376 = vunpack.c.l.b16 %v220
    %v1377 = vunpack.c.h.b16 %v220
    %v1378 = vunpack.c.l.b16 %v221
    %v1379 = vunpack.c.l.b16 %v222
    %v1380 = vunpack.c.h.b16 %v222
    %v1381 = vunpack.c.l.b16 %v223
    %v1382 = vunpack.c.h.b16 %v223
    %v1383 = vunpack.c.l.b16 %v224
    %v1384 = vunpack.c.h.b16 %v224
    %v1385 = vunpack.c.l.b16 %v225
    %v1386 = vunpack.c.l.b16 %v226
    %v1387 = vunpack.c.h.b16 %v226
    %v1388 = vunpack.c.l.b16 %v227
    %v1389 = vunpack.c.h.b16 %v227
    %v1390 = vunpack.c.l.b16 %v228
    %v1391 = vunpack.c.h.b16 %v228
    %v1392 = vunpack.c.l.b16 %v229
    %v1393 = vunpack.c.l.b16 %v230
    %v1394 = vunpack.c.h.b16 %v230
    %v1395 = vunpack.c.l.b16 %v231
    %v1396 = vunpack.c.h.b16 %v231
    %v1397 = vunpack.c.l.b16 %v232
    %v1398 = vunpack.c.h.b16 %v232
    %v1399 = vunpack.c.l.b16 %v233
    %v1400 = vunpack.c.l.b16 %v234
    %v1401 = vunpack.c.h.b16 %v234
    %v1402 = vunpack.c.l.b16 %v235
    %v1403 = vunpack.c.h.b16 %v235
    %v1404 = vunpack.c.l.b16 %v236
    %v1405 = vunpack.c.h.b16 %v236
    %v1406 = vunpack.c.l.b16 %v237
    %v1407 = vunpack.c.l.b16 %v238
    %v1408 = vunpack.c.h.b16 %v238
    %v1409 = vunpack.c.l.b16 %v239
    %v1410 = vunpack.c.h.b16 %v239
    %v1411 = vunpack.c.l.b16 %v240
    %v1412 = vunpack.c.h.b16 %v240
    %v1413 = vunpack.c.l.b16 %v241
    %v1414 = vunpack.c.l.b16 %v242
    %v1415 = vunpack.c.h.b16 %v242
    %v1416 = vunpack.c.l.b16 %v243
    %v1417 = vunpack.c.h.b16 %v243
    %v1418 = vunpack.c.l.b16 %v244
    %v1419 = vunpack.c.h.b16 %v244
    %v1420 = vunpack.c.l.b16 %v245
    %v1421 = vunpack.c.l.b16 %v246
    %v1422 = vunpack.c.h.b16 %v246
    %v1423 = vunpack.c.l.b16 %v247
    %v1424 = vunpack.c.h.b16 %v247
    %v1425 = vunpack.c.l.b16 %v248
    %v1426 = vunpack.c.h.b16 %v248
    %v1427 = vunpack.c.l.b16 %v249
    %v1428 = vunpack.c.l.b16 %v250
    %v1429 = vunpack.c.h.b16 %v250
    %v1430 = vunpack.c.l.b16 %v251
    %v1431 = vunpack.c.h.b16 %v251
    %v1432 = vunpack.c.l.b16 %v252
    %v1433 = vunpack.c.h.b16 %v252
    %v1434 = vunpack.c.l.b16 %v253
    %v1435 = vunpack.c.l.b16 %v254
    %v1436 = vunpack.c.h.b16 %v254
    %v1437 = vunpack.c.l.b16 %v255
    %v1438 = vunpack.c.h.b16 %v255
    %v1439 = vunpack.c.l.b16 %v256
    %v1440 = vunpack.c.h.b16 %v256
    %v1441 = vunpack.c.l.b16 %v257
    %v1442 = vunpack.c.l.b16 %v258
    %v1443 = vunpack.c.h.b16 %v258
    %v1444 = vunpack.c.l.b16 %v259
    %v1445 = vunpack.c.h.b16 %v259
    %v1446 = vunpack.c.l.b16 %v260
    %v1447 = vunpack.c.h.b16 %v260
    %v1448 = vunpack.c.l.b16 %v261
    %v1449 = vunpack.c.l.b16 %v262
    %v1450 = vunpack.c.h.b16 %v262
    %v1451 = vunpack.c.l.b16 %v263
    %v1452 = vunpack.c.h.b16 %v263
    %v1453 = vunpack.c.l.b16 %v264
    %v1454 = vunpack.c.h.b16 %v264
    %v1455 = vunpack.c.l.b16 %v265
    %v1456 = vunpack.c.l.b16 %v266
    %v1457 = vunpack.c.h.b16 %v266
    %v1458 = vunpack.c.l.b16 %v267
    %v1459 = vunpack.c.h.b16 %v267
    %v1460 = vunpack.c.l.b16 %v268
    %v1461 = vunpack.c.h.b16 %v268
    %v1462 = vunpack.c.l.b16 %v269
    %v1463 = vunpack.c.l.b16 %v270
    %v1464 = vunpack.c.h.b16 %v270
    %v1465 = vunpack.c.l.b16 %v271
    %v1466 = vunpack.c.h.b16 %v271
    %v1467 = vunpack.c.l.b16 %v272
    %v1468 = vunpack.c.h.b16 %v272
    %v1469 = vunpack.c.l.b16 %v273
    %v1470 = vunpack.c.l.b16 %v274
    %v1471 = vunpack.c.h.b16 %v274
    %v1472 = vunpack.c.l.b16 %v275
    %v1473 = vunpack.c.h.b16 %v275
    %v1474 = vunpack.c.l.b16 %v276
    %v1475 = vunpack.c.h.b16 %v276
    %v1476 = vunpack.c.l.b16 %v277
    %v1477 = vunpack.c.l.b16 %v278
    %v1478 = vunpack.c.h.b16 %v278
    %v1479 = vunpack.c.l.b16 %v279
    %v1480 = vunpack.c.h.b16 %v279
    %v1481 = vunpack.c.l.b16 %v280
    %v1482 = vunpack.c.h.b16 %v280
    %v1483 = vunpack.c.l.b16 %v281
    %v1484 = vunpack.c.l.b16 %v282
    %v1485 = vunpack.c.h.b16 %v282
    %v1486 = vunpack.c.l.b16 %v283
    %v1487 = vunpack.c.h.b16 %v283
    %v1488 = vunpack.c.l.b16 %v284
    %v1489 = vunpack.c.h.b16 %v284
    %v1490 = vunpack.c.l.b16 %v285
    %v1491 = vunpack.c.l.b16 %v286
    %v1492 = vunpack.c.h.b16 %v286
    %v1493 = vunpack.c.l.b16 %v287
    %v1494 = vunpack.c.h.b16 %v287
    %v1495 = vunpack.c.l.b16 %v288
    %v1496 = vunpack.c.h.b16 %v288
    %v1497 = vunpack.c.l.b16 %v289
    %v1498 = vunpack.c.l.b16 %v290
    %v1499 = vunpack.c.h.b16 %v290
    %v1500 = vunpack.c.l.b16 %v291
    %v1501 = vunpack.c.h.b16 %v291
    %v1502 = vunpack.c.l.b16 %v292
    %v1503 = vunpack.c.h.b16 %v292
    %v1504 = vunpack.c.l.b16 %v293
    %v1505 = vunpack.c.l.b16 %v294
    %v1506 = vunpack.c.h.b16 %v294
    %v1507 = vunpack.c.l.b16 %v295
    %v1508 = vunpack.c.h.b16 %v295
    %v1509 = vunpack.c.l.b16 %v296
    %v1510 = vunpack.c.h.b16 %v296
    %v1511 = vunpack.c.l.b16 %v297
    %v1512 = vunpack.c.l.b16 %v298
    %v1513 = vunpack.c.h.b16 %v298
    %v1514 = vunpack.c.l.b16 %v299
    %v1515 = vunpack.c.h.b16 %v299
    %v1516 = vunpack.c.l.b16 %v300
    %v1517 = vunpack.c.h.b16 %v300
    %v1518 = vunpack.c.l.b16 %v301
    %v1519 = vunpack.c.l.b16 %v302
    %v1520 = vunpack.c.h.b16 %v302
    %v1521 = vunpack.c.l.b16 %v303
    %v1522 = vunpack.c.h.b16 %v303
    %v1523 = vunpack.c.l.b16 %v304
    %v1524 = vunpack.c.h.b16 %v304
    %v1525 = vunpack.c.l.b16 %v305
    %v1526 = vunpack.c.l.b16 %v306
    %v1527 = vunpack.c.h.b16 %v306
    %v1528 = vunpack.c.l.b16 %v307
    %v1529 = vunpack.c.h.b16 %v307
    %v1530 = vunpack.c.l.b16 %v308
    %v1531 = vunpack.c.h.b16 %v308
    %v1532 = vunpack.c.l.b16 %v309
    %v1533 = vunpack.c.l.b16 %v310
    %v1534 = vunpack.c.h.b16 %v310
    %v1535 = vunpack.c.l.b16 %v311
    %v1536 = vunpack.c.h.b16 %v311
    %v1537 = vunpack.c.l.b16 %v312
    %v1538 = vunpack.c.h.b16 %v312
    %v1539 = vunpack.c.l.b16 %v313
    %v1540 = vunpack.c.l.b16 %v314
    %v1541 = vunpack.c.h.b16 %v314
    %v1542 = vunpack.c.l.b16 %v315
    %v1543 = vunpack.c.h.b16 %v315
    %v1544 = vunpack.c.l.b16 %v316
    %v1545 = vunpack.c.h.b16 %v316
    %v1546 = vunpack.c.l.b16 %v317
    %v1547 = vunpack.c.l.b16 %v318
    %v1548 = vunpack.c.h.b16 %v318
    %v1549 = vunpack.c.l.b16 %v319
    %v1550 = vunpack.c.h.b16 %v319
    %v1551 = vunpack.c.l.b16 %v320
    %v1552 = vunpack.c.h.b16 %v320
    %v1553 = vunpack.c.l.b16 %v321
    %v1554 = vunpack.c.l.b16 %v322
    %v1555 = vunpack.c.h.b16 %v322
    %v1556 = vunpack.c.l.b16 %v323
    %v1557 = vunpack.c.h.b16 %v323
    %v1558 = vunpack.c.l.b16 %v324
    %v1559 = vunpack.c.h.b16 %v324
    %v1560 = vunpack.c.l.b16 %v325
    %v1561 = vunpack.c.l.b16 %v326
    %v1562 = vunpack.c.h.b16 %v326
    %v1563 = vunpack.c.l.b16 %v327
    %v1564 = vunpack.c.h.b16 %v327
    %v1565 = vunpack.c.l.b16 %v328
    %v1566 = vunpack.c.h.b16 %v328
    %v1567 = vunpack.c.l.b16 %v329
    %v1568 = vunpack.c.l.b16 %v330
    %v1569 = vunpack.c.h.b16 %v330
    %v1570 = vunpack.c.l.b16 %v331
    %v1571 = vunpack.c.h.b16 %v331
    %v1572 = vunpack.c.l.b16 %v332
    %v1573 = vunpack.c.h.b16 %v332
    %v1574 = vunpack.c.l.b16 %v333
    %v1575 = vunpack.c.l.b16 %v334
    %v1576 = vunpack.c.h.b16 %v334
    %v1577 = vunpack.c.l.b16 %v335
    %v1578 = vunpack.c.h.b16 %v335
    %v1579 = vunpack.c.l.b16 %v336
    %v1580 = vunpack.c.h.b16 %v336
    %v1581 = vunpack.c.l.b16 %v337
    %v1582 = vunpack.c.l.b16 %v338
    %v1583 = vunpack.c.h.b16 %v338
    %v1584 = vunpack.c.l.b16 %v339
    %v1585 = vunpack.c.h.b16 %v339
    %v1586 = vunpack.c.l.b16 %v340
    %v1587 = vunpack.c.h.b16 %v340
    %v1588 = vunpack.c.l.b16 %v341
    %v1589 = vunpack.c.l.b16 %v342
    %v1590 = vunpack.c.h.b16 %v342
    %v1591 = vunpack.c.l.b16 %v343
    %v1592 = vunpack.c.h.b16 %v343
    %v1593 = vunpack.c.l.b16 %v344
    %v1594 = vunpack.c.h.b16 %v344
    %v1595 = vunpack.c.l.b16 %v345
    %v1596 = vunpack.c.l.b16 %v346
    %v1597 = vunpack.c.h.b16 %v346
    %v1598 = vunpack.c.l.b16 %v347
    %v1599 = vunpack.c.h.b16 %v347
    %v1600 = vunpack.c.l.b16 %v348
    %v1601 = vunpack.c.h.b16 %v348
    %v1602 = vunpack.c.l.b16 %v349
    %v1603 = vunpack.c.l.b16 %v350
    %v1604 = vunpack.c.h.b16 %v350
    %v1605 = vunpack.c.l.b16 %v351
    %v1606 = vunpack.c.h.b16 %v351
    %v1607 = vunpack.c.l.b16 %v352
    %v1608 = vunpack.c.h.b16 %v352
    %v1609 = vunpack.c.l.b16 %v353
    %v1610 = vunpack.c.l.b16 %v354
    %v1611 = vunpack.c.h.b16 %v354
    %v1612 = vunpack.c.l.b16 %v355
    %v1613 = vunpack.c.h.b16 %v355
    %v1614 = vunpack.c.l.b16 %v356
    %v1615 = vunpack.c.h.b16 %v356
    %v1616 = vunpack.c.l.b16 %v357
    %v1617 = vunpack.c.l.b16 %v358
    %v1618 = vunpack.c.h.b16 %v358
    %v1619 = vunpack.c.l.b16 %v359
    %v1620 = vunpack.c.h.b16 %v359
    %v1621 = vunpack.c.l.b16 %v360
    %v1622 = vunpack.c.h.b16 %v360
    %v1623 = vunpack.c.l.b16 %v361
    %v1624 = vunpack.c.l.b16 %v362
    %v1625 = vunpack.c.h.b16 %v362
    %v1626 = vunpack.c.l.b16 %v363
    %v1627 = vunpack.c.h.b16 %v363
    %v1628 = vunpack.c.l.b16 %v364
    %v1629 = vunpack.c.h.b16 %v364
    %v1630 = vunpack.c.l.b16 %v365
    %v1631 = vunpack.c.l.b16 %v366
    %v1632 = vunpack.c.h.b16 %v366
    %v1633 = vunpack.c.l.b16 %v367
    %v1634 = vunpack.c.h.b16 %v367
    %v1635 = vunpack.c.l.b16 %v368
    %v1636 = vunpack.c.h.b16 %v368
    %v1637 = vunpack.c.l.b16 %v369
    %v1638 = vunpack.c.l.b16 %v370
    %v1639 = vunpack.c.h.b16 %v370
    %v1640 = vunpack.c.l.b16 %v371
    %v1641 = vunpack.c.h.b16 %v371
    %v1642 = vunpack.c.l.b16 %v372
    %v1643 = vunpack.c.h.b16 %v372
    %v1644 = vunpack.c.l.b16 %v373
    %v1645 = vunpack.c.l.b16 %v374
    %v1646 = vunpack.c.h.b16 %v374
    %v1647 = vunpack.c.l.b16 %v375
    %v1648 = vunpack.c.h.b16 %v375
    %v1649 = vunpack.c.l.b16 %v376
    %v1650 = vunpack.c.h.b16 %v376
    %v1651 = vunpack.c.l.b16 %v377
    %v1652 = vunpack.c.l.b16 %v378
    %v1653 = vunpack.c.h.b16 %v378
    %v1654 = vunpack.c.l.b16 %v379
    %v1655 = vunpack.c.h.b16 %v379
    %v1656 = vunpack.c.l.b16 %v380
    %v1657 = vunpack.c.h.b16 %v380
    %v1658 = vunpack.c.l.b16 %v381
    %v1659 = vunpack.c.l.b16 %v382
    %v1660 = vunpack.c.h.b16 %v382
    %v1661 = vunpack.c.l.b16 %v383
    %v1662 = vunpack.c.h.b16 %v383
    %v1663 = vunpack.c.l.b16 %v384
    %v1664 = vunpack.c.h.b16 %v384
    %v1665 = vunpack.c.l.b16 %v385
    %v1666 = vunpack.c.l.b16 %v386
    %v1667 = vunpack.c.h.b16 %v386
    %v1668 = vunpack.c.l.b16 %v387
    %v1669 = vunpack.c.h.b16 %v387
    %v1670 = vunpack.c.l.b16 %v388
    %v1671 = vunpack.c.h.b16 %v388
    %v1672 = vunpack.c.l.b16 %v389
    %v1673 = vunpack.c.l.b16 %v390
    %v1674 = vunpack.c.h.b16 %v390
    %v1675 = vunpack.c.l.b16 %v391
    %v1676 = vunpack.c.h.b16 %v391
    %v1677 = vunpack.c.l.b16 %v392
    %v1678 = vunpack.c.h.b16 %v392
    %v1679 = vunpack.c.l.b16 %v393
    %v1680 = vunpack.c.l.b16 %v394
    %v1681 = vunpack.c.h.b16 %v394
    %v1682 = vunpack.c.l.b16 %v395
    %v1683 = vunpack.c.h.b16 %v395
    %v1684 = vunpack.c.l.b16 %v396
    %v1685 = vunpack.c.h.b16 %v396
    %v1686 = vunpack.c.l.b16 %v397
    %v1687 = vunpack.c.l.b16 %v398
    %v1688 = vunpack.c.h.b16 %v398
    %v1689 = vunpack.c.l.b16 %v399
    %v1690 = vunpack.c.h.b16 %v399
    %v1691 = vunpack.c.l.b16 %v400
    %v1692 = vunpack.c.h.b16 %v400
    %v1693 = vunpack.c.l.b16 %v401
    %v1694 = vunpack.c.l.b16 %v402
    %v1695 = vunpack.c.h.b16 %v402
    %v1696 = vunpack.c.l.b16 %v403
    %v1697 = vunpack.c.h.b16 %v403
    %v1698 = vunpack.c.l.b16 %v404
    %v1699 = vunpack.c.h.b16 %v404
    %v1700 = vunpack.c.l.b16 %v405
    %v1701 = vunpack.c.l.b16 %v406
    %v1702 = vunpack.c.h.b16 %v406
    %v1703 = vunpack.c.l.b16 %v407
    %v1704 = vunpack.c.h.b16 %v407
    %v1705 = vunpack.c.l.b16 %v408
    %v1706 = vunpack.c.h.b16 %v408
    %v1707 = vunpack.c.l.b16 %v409
    %v1708 = vunpack.c.l.b16 %v410
    %v1709 = vunpack.c.h.b16 %v410
    %v1710 = vunpack.c.l.b16 %v411
    %v1711 = vunpack.c.h.b16 %v411
    %v1712 = vunpack.c.l.b16 %v412
    %v1713 = vunpack.c.h.b16 %v412
    %v1714 = vunpack.c.l.b16 %v413
    %v1715 = vunpack.c.l.b16 %v414
    %v1716 = vunpack.c.h.b16 %v414
    %v1717 = vunpack.c.l.b16 %v415
    %v1718 = vunpack.c.h.b16 %v415
    %v1719 = vunpack.c.l.b16 %v416
    %v1720 = vunpack.c.h.b16 %v416
    %v1721 = vunpack.c.l.b16 %v417
    %v1722 = vunpack.c.l.b16 %v418
    %v1723 = vunpack.c.h.b16 %v418
    %v1724 = vunpack.c.l.b16 %v419
    %v1725 = vunpack.c.h.b16 %v419
    %v1726 = vunpack.c.l.b16 %v420
    %v1727 = vunpack.c.h.b16 %v420
    %v1728 = vunpack.c.l.b16 %v421
    %v1729 = vunpack.c.l.b16 %v422
    %v1730 = vunpack.c.h.b16 %v422
    %v1731 = vunpack.c.l.b16 %v423
    %v1732 = vunpack.c.h.b16 %v423
    %v1733 = vunpack.c.l.b16 %v424
    %v1734 = vunpack.c.h.b16 %v424
    %v1735 = vunpack.c.l.b16 %v425
    %v1736 = vunpack.c.l.b16 %v426
    %v1737 = vunpack.c.h.b16 %v426
    %v1738 = vunpack.c.l.b16 %v427
    %v1739 = vunpack.c.h.b16 %v427
    %v1740 = vunpack.c.l.b16 %v428
    %v1741 = vunpack.c.h.b16 %v428
    %v1742 = vunpack.c.l.b16 %v429
    %v1743 = vunpack.c.l.b16 %v430
    %v1744 = vunpack.c.h.b16 %v430
    %v1745 = vunpack.c.l.b16 %v431
    %v1746 = vunpack.c.h.b16 %v431
    %v1747 = vunpack.c.l.b16 %v432
    %v1748 = vunpack.c.h.b16 %v432
    %v1749 = vunpack.c.l.b16 %v433
    %v1750 = vunpack.c.l.b16 %v434
    %v1751 = vunpack.c.h.b16 %v434
    %v1752 = vunpack.c.l.b16 %v435
    %v1753 = vunpack.c.h.b16 %v435
    %v1754 = vunpack.c.l.b16 %v436
    %v1755 = vunpack.c.h.b16 %v436
    %v1756 = vunpack.c.l.b16 %v437
    %v1757 = vunpack.c.l.b16 %v438
    %v1758 = vunpack.c.h.b16 %v438
    %v1759 = vunpack.c.l.b16 %v439
    %v1760 = vunpack.c.h.b16 %v439
    %v1761 = vunpack.c.l.b16 %v440
    %v1762 = vunpack.c.h.b16 %v440
    %v1763 = vunpack.c.l.b16 %v441
    %v1764 = vunpack.c.l.b16 %v442
    %v1765 = vunpack.c.h.b16 %v442
    %v1766 = vunpack.c.l.b16 %v443
    %v1767 = vunpack.c.h.b16 %v443
    %v1768 = vunpack.c.l.b16 %v444
    %v1769 = vunpack.c.h.b16 %v444
    %v1770 = vunpack.c.l.b16 %v445
    %v1771 = vunpack.c.l.b16 %v446
    %v1772 = vunpack.c.h.b16 %v446
    %v1773 = vunpack.c.l.b16 %v447
    %v1774 = vunpack.c.h.b16 %v447
    %v1775 = vunpack.c.l.b16 %v448
    %v1776 = vunpack.c.h.b16 %v448
    %v1777 = vunpack.c.l.b16 %v449
    %v1778 = vunpack.c.l.b16 %v450
    %v1779 = vunpack.c.h.b16 %v450
    %v1780 = vunpack.c.l.b16 %v451
    %v1781 = vunpack.c.h.b16 %v451
    %v1782 = vunpack.c.l.b16 %v452
    %v1783 = vunpack.c.h.b16 %v452
    %v1784 = vunpack.c.l.b16 %v453
    %v1785 = vunpack.c.l.b16 %v454
    %v1786 = vunpack.c.h.b16 %v454
    %v1787 = vunpack.c.l.b16 %v455
    %v1788 = vunpack.c.h.b16 %v455
    %v1789 = vunpack.c.l.b16 %v456
    %v1790 = vunpack.c.h.b16 %v456
    %v1791 = vunpack.c.l.b16 %v457
    %v1792 = vunpack.c.l.b16 %v458
    %v1793 = vunpack.c.h.b16 %v458
    %v1794 = vunpack.c.l.b16 %v459
    %v1795 = vunpack.c.h.b16 %v459
    %v1796 = vunpack.c.l.b16 %v460
    %v1797 = vunpack.c.h.b16 %v460
    %v1798 = vunpack.c.l.b16 %v461
    %v1799 = vunpack.c.l.b16 %v462
    %v1800 = vunpack.c.h.b16 %v462
    %v1801 = vunpack.c.l.b16 %v463
    %v1802 = vunpack.c.h.b16 %v463
    %v1803 = vunpack.c.l.b16 %v464
    %v1804 = vunpack.c.h.b16 %v464
    %v1805 = vunpack.c.l.b16 %v465
    %v1806 = vunpack.c.l.b16 %v466
    %v1807 = vunpack.c.h.b16 %v466
    %v1808 = vunpack.c.l.b16 %v467
    %v1809 = vunpack.c.h.b16 %v467
    %v1810 = vunpack.c.l.b16 %v468
    %v1811 = vunpack.c.h.b16 %v468
    %v1812 = vunpack.c.l.b16 %v469
    %v1813 = vunpack.c.l.b16 %v470
    %v1814 = vunpack.c.h.b16 %v470
    %v1815 = vunpack.c.l.b16 %v471
    %v1816 = vunpack.c.h.b16 %v471
    %v1817 = vunpack.c.l.b16 %v472
    %v1818 = vunpack.c.h.b16 %v472
    %v1819 = vunpack.c.l.b16 %v473
    %v1820 = vunpack.c.l.b16 %v474
    %v1821 = vunpack.c.h.b16 %v474
    %v1822 = vunpack.c.l.b16 %v475
    %v1823 = vunpack.c.h.b16 %v475
    %v1824 = vunpack.c.l.b16 %v476
    %v1825 = vunpack.c.h.b16 %v476
    %v1826 = vunpack.c.l.b16 %v477
    %v1827 = vunpack.c.l.b16 %v478
    %v1828 = vunpack.c.h.b16 %v478
    %v1829 = vunpack.c.l.b16 %v479
    %v1830 = vunpack.c.h.b16 %v479
    %v1831 = vunpack.c.l.b16 %v480
    %v1832 = vunpack.c.h.b16 %v480
    %v1833 = vunpack.c.l.b16 %v481
    %v1834 = vunpack.c.l.b16 %v482
    %v1835 = vunpack.c.h.b16 %v482
    %v1836 = vunpack.c.l.b16 %v483
    %v1837 = vunpack.c.h.b16 %v483
    %v1838 = vunpack.c.l.b16 %v484
    %v1839 = vunpack.c.h.b16 %v484
    %v1840 = vunpack.c.l.b16 %v485
    %v1841 = vunpack.c.l.b16 %v486
    %v1842 = vunpack.c.h.b16 %v486
    %v1843 = vunpack.c.l.b16 %v487
    %v1844 = vunpack.c.h.b16 %v487
    %v1845 = vunpack.c.l.b16 %v488
    %v1846 = vunpack.c.h.b16 %v488
    %v1847 = vunpack.c.l.b16 %v489
    %v1848 = vunpack.c.l.b16 %v490
    %v1849 = vunpack.c.h.b16 %v490
    %v1850 = vunpack.c.l.b16 %v491
    %v1851 = vunpack.c.h.b16 %v491
    %v1852 = vunpack.c.l.b16 %v492
    %v1853 = vunpack.c.h.b16 %v492
    %v1854 = vunpack.c.l.b16 %v493
    %v1855 = vunpack.c.l.b16 %v494
    %v1856 = vunpack.c.h.b16 %v494
    %v1857 = vunpack.c.l.b16 %v495
    %v1858 = vunpack.c.h.b16 %v495
    %v1859 = vunpack.c.l.b16 %v496
    %v1860 = vunpack.c.h.b16 %v496
    %v1861 = vunpack.c.l.b16 %v497
    %v1862 = vunpack.c.l.b16 %v498
    %v1863 = vunpack.c.h.b16 %v498
    %v1864 = vunpack.c.l.b16 %v499
    %v1865 = vunpack.c.h.b16 %v499
    %v1866 = vunpack.c.l.b16 %v500
    %v1867 = vunpack.c.h.b16 %v500
    %v1868 = vunpack.c.l.b16 %v501
    %v1869 = vunpack.c.l.b16 %v502
    %v1870 = vunpack.c.h.b16 %v502
    %v1871 = vunpack.c.l.b16 %v503
    %v1872 = vunpack.c.h.b16 %v503
    %v1873 = vunpack.c.l.b16 %v504
    %v1874 = vunpack.c.h.b16 %v504
    %v1875 = vunpack.c.l.b16 %v505
    %v1876 = vunpack.c.l.b16 %v506
    %v1877 = vunpack.c.h.b16 %v506
    %v1878 = vunpack.c.l.b16 %v507
    %v1879 = vunpack.c.h.b16 %v507
    %v1880 = vunpack.c.l.b16 %v508
    %v1881 = vunpack.c.h.b16 %v508
    %v1882 = vunpack.c.l.b16 %v509
    %v1883 = vunpack.c.l.b16 %v510
    %v1884 = vunpack.c.h.b16 %v510
    %v1885 = vunpack.c.l.b16 %v511
    %v1886 = vunpack.c.h.b16 %v511
    %v1887 = vunpack.c.l.b16 %v512
    %v1888 = vunpack.c.h.b16 %v512
    %v1889 = vunpack.c.l.b16 %v513
    %v1890 = vunpack.c.l.b16 %v514
    %v1891 = vunpack.c.h.b16 %v514
    %v1892 = vunpack.c.l.b16 %v515
    %v1893 = vunpack.c.h.b16 %v515
    %v1894 = vunpack.c.l.b16 %v516
    %v1895 = vunpack.c.h.b16 %v516
    %v1896 = vunpack.c.l.b16 %v517
    %v1897 = vunpack.c.l.b16 %v518
    %v1898 = vunpack.c.h.b16 %v518
    %v1899 = vunpack.c.l.b16 %v519
    %v1900 = vunpack.c.h.b16 %v519
    %v1901 = vunpack.c.l.b16 %v520
    %v1902 = vunpack.c.h.b16 %v520
    %v1903 = vunpack.c.l.b16 %v521
    %v1904 = vunpack.c.l.b16 %v522
    %v1905 = vunpack.c.h.b16 %v522
    %v1906 = vunpack.c.l.b16 %v523
    %v1907 = vunpack.c.h.b16 %v523
    %v1908 = vunpack.c.l.b16 %v524
    %v1909 = vunpack.c.h.b16 %v524
    %v1910 = vunpack.c.l.b16 %v525
    %v1911 = vunpack.c.l.b16 %v526
    %v1912 = vunpack.c.h.b16 %v526
    %v1913 = vunpack.c.l.b16 %v527
    %v1914 = vunpack.c.h.b16 %v527
    %v1915 = vunpack.c.l.b16 %v528
    %v1916 = vunpack.c.h.b16 %v528
    %v1917 = vunpack.c.l.b16 %v529
    %v1918 = vunpack.c.l.b16 %v530
    %v1919 = vunpack.c.h.b16 %v530
    %v1920 = vunpack.c.l.b16 %v531
    %v1921 = vunpack.c.h.b16 %v531
    %v1922 = vunpack.c.l.b16 %v532
    %v1923 = vunpack.c.h.b16 %v532
    %v1924 = vunpack.c.l.b16 %v533
    %v1925 = vunpack.c.l.b16 %v534
    %v1926 = vunpack.c.h.b16 %v534
    %v1927 = vunpack.c.l.b16 %v535
    %v1928 = vunpack.c.h.b16 %v535
    %v1929 = vunpack.c.l.b16 %v536
    %v1930 = vunpack.c.h.b16 %v536
    %v1931 = vunpack.c.l.b16 %v537
    %v1932 = vunpack.c.l.b16 %v538
    %v1933 = vunpack.c.h.b16 %v538
    %v1934 = vunpack.c.l.b16 %v539
    %v1935 = vunpack.c.h.b16 %v539
    %v1936 = vunpack.c.l.b16 %v540
    %v1937 = vunpack.c.h.b16 %v540
    %v1938 = vunpack.c.l.b16 %v541
    %v1939 = vunpack.c.l.b16 %v542
    %v1940 = vunpack.c.h.b16 %v542
    %v1941 = vunpack.c.l.b16 %v543
    %v1942 = vunpack.c.h.b16 %v543
    %v1943 = vunpack.c.l.b16 %v544
    %v1944 = vunpack.c.h.b16 %v544
    %v1945 = vunpack.c.l.b16 %v545
    %v1946 = vunpack.c.l.b16 %v546
    %v1947 = vunpack.c.h.b16 %v546
    %v1948 = vunpack.c.l.b16 %v547
    %v1949 = vunpack.c.h.b16 %v547
    %v1950 = vunpack.c.l.b16 %v548
    %v1951 = vunpack.c.h.b16 %v548
    %v1952 = vunpack.c.l.b16 %v549
    %v1953 = vunpack.c.l.b16 %v550
    %v1954 = vunpack.c.h.b16 %v550
    %v1955 = vunpack.c.l.b16 %v551
    %v1956 = vunpack.c.h.b16 %v551
    %v1957 = vunpack.c.l.b16 %v552
    %v1958 = vunpack.c.h.b16 %v552
    %v1959 = vunpack.c.l.b16 %v553
    %v1960 = vunpack.c.l.b16 %v554
    %v1961 = vunpack.c.h.b16 %v554
    %v1962 = vunpack.c.l.b16 %v555
    %v1963 = vunpack.c.h.b16 %v555
    %v1964 = vunpack.c.l.b16 %v556
    %v1965 = vunpack.c.h.b16 %v556
    %v1966 = vunpack.c.l.b16 %v557
    %v1967 = vunpack.c.l.b16 %v558
    %v1968 = vunpack.c.h.b16 %v558
    %v1969 = vunpack.c.l.b16 %v559
    %v1970 = vunpack.c.h.b16 %v559
    %v1971 = vunpack.c.l.b16 %v560
    %v1972 = vunpack.c.h.b16 %v560
    %v1973 = vunpack.c.l.b16 %v561
    %v1974 = vunpack.c.l.b16 %v562
    %v1975 = vunpack.c.h.b16 %v562
    %v1976 = vunpack.c.l.b16 %v563
    %v1977 = vunpack.c.h.b16 %v563
    %v1978 = vunpack.c.l.b16 %v564
    %v1979 = vunpack.c.h.b16 %v564
    %v1980 = vunpack.c.l.b16 %v565
    %v1981 = vunpack.c.l.b16 %v566
    %v1982 = vunpack.c.h.b16 %v566
    %v1983 = vunpack.c.l.b16 %v567
    %v1984 = vunpack.c.h.b16 %v567
    %v1985 = vunpack.c.l.b16 %v568
    %v1986 = vunpack.c.h.b16 %v568
    %v1987 = vunpack.c.l.b16 %v569
    %v1988 = vunpack.c.l.b16 %v570
    %v1989 = vunpack.c.h.b16 %v570
    %v1990 = vunpack.c.l.b16 %v571
    %v1991 = vunpack.c.h.b16 %v571
    %v1992 = vunpack.c.l.b16 %v572
    %v1993 = vunpack.c.h.b16 %v572
    %v1994 = vunpack.c.l.b16 %v573
    %v1995 = vunpack.c.l.b16 %v574
    %v1996 = vunpack.c.h.b16 %v574
    %v1997 = vunpack.c.l.b16 %v575
    %v1998 = vunpack.c.h.b16 %v575
    %v1999 = vunpack.c.l.b16 %v576
    %v2000 = vunpack.c.h.b16 %v576
    %v2001 = vunpack.c.l.b16 %v577
    %v2002 = vunpack.c.l.b16 %v578
    %v2003 = vunpack.c.h.b16 %v578
    %v2004 = vunpack.c.l.b16 %v579
    %v2005 = vunpack.c.h.b16 %v579
    %v2006 = vunpack.c.l.b16 %v580
    %v2007 = vunpack.c.h.b16 %v580
    %v2008 = vunpack.c.l.b16 %v581
    %v2009 = vunpack.c.l.b16 %v582
    %v2010 = vunpack.c.h.b16 %v582
    %v2011 = vunpack.c.l.b16 %v583
    %v2012 = vunpack.c.h.b16 %v583
    %v2013 = vunpack.c.l.b16 %v584
    %v2014 = vunpack.c.h.b16 %v584
    %v2015 = vunpack.c.l.b16 %v585
    %v2016 = vunpack.c.l.b16 %v586
    %v2017 = vunpack.c.h.b16 %v586
    %v2018 = vunpack.c.l.b16 %v587
    %v2019 = vunpack.c.h.b16 %v587
    %v2020 = vunpack.c.l.b16 %v588
    %v2021 = vunpack.c.h.b16 %v588
    %v2022 = vunpack.c.l.b16 %v589
    %v2023 = vpack.c.b16 %v1134, %v1127
    %v2024 = vpack.c.b16 %v1135, %v1128
    %v2025 = vpack.c.b16 %v1136, %v1129
    %v2026 = vpack.c.b16 %v1137, %v1130
    %v2027 = vpack.c.b16 %v1138, %v1131
    %v2028 = vpack.c.b16 %v1139, %v1132
    %v2029 = vpack.c.b16 %v1140, %v1133
    %v2030 = vpack.c.b16 %v1148, %v1141
    %v2031 = vpack.c.b16 %v1149, %v1142
    %v2032 = vpack.c.b16 %v1150, %v1143
    %v2033 = vpack.c.b16 %v1151, %v1144
    %v2034 = vpack.c.b16 %v1152, %v1145
    %v2035 = vpack.c.b16 %v1153, %v1146
    %v2036 = vpack.c.b16 %v1154, %v1147
    %v2037 = vpack.c.b16 %v1162, %v1155
    %v2038 = vpack.c.b16 %v1163, %v1156
    %v2039 = vpack.c.b16 %v1164, %v1157
    %v2040 = vpack.c.b16 %v1165, %v1158
    %v2041 = vpack.c.b16 %v1166, %v1159
    %v2042 = vpack.c.b16 %v1167, %v1160
    %v2043 = vpack.c.b16 %v1168, %v1161
    %v2044 = vpack.c.b16 %v1176, %v1169
    %v2045 = vpack.c.b16 %v1177, %v1170
    %v2046 = vpack.c.b16 %v1178, %v1171
    %v2047 = vpack.c.b16 %v1179, %v1172
    %v2048 = vpack.c.b16 %v1180, %v1173
    %v2049 = vpack.c.b16 %v1181, %v1174
    %v2050 = vpack.c.b16 %v1182, %v1175
    %v2051 = vpack.c.b16 %v1190, %v1183
    %v2052 = vpack.c.b16 %v1191, %v1184
    %v2053 = vpack.c.b16 %v1192, %v1185
    %v2054 = vpack.c.b16 %v1193, %v1186
    %v2055 = vpack.c.b16 %v1194, %v1187
    %v2056 = vpack.c.b16 %v1195, %v1188
    %v2057 = vpack.c.b16 %v1196, %v1189
    %v2058 = vpack.c.b16 %v1204, %v1197
    %v2059 = vpack.c.b16 %v1205, %v1198
    %v2060 = vpack.c.b16 %v1206, %v1199
    %v2061 = vpack.c.b16 %v1207, %v1200
    %v2062 = vpack.c.b16 %v1208, %v1201
    %v2063 = vpack.c.b16 %v1209, %v1202
    %v2064 = vpack.c.b16 %v1210, %v1203
    %v2065 = vpack.c.b16 %v1218, %v1211
    %v2066 = vpack.c.b16 %v1219, %v1212
    %v2067 = vpack.c.b16 %v1220, %v1213
    %v2068 = vpack.c.b16 %v1221, %v1214
    %v2069 = vpack.c.b16 %v1222, %v1215
    %v2070 = vpack.c.b16 %v1223, %v1216
    %v2071 = vpack.c.b16 %v1224, %v1217
    %v2072 = vpack.c.b16 %v1232, %v1225
    %v2073 = vpack.c.b16 %v1233, %v1226
    %v2074 = vpack.c.b16 %v1234, %v1227
    %v2075 = vpack.c.b16 %v1235, %v1228
    %v2076 = vpack.c.b16 %v1236, %v1229
    %v2077 = vpack.c.b16 %v1237, %v1230
    %v2078 = vpack.c.b16 %v1238, %v1231
    %v2079 = vpack.c.b16 %v1246, %v1239
    %v2080 = vpack.c.b16 %v1247, %v1240
    %v2081 = vpack.c.b16 %v1248, %v1241
    %v2082 = vpack.c.b16 %v1249, %v1242
    %v2083 = vpack.c.b16 %v1250, %v1243
    %v2084 = vpack.c.b16 %v1251, %v1244
    %v2085 = vpack.c.b16 %v1252, %v1245
    %v2086 = vpack.c.b16 %v1260, %v1253
    %v2087 = vpack.c.b16 %v1261, %v1254
    %v2088 = vpack.c.b16 %v1262, %v1255
    %v2089 = vpack.c.b16 %v1263, %v1256
    %v2090 = vpack.c.b16 %v1264, %v1257
    %v2091 = vpack.c.b16 %v1265, %v1258
    %v2092 = vpack.c.b16 %v1266, %v1259
    %v2093 = vpack.c.b16 %v1274, %v1267
    %v2094 = vpack.c.b16 %v1275, %v1268
    %v2095 = vpack.c.b16 %v1276, %v1269
    %v2096 = vpack.c.b16 %v1277, %v1270
    %v2097 = vpack.c.b16 %v1278, %v1271
    %v2098 = vpack.c.b16 %v1279, %v1272
    %v2099 = vpack.c.b16 %v1280, %v1273
    %v2100 = vpack.c.b16 %v1288, %v1281
    %v2101 = vpack.c.b16 %v1289, %v1282
    %v2102 = vpack.c.b16 %v1290, %v1283
    %v2103 = vpack.c.b16 %v1291, %v1284
    %v2104 = vpack.c.b16 %v1292, %v1285
    %v2105 = vpack.c.b16 %v1293, %v1286
    %v2106 = vpack.c.b16 %v1294, %v1287
    %v2107 = vpack.c.b16 %v1302, %v1295
    %v2108 = vpack.c.b16 %v1303, %v1296
    %v2109 = vpack.c.b16 %v1304, %v1297
    %v2110 = vpack.c.b16 %v1305, %v1298
    %v2111 = vpack.c.b16 %v1306, %v1299
    %v2112 = vpack.c.b16 %v1307, %v1300
    %v2113 = vpack.c.b16 %v1308, %v1301
    %v2114 = vpack.c.b16 %v1316, %v1309
    %v2115 = vpack.c.b16 %v1317, %v1310
    %v2116 = vpack.c.b16 %v1318, %v1311
    %v2117 = vpack.c.b16 %v1319, %v1312
    %v2118 = vpack.c.b16 %v1320, %v1313
    %v2119 = vpack.c.b16 %v1321, %v1314
    %v2120 = vpack.c.b16 %v1322, %v1315
    %v2121 = vpack.c.b16 %v1330, %v1323
    %v2122 = vpack.c.b16 %v1331, %v1324
    %v2123 = vpack.c.b16 %v1332, %v1325
    %v2124 = vpack.c.b16 %v1333, %v1326
    %v2125 = vpack.c.b16 %v1334, %v1327
    %v2126 = vpack.c.b16 %v1335, %v1328
    %v2127 = vpack.c.b16 %v1336, %v1329
    %v2128 = vpack.c.b16 %v1344, %v1337
    %v2129 = vpack.c.b16 %v1345, %v1338
    %v2130 = vpack.c.b16 %v1346, %v1339
    %v2131 = vpack.c.b16 %v1347, %v1340
    %v2132 = vpack.c.b16 %v1348, %v1341
    %v2133 = vpack.c.b16 %v1349, %v1342
    %v2134 = vpack.c.b16 %v1350, %v1343
    %v2135 = vpack.c.b16 %v1358, %v1351
    %v2136 = vpack.c.b16 %v1359, %v1352
    %v2137 = vpack.c.b16 %v1360, %v1353
    %v2138 = vpack.c.b16 %v1361, %v1354
    %v2139 = vpack.c.b16 %v1362, %v1355
    %v2140 = vpack.c.b16 %v1363, %v1356
    %v2141 = vpack.c.b16 %v1364, %v1357
    %v2142 = vpack.c.b16 %v1372, %v1365
    %v2143 = vpack.c.b16 %v1373, %v1366
    %v2144 = vpack.c.b16 %v1374, %v1367
    %v2145 = vpack.c.b16 %v1375, %v1368
    %v2146 = vpack.c.b16 %v1376, %v1369
    %v2147 = vpack.c.b16 %v1377, %v1370
    %v2148 = vpack.c.b16 %v1378, %v1371
    %v2149 = vpack.c.b16 %v1386, %v1379
    %v2150 = vpack.c.b16 %v1387, %v1380
    %v2151 = vpack.c.b16 %v1388, %v1381
    %v2152 = vpack.c.b16 %v1389, %v1382
    %v2153 = vpack.c.b16 %v1390, %v1383
    %v2154 = vpack.c.b16 %v1391, %v1384
    %v2155 = vpack.c.b16 %v1392, %v1385
    %v2156 = vpack.c.b16 %v1400, %v1393
    %v2157 = vpack.c.b16 %v1401, %v1394
    %v2158 = vpack.c.b16 %v1402, %v1395
    %v2159 = vpack.c.b16 %v1403, %v1396
    %v2160 = vpack.c.b16 %v1404, %v1397
    %v2161 = vpack.c.b16 %v1405, %v1398
    %v2162 = vpack.c.b16 %v1406, %v1399
    %v2163 = vpack.c.b16 %v1414, %v1407
    %v2164 = vpack.c.b16 %v1415, %v1408
    %v2165 = vpack.c.b16 %v1416, %v1409
    %v2166 = vpack.c.b16 %v1417, %v1410
    %v2167 = vpack.c.b16 %v1418, %v1411
    %v2168 = vpack.c.b16 %v1419, %v1412
    %v2169 = vpack.c.b16 %v1420, %v1413
    %v2170 = vpack.c.b16 %v1428, %v1421
    %v2171 = vpack.c.b16 %v1429, %v1422
    %v2172 = vpack.c.b16 %v1430, %v1423
    %v2173 = vpack.c.b16 %v1431, %v1424
    %v2174 = vpack.c.b16 %v1432, %v1425
    %v2175 = vpack.c.b16 %v1433, %v1426
    %v2176 = vpack.c.b16 %v1434, %v1427
    %v2177 = vpack.c.b16 %v1442, %v1435
    %v2178 = vpack.c.b16 %v1443, %v1436
    %v2179 = vpack.c.b16 %v1444, %v1437
    %v2180 = vpack.c.b16 %v1445, %v1438
    %v2181 = vpack.c.b16 %v1446, %v1439
    %v2182 = vpack.c.b16 %v1447, %v1440
    %v2183 = vpack.c.b16 %v1448, %v1441
    %v2184 = vpack.c.b16 %v1456, %v1449
    %v2185 = vpack.c.b16 %v1457, %v1450
    %v2186 = vpack.c.b16 %v1458, %v1451
    %v2187 = vpack.c.b16 %v1459, %v1452
    %v2188 = vpack.c.b16 %v1460, %v1453
    %v2189 = vpack.c.b16 %v1461, %v1454
    %v2190 = vpack.c.b16 %v1462, %v1455
    %v2191 = vpack.c.b16 %v1470, %v1463
    %v2192 = vpack.c.b16 %v1471, %v1464
    %v2193 = vpack.c.b16 %v1472, %v1465
    %v2194 = vpack.c.b16 %v1473, %v1466
    %v2195 = vpack.c.b16 %v1474, %v1467
    %v2196 = vpack.c.b16 %v1475, %v1468
    %v2197 = vpack.c.b16 %v1476, %v1469
    %v2198 = vpack.c.b16 %v1484, %v1477
    %v2199 = vpack.c.b16 %v1485, %v1478
    %v2200 = vpack.c.b16 %v1486, %v1479
    %v2201 = vpack.c.b16 %v1487, %v1480
    %v2202 = vpack.c.b16 %v1488, %v1481
    %v2203 = vpack.c.b16 %v1489, %v1482
    %v2204 = vpack.c.b16 %v1490, %v1483
    %v2205 = vpack.c.b16 %v1498, %v1491
    %v2206 = vpack.c.b16 %v1499, %v1492
    %v2207 = vpack.c.b16 %v1500, %v1493
    %v2208 = vpack.c.b16 %v1501, %v1494
    %v2209 = vpack.c.b16 %v1502, %v1495
    %v2210 = vpack.c.b16 %v1503, %v1496
    %v2211 = vpack.c.b16 %v1504, %v1497
    %v2212 = vpack.c.b16 %v1512, %v1505
    %v2213 = vpack.c.b16 %v1513, %v1506
    %v2214 = vpack.c.b16 %v1514, %v1507
    %v2215 = vpack.c.b16 %v1515, %v1508
    %v2216 = vpack.c.b16 %v1516, %v1509
    %v2217 = vpack.c.b16 %v1517, %v1510
    %v2218 = vpack.c.b16 %v1518, %v1511
    %v2219 = vpack.c.b16 %v1526, %v1519
    %v2220 = vpack.c.b16 %v1527, %v1520
    %v2221 = vpack.c.b16 %v1528, %v1521
    %v2222 = vpack.c.b16 %v1529, %v1522
    %v2223 = vpack.c.b16 %v1530, %v1523
    %v2224 = vpack.c.b16 %v1531, %v1524
    %v2225 = vpack.c.b16 %v1532, %v1525
    %v2226 = vpack.c.b16 %v1540, %v1533
    %v2227 = vpack.c.b16 %v1541, %v1534
    %v2228 = vpack.c.b16 %v1542, %v1535
    %v2229 = vpack.c.b16 %v1543, %v1536
    %v2230 = vpack.c.b16 %v1544, %v1537
    %v2231 = vpack.c.b16 %v1545, %v1538
    %v2232 = vpack.c.b16 %v1546, %v1539
    %v2233 = vpack.c.b16 %v1554, %v1547
    %v2234 = vpack.c.b16 %v1555, %v1548
    %v2235 = vpack.c.b16 %v1556, %v1549
    %v2236 = vpack.c.b16 %v1557, %v1550
    %v2237 = vpack.c.b16 %v1558, %v1551
    %v2238 = vpack.c.b16 %v1559, %v1552
    %v2239 = vpack.c.b16 %v1560, %v1553
    %v2240 = vpack.c.b16 %v1568, %v1561
    %v2241 = vpack.c.b16 %v1569, %v1562
    %v2242 = vpack.c.b16 %v1570, %v1563
    %v2243 = vpack.c.b16 %v1571, %v1564
    %v2244 = vpack.c.b16 %v1572, %v1565
    %v2245 = vpack.c.b16 %v1573, %v1566
    %v2246 = vpack.c.b16 %v1574, %v1567
    %v2247 = vpack.c.b16 %v1582, %v1575
    %v2248 = vpack.c.b16 %v1583, %v1576
    %v2249 = vpack.c.b16 %v1584, %v1577
    %v2250 = vpack.c.b16 %v1585, %v1578
    %v2251 = vpack.c.b16 %v1586, %v1579
    %v2252 = vpack.c.b16 %v1587, %v1580
    %v2253 = vpack.c.b16 %v1588, %v1581
    %v2254 = vpack.c.b16 %v1596, %v1589
    %v2255 = vpack.c.b16 %v1597, %v1590
    %v2256 = vpack.c.b16 %v1598, %v1591
    %v2257 = vpack.c.b16 %v1599, %v1592
    %v2258 = vpack.c.b16 %v1600, %v1593
    %v2259 = vpack.c.b16 %v1601, %v1594
    %v2260 = vpack.c.b16 %v1602, %v1595
    %v2261 = vpack.c.b16 %v1610, %v1603
    %v2262 = vpack.c.b16 %v1611, %v1604
    %v2263 = vpack.c.b16 %v1612, %v1605
    %v2264 = vpack.c.b16 %v1613, %v1606
    %v2265 = vpack.c.b16 %v1614, %v1607
    %v2266 = vpack.c.b16 %v1615, %v1608
    %v2267 = vpack.c.b16 %v1616, %v1609
    %v2268 = vpack.c.b16 %v1624, %v1617
    %v2269 = vpack.c.b16 %v1625, %v1618
    %v2270 = vpack.c.b16 %v1626, %v1619
    %v2271 = vpack.c.b16 %v1627, %v1620
    %v2272 = vpack.c.b16 %v1628, %v1621
    %v2273 = vpack.c.b16 %v1629, %v1622
    %v2274 = vpack.c.b16 %v1630, %v1623
    %v2275 = vpack.c.b16 %v1638, %v1631
    %v2276 = vpack.c.b16 %v1639, %v1632
    %v2277 = vpack.c.b16 %v1640, %v1633
    %v2278 = vpack.c.b16 %v1641, %v1634
    %v2279 = vpack.c.b16 %v1642, %v1635
    %v2280 = vpack.c.b16 %v1643, %v1636
    %v2281 = vpack.c.b16 %v1644, %v1637
    %v2282 = vpack.c.b16 %v1652, %v1645
    %v2283 = vpack.c.b16 %v1653, %v1646
    %v2284 = vpack.c.b16 %v1654, %v1647
    %v2285 = vpack.c.b16 %v1655, %v1648
    %v2286 = vpack.c.b16 %v1656, %v1649
    %v2287 = vpack.c.b16 %v1657, %v1650
    %v2288 = vpack.c.b16 %v1658, %v1651
    %v2289 = vpack.c.b16 %v1666, %v1659
    %v2290 = vpack.c.b16 %v1667, %v1660
    %v2291 = vpack.c.b16 %v1668, %v1661
    %v2292 = vpack.c.b16 %v1669, %v1662
    %v2293 = vpack.c.b16 %v1670, %v1663
    %v2294 = vpack.c.b16 %v1671, %v1664
    %v2295 = vpack.c.b16 %v1672, %v1665
    %v2296 = vpack.c.b16 %v1680, %v1673
    %v2297 = vpack.c.b16 %v1681, %v1674
    %v2298 = vpack.c.b16 %v1682, %v1675
    %v2299 = vpack.c.b16 %v1683, %v1676
    %v2300 = vpack.c.b16 %v1684, %v1677
    %v2301 = vpack.c.b16 %v1685, %v1678
    %v2302 = vpack.c.b16 %v1686, %v1679
    %v2303 = vpack.c.b16 %v1694, %v1687
    %v2304 = vpack.c.b16 %v1695, %v1688
    %v2305 = vpack.c.b16 %v1696, %v1689
    %v2306 = vpack.c.b16 %v1697, %v1690
    %v2307 = vpack.c.b16 %v1698, %v1691
    %v2308 = vpack.c.b16 %v1699, %v1692
    %v2309 = vpack.c.b16 %v1700, %v1693
    %v2310 = vpack.c.b16 %v1708, %v1701
    %v2311 = vpack.c.b16 %v1709, %v1702
    %v2312 = vpack.c.b16 %v1710, %v1703
    %v2313 = vpack.c.b16 %v1711, %v1704
    %v2314 = vpack.c.b16 %v1712, %v1705
    %v2315 = vpack.c.b16 %v1713, %v1706
    %v2316 = vpack.c.b16 %v1714, %v1707
    %v2317 = vpack.c.b16 %v1722, %v1715
    %v2318 = vpack.c.b16 %v1723, %v1716
    %v2319 = vpack.c.b16 %v1724, %v1717
    %v2320 = vpack.c.b16 %v1725, %v1718
    %v2321 = vpack.c.b16 %v1726, %v1719
    %v2322 = vpack.c.b16 %v1727, %v1720
    %v2323 = vpack.c.b16 %v1728, %v1721
    %v2324 = vpack.c.b16 %v1736, %v1729
    %v2325 = vpack.c.b16 %v1737, %v1730
    %v2326 = vpack.c.b16 %v1738, %v1731
    %v2327 = vpack.c.b16 %v1739, %v1732
    %v2328 = vpack.c.b16 %v1740, %v1733
    %v2329 = vpack.c.b16 %v1741, %v1734
    %v2330 = vpack.c.b16 %v1742, %v1735
    %v2331 = vpack.c.b16 %v1750, %v1743
    %v2332 = vpack.c.b16 %v1751, %v1744
    %v2333 = vpack.c.b16 %v1752, %v1745
    %v2334 = vpack.c.b16 %v1753, %v1746
    %v2335 = vpack.c.b16 %v1754, %v1747
    %v2336 = vpack.c.b16 %v1755, %v1748
    %v2337 = vpack.c.b16 %v1756, %v1749
    %v2338 = vpack.c.b16 %v1764, %v1757
    %v2339 = vpack.c.b16 %v1765, %v1758
    %v2340 = vpack.c.b16 %v1766, %v1759
    %v2341 = vpack.c.b16 %v1767, %v1760
    %v2342 = vpack.c.b16 %v1768, %v1761
    %v2343 = vpack.c.b16 %v1769, %v1762
    %v2344 = vpack.c.b16 %v1770, %v1763
    %v2345 = vpack.c.b16 %v1778, %v1771
    %v2346 = vpack.c.b16 %v1779, %v1772
    %v2347 = vpack.c.b16 %v1780, %v1773
    %v2348 = vpack.c.b16 %v1781, %v1774
    %v2349 = vpack.c.b16 %v1782, %v1775
    %v2350 = vpack.c.b16 %v1783, %v1776
    %v2351 = vpack.c.b16 %v1784, %v1777
    %v2352 = vpack.c.b16 %v1792, %v1785
    %v2353 = vpack.c.b16 %v1793, %v1786
    %v2354 = vpack.c.b16 %v1794, %v1787
    %v2355 = vpack.c.b16 %v1795, %v1788
    %v2356 = vpack.c.b16 %v1796, %v1789
    %v2357 = vpack.c.b16 %v1797, %v1790
    %v2358 = vpack.c.b16 %v1798, %v1791
    %v2359 = vpack.c.b16 %v1806, %v1799
    %v2360 = vpack.c.b16 %v1807, %v1800
    %v2361 = vpack.c.b16 %v1808, %v1801
    %v2362 = vpack.c.b16 %v1809, %v1802
    %v2363 = vpack.c.b16 %v1810, %v1803
    %v2364 = vpack.c.b16 %v1811, %v1804
    %v2365 = vpack.c.b16 %v1812, %v1805
    %v2366 = vpack.c.b16 %v1820, %v1813
    %v2367 = vpack.c.b16 %v1821, %v1814
    %v2368 = vpack.c.b16 %v1822, %v1815
    %v2369 = vpack.c.b16 %v1823, %v1816
    %v2370 = vpack.c.b16 %v1824, %v1817
    %v2371 = vpack.c.b16 %v1825, %v1818
    %v2372 = vpack.c.b16 %v1826, %v1819
    %v2373 = vpack.c.b16 %v1834, %v1827
    %v2374 = vpack.c.b16 %v1835, %v1828
    %v2375 = vpack.c.b16 %v1836, %v1829
    %v2376 = vpack.c.b16 %v1837, %v1830
    %v2377 = vpack.c.b16 %v1838, %v1831
    %v2378 = vpack.c.b16 %v1839, %v1832
    %v2379 = vpack.c.b16 %v1840, %v1833
    %v2380 = vpack.c.b16 %v1848, %v1841
    %v2381 = vpack.c.b16 %v1849, %v1842
    %v2382 = vpack.c.b16 %v1850, %v1843
    %v2383 = vpack.c.b16 %v1851, %v1844
    %v2384 = vpack.c.b16 %v1852, %v1845
    %v2385 = vpack.c.b16 %v1853, %v1846
    %v2386 = vpack.c.b16 %v1854, %v1847
    %v2387 = vpack.c.b16 %v1862, %v1855
    %v2388 = vpack.c.b16 %v1863, %v1856
    %v2389 = vpack.c.b16 %v1864, %v1857
    %v2390 = vpack.c.b16 %v1865, %v1858
    %v2391 = vpack.c.b16 %v1866, %v1859
    %v2392 = vpack.c.b16 %v1867, %v1860
    %v2393 = vpack.c.b16 %v1868, %v1861
    %v2394 = vpack.c.b16 %v1876, %v1869
    %v2395 = vpack.c.b16 %v1877, %v1870
    %v2396 = vpack.c.b16 %v1878, %v1871
    %v2397 = vpack.c.b16 %v1879, %v1872
    %v2398 = vpack.c.b16 %v1880, %v1873
    %v2399 = vpack.c.b16 %v1881, %v1874
    %v2400 = vpack.c.b16 %v1882, %v1875
    %v2401 = vpack.c.b16 %v1890, %v1883
    %v2402 = vpack.c.b16 %v1891, %v1884
    %v2403 = vpack.c.b16 %v1892, %v1885
    %v2404 = vpack.c.b16 %v1893, %v1886
    %v2405 = vpack.c.b16 %v1894, %v1887
    %v2406 = vpack.c.b16 %v1895, %v1888
    %v2407 = vpack.c.b16 %v1896, %v1889
    %v2408 = vpack.c.b16 %v1904, %v1897
    %v2409 = vpack.c.b16 %v1905, %v1898
    %v2410 = vpack.c.b16 %v1906, %v1899
    %v2411 = vpack.c.b16 %v1907, %v1900
    %v2412 = vpack.c.b16 %v1908, %v1901
    %v2413 = vpack.c.b16 %v1909, %v1902
    %v2414 = vpack.c.b16 %v1910, %v1903
    %v2415 = vpack.c.b16 %v1918, %v1911
    %v2416 = vpack.c.b16 %v1919, %v1912
    %v2417 = vpack.c.b16 %v1920, %v1913
    %v2418 = vpack.c.b16 %v1921, %v1914
    %v2419 = vpack.c.b16 %v1922, %v1915
    %v2420 = vpack.c.b16 %v1923, %v1916
    %v2421 = vpack.c.b16 %v1924, %v1917
    %v2422 = vpack.c.b16 %v1932, %v1925
    %v2423 = vpack.c.b16 %v1933, %v1926
    %v2424 = vpack.c.b16 %v1934, %v1927
    %v2425 = vpack.c.b16 %v1935, %v1928
    %v2426 = vpack.c.b16 %v1936, %v1929
    %v2427 = vpack.c.b16 %v1937, %v1930
    %v2428 = vpack.c.b16 %v1938, %v1931
    %v2429 = vpack.c.b16 %v1946, %v1939
    %v2430 = vpack.c.b16 %v1947, %v1940
    %v2431 = vpack.c.b16 %v1948, %v1941
    %v2432 = vpack.c.b16 %v1949, %v1942
    %v2433 = vpack.c.b16 %v1950, %v1943
    %v2434 = vpack.c.b16 %v1951, %v1944
    %v2435 = vpack.c.b16 %v1952, %v1945
    %v2436 = vpack.c.b16 %v1960, %v1953
    %v2437 = vpack.c.b16 %v1961, %v1954
    %v2438 = vpack.c.b16 %v1962, %v1955
    %v2439 = vpack.c.b16 %v1963, %v1956
    %v2440 = vpack.c.b16 %v1964, %v1957
    %v2441 = vpack.c.b16 %v1965, %v1958
    %v2442 = vpack.c.b16 %v1966, %v1959
    %v2443 = vpack.c.b16 %v1974, %v1967
    %v2444 = vpack.c.b16 %v1975, %v1968
    %v2445 = vpack.c.b16 %v1976, %v1969
    %v2446 = vpack.c.b16 %v1977, %v1970
    %v2447 = vpack.c.b16 %v1978, %v1971
    %v2448 = vpack.c.b16 %v1979, %v1972
    %v2449 = vpack.c.b16 %v1980, %v1973
    %v2450 = vpack.c.b16 %v1988, %v1981
    %v2451 = vpack.c.b16 %v1989, %v1982
    %v2452 = vpack.c.b16 %v1990, %v1983
    %v2453 = vpack.c.b16 %v1991, %v1984
    %v2454 = vpack.c.b16 %v1992, %v1985
    %v2455 = vpack.c.b16 %v1993, %v1986
    %v2456 = vpack.c.b16 %v1994, %v1987
    %v2457 = vpack.c.b16 %v2002, %v1995
    %v2458 = vpack.c.b16 %v2003, %v1996
    %v2459 = vpack.c.b16 %v2004, %v1997
    %v2460 = vpack.c.b16 %v2005, %v1998
    %v2461 = vpack.c.b16 %v2006, %v1999
    %v2462 = vpack.c.b16 %v2007, %v2000
    %v2463 = vpack.c.b16 %v2008, %v2001
    %v2464 = vpack.c.b16 %v2016, %v2009
    %v2465 = vpack.c.b16 %v2017, %v2010
    %v2466 = vpack.c.b16 %v2018, %v2011
    %v2467 = vpack.c.b16 %v2019, %v2012
    %v2468 = vpack.c.b16 %v2020, %v2013
    %v2469 = vpack.c.b16 %v2021, %v2014
    %v2470 = vpack.c.b16 %v2022, %v2015
    %2919 = vmatprep.subr.bf16.mxu0 %v2073
    %2920 = vmatpush1.bf16.xpose.msra.mxu0 %v2072
    %2921 = vmatprep.subr.bf16.mxu0 %v2066
    %2922 = vmatpush1.bf16.xpose.msra.mxu0 %v2065
    %2923 = vmatprep.subr.bf16.mxu0 %v2059
    %2924 = vmatpush1.bf16.xpose.msra.mxu0 %v2058
    %2925 = vmatprep.subr.bf16.mxu0 %v2052
    %2926 = vmatpush1.bf16.xpose.msra.mxu0 %v2051
    %2927 = vmatprep.subr.bf16.mxu0 %v2045
    %2928 = vmatpush1.bf16.xpose.msra.mxu0 %v2044
    %2929 = vmatprep.subr.bf16.mxu0 %v2038
    %2930 = vmatpush1.bf16.xpose.msra.mxu0 %v2037
    %2931 = vmatprep.subr.bf16.mxu0 %v2031
    %2932 = vmatpush1.bf16.xpose.msra.mxu0 %v2030
    %2933 = vmatprep.subr.bf16.mxu0 %v2024
    %2934 = vmatpush1.bf16.xpose.msra.mxu0 %v2023
    %2935 = vmatprep.subr.bf16.mxu0 %v2129
    %2936 = vmatpush2.bf16.xpose.msra.mxu0 %v2128
    %2937 = vmatprep.subr.bf16.mxu0 %v2122
    %2938 = vmatpush2.bf16.xpose.msra.mxu0 %v2121
    %2939 = vmatprep.subr.bf16.mxu0 %v2115
    %2940 = vmatpush2.bf16.xpose.msra.mxu0 %v2114
    %2941 = vmatprep.subr.bf16.mxu0 %v2108
    %2942 = vmatpush2.bf16.xpose.msra.mxu0 %v2107
    %2943 = vmatprep.subr.bf16.mxu0 %v2101
    %2944 = vmatpush2.bf16.xpose.msra.mxu0 %v2100
    %2945 = vmatprep.subr.bf16.mxu0 %v2094
    %2946 = vmatpush2.bf16.xpose.msra.mxu0 %v2093
    %2947 = vmatprep.subr.bf16.mxu0 %v2087
    %2948 = vmatpush2.bf16.xpose.msra.mxu0 %v2086
    %2949 = vmatprep.subr.bf16.mxu0 %v2080
    %2950 = vmatpush2.bf16.xpose.msra.mxu0 %v2079
    %2951 = vmatprep.mubr.bf16.mxu0 %v602
    %2952 = vmatmul.mubr.bf16.gmra.mxu0 %v601
    %v2953 = vpop.f32.mrf.mxu0
    %v2954 = vadd.f32 0.0, %v2953
    %v2955 = vpop.f32.mrf.mxu0
    %v2956 = vadd.f32 0.0, %v2955
    %v2957 = vpop.f32.mrf.mxu0
    %v2958 = vpop.f32.mrf.mxu0
    %2959 = vdwg.mxu0
    %2960 = vmatprep.subr.bf16.mxu0 %v2075
    %2961 = vmatpush1.bf16.xpose.msra.mxu0 %v2074
    %2962 = vmatprep.subr.bf16.mxu0 %v2068
    %2963 = vmatpush1.bf16.xpose.msra.mxu0 %v2067
    %2964 = vmatprep.subr.bf16.mxu0 %v2061
    %2965 = vmatpush1.bf16.xpose.msra.mxu0 %v2060
    %2966 = vmatprep.subr.bf16.mxu0 %v2054
    %2967 = vmatpush1.bf16.xpose.msra.mxu0 %v2053
    %2968 = vmatprep.subr.bf16.mxu0 %v2047
    %2969 = vmatpush1.bf16.xpose.msra.mxu0 %v2046
    %2970 = vmatprep.subr.bf16.mxu0 %v2040
    %2971 = vmatpush1.bf16.xpose.msra.mxu0 %v2039
    %2972 = vmatprep.subr.bf16.mxu0 %v2033
    %2973 = vmatpush1.bf16.xpose.msra.mxu0 %v2032
    %2974 = vmatprep.subr.bf16.mxu0 %v2026
    %2975 = vmatpush1.bf16.xpose.msra.mxu0 %v2025
    %2976 = vmatprep.subr.bf16.mxu0 %v2131
    %2977 = vmatpush2.bf16.xpose.msra.mxu0 %v2130
    %2978 = vmatprep.subr.bf16.mxu0 %v2124
    %2979 = vmatpush2.bf16.xpose.msra.mxu0 %v2123
    %2980 = vmatprep.subr.bf16.mxu0 %v2117
    %2981 = vmatpush2.bf16.xpose.msra.mxu0 %v2116
    %2982 = vmatprep.subr.bf16.mxu0 %v2110
    %2983 = vmatpush2.bf16.xpose.msra.mxu0 %v2109
    %2984 = vmatprep.subr.bf16.mxu0 %v2103
    %2985 = vmatpush2.bf16.xpose.msra.mxu0 %v2102
    %2986 = vmatprep.subr.bf16.mxu0 %v2096
    %2987 = vmatpush2.bf16.xpose.msra.mxu0 %v2095
    %2988 = vmatprep.subr.bf16.mxu0 %v2089
    %2989 = vmatpush2.bf16.xpose.msra.mxu0 %v2088
    %2990 = vmatprep.subr.bf16.mxu0 %v2082
    %2991 = vmatpush2.bf16.xpose.msra.mxu0 %v2081
    %2992 = vmatprep.mubr.bf16.mxu0 %v604
    %2993 = vmatmul.mubr.bf16.gmra.mxu0 %v603
    %v2994 = vpop.f32.mrf.mxu0
    %v2995 = vadd.f32 %v2954, %v2994
    %v2996 = vpop.f32.mrf.mxu0
    %v2997 = vadd.f32 %v2956, %v2996
    %v2998 = vpop.f32.mrf.mxu0
    %v2999 = vpop.f32.mrf.mxu0
    %3000 = vdwg.mxu0
    %3001 = vmatprep.subr.bf16.mxu0 %v2077
    %3002 = vmatpush1.bf16.xpose.msra.mxu0 %v2076
    %3003 = vmatprep.subr.bf16.mxu0 %v2070
    %3004 = vmatpush1.bf16.xpose.msra.mxu0 %v2069
    %3005 = vmatprep.subr.bf16.mxu0 %v2063
    %3006 = vmatpush1.bf16.xpose.msra.mxu0 %v2062
    %3007 = vmatprep.subr.bf16.mxu0 %v2056
    %3008 = vmatpush1.bf16.xpose.msra.mxu0 %v2055
    %3009 = vmatprep.subr.bf16.mxu0 %v2049
    %3010 = vmatpush1.bf16.xpose.msra.mxu0 %v2048
    %3011 = vmatprep.subr.bf16.mxu0 %v2042
    %3012 = vmatpush1.bf16.xpose.msra.mxu0 %v2041
    %3013 = vmatprep.subr.bf16.mxu0 %v2035
    %3014 = vmatpush1.bf16.xpose.msra.mxu0 %v2034
    %3015 = vmatprep.subr.bf16.mxu0 %v2028
    %3016 = vmatpush1.bf16.xpose.msra.mxu0 %v2027
    %3017 = vmatprep.subr.bf16.mxu0 %v2133
    %3018 = vmatpush2.bf16.xpose.msra.mxu0 %v2132
    %3019 = vmatprep.subr.bf16.mxu0 %v2126
    %3020 = vmatpush2.bf16.xpose.msra.mxu0 %v2125
    %3021 = vmatprep.subr.bf16.mxu0 %v2119
    %3022 = vmatpush2.bf16.xpose.msra.mxu0 %v2118
    %3023 = vmatprep.subr.bf16.mxu0 %v2112
    %3024 = vmatpush2.bf16.xpose.msra.mxu0 %v2111
    %3025 = vmatprep.subr.bf16.mxu0 %v2105
    %3026 = vmatpush2.bf16.xpose.msra.mxu0 %v2104
    %3027 = vmatprep.subr.bf16.mxu0 %v2098
    %3028 = vmatpush2.bf16.xpose.msra.mxu0 %v2097
    %3029 = vmatprep.subr.bf16.mxu0 %v2091
    %3030 = vmatpush2.bf16.xpose.msra.mxu0 %v2090
    %3031 = vmatprep.subr.bf16.mxu0 %v2084
    %3032 = vmatpush2.bf16.xpose.msra.mxu0 %v2083
    %3033 = vmatprep.mubr.bf16.mxu0 %v606
    %3034 = vmatmul.mubr.bf16.gmra.mxu0 %v605
    %v3035 = vpop.f32.mrf.mxu0
    %v3036 = vadd.f32 %v2995, %v3035
    %v3037 = vpop.f32.mrf.mxu0
    %v3038 = vadd.f32 %v2997, %v3037
    %v3039 = vpop.f32.mrf.mxu0
    %v3040 = vpop.f32.mrf.mxu0
    %3041 = vdwg.mxu0
    %3042 = vmatprep.subr.bf16.mxu0 0
    %3043 = vmatpush1.bf16.xpose.msra.mxu0 %v2078
    %3044 = vmatprep.subr.bf16.mxu0 0
    %3045 = vmatpush1.bf16.xpose.msra.mxu0 %v2071
    %3046 = vmatprep.subr.bf16.mxu0 0
    %3047 = vmatpush1.bf16.xpose.msra.mxu0 %v2064
    %3048 = vmatprep.subr.bf16.mxu0 0
    %3049 = vmatpush1.bf16.xpose.msra.mxu0 %v2057
    %3050 = vmatprep.subr.bf16.mxu0 0
    %3051 = vmatpush1.bf16.xpose.msra.mxu0 %v2050
    %3052 = vmatprep.subr.bf16.mxu0 0
    %3053 = vmatpush1.bf16.xpose.msra.mxu0 %v2043
    %3054 = vmatprep.subr.bf16.mxu0 0
    %3055 = vmatpush1.bf16.xpose.msra.mxu0 %v2036
    %3056 = vmatprep.subr.bf16.mxu0 0
    %3057 = vmatpush1.bf16.xpose.msra.mxu0 %v2029
    %3058 = vmatprep.subr.bf16.mxu0 0
    %3059 = vmatpush2.bf16.xpose.msra.mxu0 %v2134
    %3060 = vmatprep.subr.bf16.mxu0 0
    %3061 = vmatpush2.bf16.xpose.msra.mxu0 %v2127
    %3062 = vmatprep.subr.bf16.mxu0 0
    %3063 = vmatpush2.bf16.xpose.msra.mxu0 %v2120
    %3064 = vmatprep.subr.bf16.mxu0 0
    %3065 = vmatpush2.bf16.xpose.msra.mxu0 %v2113
    %3066 = vmatprep.subr.bf16.mxu0 0
    %3067 = vmatpush2.bf16.xpose.msra.mxu0 %v2106
    %3068 = vmatprep.subr.bf16.mxu0 0
    %3069 = vmatpush2.bf16.xpose.msra.mxu0 %v2099
    %3070 = vmatprep.subr.bf16.mxu0 0
    %3071 = vmatpush2.bf16.xpose.msra.mxu0 %v2092
    %3072 = vmatprep.subr.bf16.mxu0 0
    %3073 = vmatpush2.bf16.xpose.msra.mxu0 %v2085
    %3074 = vmatprep.mubr.bf16.mxu0 0
    %3075 = vmatmul.mubr.bf16.gmra.mxu0 %v607
    %v3076 = vpop.f32.mrf.mxu0
    %v3077 = vadd.f32 %v3036, %v3076
    %v3078 = vpop.f32.mrf.mxu0
    %v3079 = vadd.f32 %v3038, %v3078
    %v3080 = vpop.f32.mrf.mxu0
    %v3081 = vpop.f32.mrf.mxu0
    %3082 = vdwg.mxu0
    %3083 = vmatprep.subr.bf16.mxu0 %v2185
    %3084 = vmatpush1.bf16.xpose.msra.mxu0 %v2184
    %3085 = vmatprep.subr.bf16.mxu0 %v2178
    %3086 = vmatpush1.bf16.xpose.msra.mxu0 %v2177
    %3087 = vmatprep.subr.bf16.mxu0 %v2171
    %3088 = vmatpush1.bf16.xpose.msra.mxu0 %v2170
    %3089 = vmatprep.subr.bf16.mxu0 %v2164
    %3090 = vmatpush1.bf16.xpose.msra.mxu0 %v2163
    %3091 = vmatprep.subr.bf16.mxu0 %v2157
    %3092 = vmatpush1.bf16.xpose.msra.mxu0 %v2156
    %3093 = vmatprep.subr.bf16.mxu0 %v2150
    %3094 = vmatpush1.bf16.xpose.msra.mxu0 %v2149
    %3095 = vmatprep.subr.bf16.mxu0 %v2143
    %3096 = vmatpush1.bf16.xpose.msra.mxu0 %v2142
    %3097 = vmatprep.subr.bf16.mxu0 %v2136
    %3098 = vmatpush1.bf16.xpose.msra.mxu0 %v2135
    %3099 = vmatprep.subr.bf16.mxu0 %v2241
    %3100 = vmatpush2.bf16.xpose.msra.mxu0 %v2240
    %3101 = vmatprep.subr.bf16.mxu0 %v2234
    %3102 = vmatpush2.bf16.xpose.msra.mxu0 %v2233
    %3103 = vmatprep.subr.bf16.mxu0 %v2227
    %3104 = vmatpush2.bf16.xpose.msra.mxu0 %v2226
    %3105 = vmatprep.subr.bf16.mxu0 %v2220
    %3106 = vmatpush2.bf16.xpose.msra.mxu0 %v2219
    %3107 = vmatprep.subr.bf16.mxu0 %v2213
    %3108 = vmatpush2.bf16.xpose.msra.mxu0 %v2212
    %3109 = vmatprep.subr.bf16.mxu0 %v2206
    %3110 = vmatpush2.bf16.xpose.msra.mxu0 %v2205
    %3111 = vmatprep.subr.bf16.mxu0 %v2199
    %3112 = vmatpush2.bf16.xpose.msra.mxu0 %v2198
    %3113 = vmatprep.subr.bf16.mxu0 %v2192
    %3114 = vmatpush2.bf16.xpose.msra.mxu0 %v2191
    %3115 = vmatprep.mubr.bf16.mxu0 %v602
    %3116 = vmatmul.mubr.bf16.gmra.mxu0 %v601
    %v3117 = vpop.f32.mrf.mxu0
    %v3118 = vadd.f32 0.0, %v3117
    %v3119 = vpop.f32.mrf.mxu0
    %v3120 = vadd.f32 0.0, %v3119
    %v3121 = vpop.f32.mrf.mxu0
    %v3122 = vpop.f32.mrf.mxu0
    %3123 = vdwg.mxu0
    %3124 = vmatprep.subr.bf16.mxu0 %v2187
    %3125 = vmatpush1.bf16.xpose.msra.mxu0 %v2186
    %3126 = vmatprep.subr.bf16.mxu0 %v2180
    %3127 = vmatpush1.bf16.xpose.msra.mxu0 %v2179
    %3128 = vmatprep.subr.bf16.mxu0 %v2173
    %3129 = vmatpush1.bf16.xpose.msra.mxu0 %v2172
    %3130 = vmatprep.subr.bf16.mxu0 %v2166
    %3131 = vmatpush1.bf16.xpose.msra.mxu0 %v2165
    %3132 = vmatprep.subr.bf16.mxu0 %v2159
    %3133 = vmatpush1.bf16.xpose.msra.mxu0 %v2158
    %3134 = vmatprep.subr.bf16.mxu0 %v2152
    %3135 = vmatpush1.bf16.xpose.msra.mxu0 %v2151
    %3136 = vmatprep.subr.bf16.mxu0 %v2145
    %3137 = vmatpush1.bf16.xpose.msra.mxu0 %v2144
    %3138 = vmatprep.subr.bf16.mxu0 %v2138
    %3139 = vmatpush1.bf16.xpose.msra.mxu0 %v2137
    %3140 = vmatprep.subr.bf16.mxu0 %v2243
    %3141 = vmatpush2.bf16.xpose.msra.mxu0 %v2242
    %3142 = vmatprep.subr.bf16.mxu0 %v2236
    %3143 = vmatpush2.bf16.xpose.msra.mxu0 %v2235
    %3144 = vmatprep.subr.bf16.mxu0 %v2229
    %3145 = vmatpush2.bf16.xpose.msra.mxu0 %v2228
    %3146 = vmatprep.subr.bf16.mxu0 %v2222
    %3147 = vmatpush2.bf16.xpose.msra.mxu0 %v2221
    %3148 = vmatprep.subr.bf16.mxu0 %v2215
    %3149 = vmatpush2.bf16.xpose.msra.mxu0 %v2214
    %3150 = vmatprep.subr.bf16.mxu0 %v2208
    %3151 = vmatpush2.bf16.xpose.msra.mxu0 %v2207
    %3152 = vmatprep.subr.bf16.mxu0 %v2201
    %3153 = vmatpush2.bf16.xpose.msra.mxu0 %v2200
    %3154 = vmatprep.subr.bf16.mxu0 %v2194
    %3155 = vmatpush2.bf16.xpose.msra.mxu0 %v2193
    %3156 = vmatprep.mubr.bf16.mxu0 %v604
    %3157 = vmatmul.mubr.bf16.gmra.mxu0 %v603
    %v3158 = vpop.f32.mrf.mxu0
    %v3159 = vadd.f32 %v3118, %v3158
    %v3160 = vpop.f32.mrf.mxu0
    %v3161 = vadd.f32 %v3120, %v3160
    %v3162 = vpop.f32.mrf.mxu0
    %v3163 = vpop.f32.mrf.mxu0
    %3164 = vdwg.mxu0
    %3165 = vmatprep.subr.bf16.mxu0 %v2189
    %3166 = vmatpush1.bf16.xpose.msra.mxu0 %v2188
    %3167 = vmatprep.subr.bf16.mxu0 %v2182
    %3168 = vmatpush1.bf16.xpose.msra.mxu0 %v2181
    %3169 = vmatprep.subr.bf16.mxu0 %v2175
    %3170 = vmatpush1.bf16.xpose.msra.mxu0 %v2174
    %3171 = vmatprep.subr.bf16.mxu0 %v2168
    %3172 = vmatpush1.bf16.xpose.msra.mxu0 %v2167
    %3173 = vmatprep.subr.bf16.mxu0 %v2161
    %3174 = vmatpush1.bf16.xpose.msra.mxu0 %v2160
    %3175 = vmatprep.subr.bf16.mxu0 %v2154
    %3176 = vmatpush1.bf16.xpose.msra.mxu0 %v2153
    %3177 = vmatprep.subr.bf16.mxu0 %v2147
    %3178 = vmatpush1.bf16.xpose.msra.mxu0 %v2146
    %3179 = vmatprep.subr.bf16.mxu0 %v2140
    %3180 = vmatpush1.bf16.xpose.msra.mxu0 %v2139
    %3181 = vmatprep.subr.bf16.mxu0 %v2245
    %3182 = vmatpush2.bf16.xpose.msra.mxu0 %v2244
    %3183 = vmatprep.subr.bf16.mxu0 %v2238
    %3184 = vmatpush2.bf16.xpose.msra.mxu0 %v2237
    %3185 = vmatprep.subr.bf16.mxu0 %v2231
    %3186 = vmatpush2.bf16.xpose.msra.mxu0 %v2230
    %3187 = vmatprep.subr.bf16.mxu0 %v2224
    %3188 = vmatpush2.bf16.xpose.msra.mxu0 %v2223
    %3189 = vmatprep.subr.bf16.mxu0 %v2217
    %3190 = vmatpush2.bf16.xpose.msra.mxu0 %v2216
    %3191 = vmatprep.subr.bf16.mxu0 %v2210
    %3192 = vmatpush2.bf16.xpose.msra.mxu0 %v2209
    %3193 = vmatprep.subr.bf16.mxu0 %v2203
    %3194 = vmatpush2.bf16.xpose.msra.mxu0 %v2202
    %3195 = vmatprep.subr.bf16.mxu0 %v2196
    %3196 = vmatpush2.bf16.xpose.msra.mxu0 %v2195
    %3197 = vmatprep.mubr.bf16.mxu0 %v606
    %3198 = vmatmul.mubr.bf16.gmra.mxu0 %v605
    %v3199 = vpop.f32.mrf.mxu0
    %v3200 = vadd.f32 %v3159, %v3199
    %v3201 = vpop.f32.mrf.mxu0
    %v3202 = vadd.f32 %v3161, %v3201
    %v3203 = vpop.f32.mrf.mxu0
    %v3204 = vpop.f32.mrf.mxu0
    %3205 = vdwg.mxu0
    %3206 = vmatprep.subr.bf16.mxu0 0
    %3207 = vmatpush1.bf16.xpose.msra.mxu0 %v2190
    %3208 = vmatprep.subr.bf16.mxu0 0
    %3209 = vmatpush1.bf16.xpose.msra.mxu0 %v2183
    %3210 = vmatprep.subr.bf16.mxu0 0
    %3211 = vmatpush1.bf16.xpose.msra.mxu0 %v2176
    %3212 = vmatprep.subr.bf16.mxu0 0
    %3213 = vmatpush1.bf16.xpose.msra.mxu0 %v2169
    %3214 = vmatprep.subr.bf16.mxu0 0
    %3215 = vmatpush1.bf16.xpose.msra.mxu0 %v2162
    %3216 = vmatprep.subr.bf16.mxu0 0
    %3217 = vmatpush1.bf16.xpose.msra.mxu0 %v2155
    %3218 = vmatprep.subr.bf16.mxu0 0
    %3219 = vmatpush1.bf16.xpose.msra.mxu0 %v2148
    %3220 = vmatprep.subr.bf16.mxu0 0
    %3221 = vmatpush1.bf16.xpose.msra.mxu0 %v2141
    %3222 = vmatprep.subr.bf16.mxu0 0
    %3223 = vmatpush2.bf16.xpose.msra.mxu0 %v2246
    %3224 = vmatprep.subr.bf16.mxu0 0
    %3225 = vmatpush2.bf16.xpose.msra.mxu0 %v2239
    %3226 = vmatprep.subr.bf16.mxu0 0
    %3227 = vmatpush2.bf16.xpose.msra.mxu0 %v2232
    %3228 = vmatprep.subr.bf16.mxu0 0
    %3229 = vmatpush2.bf16.xpose.msra.mxu0 %v2225
    %3230 = vmatprep.subr.bf16.mxu0 0
    %3231 = vmatpush2.bf16.xpose.msra.mxu0 %v2218
    %3232 = vmatprep.subr.bf16.mxu0 0
    %3233 = vmatpush2.bf16.xpose.msra.mxu0 %v2211
    %3234 = vmatprep.subr.bf16.mxu0 0
    %3235 = vmatpush2.bf16.xpose.msra.mxu0 %v2204
    %3236 = vmatprep.subr.bf16.mxu0 0
    %3237 = vmatpush2.bf16.xpose.msra.mxu0 %v2197
    %3238 = vmatprep.mubr.bf16.mxu0 0
    %3239 = vmatmul.mubr.bf16.gmra.mxu0 %v607
    %v3240 = vpop.f32.mrf.mxu0
    %v3241 = vadd.f32 %v3200, %v3240
    %v3242 = vpop.f32.mrf.mxu0
    %v3243 = vadd.f32 %v3202, %v3242
    %v3244 = vpop.f32.mrf.mxu0
    %v3245 = vpop.f32.mrf.mxu0
    %3246 = vdwg.mxu0
    %3247 = vmatprep.subr.bf16.mxu0 %v2297
    %3248 = vmatpush1.bf16.xpose.msra.mxu0 %v2296
    %3249 = vmatprep.subr.bf16.mxu0 %v2290
    %3250 = vmatpush1.bf16.xpose.msra.mxu0 %v2289
    %3251 = vmatprep.subr.bf16.mxu0 %v2283
    %3252 = vmatpush1.bf16.xpose.msra.mxu0 %v2282
    %3253 = vmatprep.subr.bf16.mxu0 %v2276
    %3254 = vmatpush1.bf16.xpose.msra.mxu0 %v2275
    %3255 = vmatprep.subr.bf16.mxu0 %v2269
    %3256 = vmatpush1.bf16.xpose.msra.mxu0 %v2268
    %3257 = vmatprep.subr.bf16.mxu0 %v2262
    %3258 = vmatpush1.bf16.xpose.msra.mxu0 %v2261
    %3259 = vmatprep.subr.bf16.mxu0 %v2255
    %3260 = vmatpush1.bf16.xpose.msra.mxu0 %v2254
    %3261 = vmatprep.subr.bf16.mxu0 %v2248
    %3262 = vmatpush1.bf16.xpose.msra.mxu0 %v2247
    %3263 = vmatprep.subr.bf16.mxu0 %v2353
    %3264 = vmatpush2.bf16.xpose.msra.mxu0 %v2352
    %3265 = vmatprep.subr.bf16.mxu0 %v2346
    %3266 = vmatpush2.bf16.xpose.msra.mxu0 %v2345
    %3267 = vmatprep.subr.bf16.mxu0 %v2339
    %3268 = vmatpush2.bf16.xpose.msra.mxu0 %v2338
    %3269 = vmatprep.subr.bf16.mxu0 %v2332
    %3270 = vmatpush2.bf16.xpose.msra.mxu0 %v2331
    %3271 = vmatprep.subr.bf16.mxu0 %v2325
    %3272 = vmatpush2.bf16.xpose.msra.mxu0 %v2324
    %3273 = vmatprep.subr.bf16.mxu0 %v2318
    %3274 = vmatpush2.bf16.xpose.msra.mxu0 %v2317
    %3275 = vmatprep.subr.bf16.mxu0 %v2311
    %3276 = vmatpush2.bf16.xpose.msra.mxu0 %v2310
    %3277 = vmatprep.subr.bf16.mxu0 %v2304
    %3278 = vmatpush2.bf16.xpose.msra.mxu0 %v2303
    %3279 = vmatprep.mubr.bf16.mxu0 %v602
    %3280 = vmatmul.mubr.bf16.gmra.mxu0 %v601
    %v3281 = vpop.f32.mrf.mxu0
    %v3282 = vadd.f32 0.0, %v3281
    %v3283 = vpop.f32.mrf.mxu0
    %v3284 = vadd.f32 0.0, %v3283
    %v3285 = vpop.f32.mrf.mxu0
    %v3286 = vpop.f32.mrf.mxu0
    %3287 = vdwg.mxu0
    %3288 = vmatprep.subr.bf16.mxu0 %v2299
    %3289 = vmatpush1.bf16.xpose.msra.mxu0 %v2298
    %3290 = vmatprep.subr.bf16.mxu0 %v2292
    %3291 = vmatpush1.bf16.xpose.msra.mxu0 %v2291
    %3292 = vmatprep.subr.bf16.mxu0 %v2285
    %3293 = vmatpush1.bf16.xpose.msra.mxu0 %v2284
    %3294 = vmatprep.subr.bf16.mxu0 %v2278
    %3295 = vmatpush1.bf16.xpose.msra.mxu0 %v2277
    %3296 = vmatprep.subr.bf16.mxu0 %v2271
    %3297 = vmatpush1.bf16.xpose.msra.mxu0 %v2270
    %3298 = vmatprep.subr.bf16.mxu0 %v2264
    %3299 = vmatpush1.bf16.xpose.msra.mxu0 %v2263
    %3300 = vmatprep.subr.bf16.mxu0 %v2257
    %3301 = vmatpush1.bf16.xpose.msra.mxu0 %v2256
    %3302 = vmatprep.subr.bf16.mxu0 %v2250
    %3303 = vmatpush1.bf16.xpose.msra.mxu0 %v2249
    %3304 = vmatprep.subr.bf16.mxu0 %v2355
    %3305 = vmatpush2.bf16.xpose.msra.mxu0 %v2354
    %3306 = vmatprep.subr.bf16.mxu0 %v2348
    %3307 = vmatpush2.bf16.xpose.msra.mxu0 %v2347
    %3308 = vmatprep.subr.bf16.mxu0 %v2341
    %3309 = vmatpush2.bf16.xpose.msra.mxu0 %v2340
    %3310 = vmatprep.subr.bf16.mxu0 %v2334
    %3311 = vmatpush2.bf16.xpose.msra.mxu0 %v2333
    %3312 = vmatprep.subr.bf16.mxu0 %v2327
    %3313 = vmatpush2.bf16.xpose.msra.mxu0 %v2326
    %3314 = vmatprep.subr.bf16.mxu0 %v2320
    %3315 = vmatpush2.bf16.xpose.msra.mxu0 %v2319
    %3316 = vmatprep.subr.bf16.mxu0 %v2313
    %3317 = vmatpush2.bf16.xpose.msra.mxu0 %v2312
    %3318 = vmatprep.subr.bf16.mxu0 %v2306
    %3319 = vmatpush2.bf16.xpose.msra.mxu0 %v2305
    %3320 = vmatprep.mubr.bf16.mxu0 %v604
    %3321 = vmatmul.mubr.bf16.gmra.mxu0 %v603
    %v3322 = vpop.f32.mrf.mxu0
    %v3323 = vadd.f32 %v3282, %v3322
    %v3324 = vpop.f32.mrf.mxu0
    %v3325 = vadd.f32 %v3284, %v3324
    %v3326 = vpop.f32.mrf.mxu0
    %v3327 = vpop.f32.mrf.mxu0
    %3328 = vdwg.mxu0
    %3329 = vmatprep.subr.bf16.mxu0 %v2301
    %3330 = vmatpush1.bf16.xpose.msra.mxu0 %v2300
    %3331 = vmatprep.subr.bf16.mxu0 %v2294
    %3332 = vmatpush1.bf16.xpose.msra.mxu0 %v2293
    %3333 = vmatprep.subr.bf16.mxu0 %v2287
    %3334 = vmatpush1.bf16.xpose.msra.mxu0 %v2286
    %3335 = vmatprep.subr.bf16.mxu0 %v2280
    %3336 = vmatpush1.bf16.xpose.msra.mxu0 %v2279
    %3337 = vmatprep.subr.bf16.mxu0 %v2273
    %3338 = vmatpush1.bf16.xpose.msra.mxu0 %v2272
    %3339 = vmatprep.subr.bf16.mxu0 %v2266
    %3340 = vmatpush1.bf16.xpose.msra.mxu0 %v2265
    %3341 = vmatprep.subr.bf16.mxu0 %v2259
    %3342 = vmatpush1.bf16.xpose.msra.mxu0 %v2258
    %3343 = vmatprep.subr.bf16.mxu0 %v2252
    %3344 = vmatpush1.bf16.xpose.msra.mxu0 %v2251
    %3345 = vmatprep.subr.bf16.mxu0 %v2357
    %3346 = vmatpush2.bf16.xpose.msra.mxu0 %v2356
    %3347 = vmatprep.subr.bf16.mxu0 %v2350
    %3348 = vmatpush2.bf16.xpose.msra.mxu0 %v2349
    %3349 = vmatprep.subr.bf16.mxu0 %v2343
    %3350 = vmatpush2.bf16.xpose.msra.mxu0 %v2342
    %3351 = vmatprep.subr.bf16.mxu0 %v2336
    %3352 = vmatpush2.bf16.xpose.msra.mxu0 %v2335
    %3353 = vmatprep.subr.bf16.mxu0 %v2329
    %3354 = vmatpush2.bf16.xpose.msra.mxu0 %v2328
    %3355 = vmatprep.subr.bf16.mxu0 %v2322
    %3356 = vmatpush2.bf16.xpose.msra.mxu0 %v2321
    %3357 = vmatprep.subr.bf16.mxu0 %v2315
    %3358 = vmatpush2.bf16.xpose.msra.mxu0 %v2314
    %3359 = vmatprep.subr.bf16.mxu0 %v2308
    %3360 = vmatpush2.bf16.xpose.msra.mxu0 %v2307
    %3361 = vmatprep.mubr.bf16.mxu0 %v606
    %3362 = vmatmul.mubr.bf16.gmra.mxu0 %v605
    %v3363 = vpop.f32.mrf.mxu0
    %v3364 = vadd.f32 %v3323, %v3363
    %v3365 = vpop.f32.mrf.mxu0
    %v3366 = vadd.f32 %v3325, %v3365
    %v3367 = vpop.f32.mrf.mxu0
    %v3368 = vpop.f32.mrf.mxu0
    %3369 = vdwg.mxu0
    %3370 = vmatprep.subr.bf16.mxu0 0
    %3371 = vmatpush1.bf16.xpose.msra.mxu0 %v2302
    %3372 = vmatprep.subr.bf16.mxu0 0
    %3373 = vmatpush1.bf16.xpose.msra.mxu0 %v2295
    %3374 = vmatprep.subr.bf16.mxu0 0
    %3375 = vmatpush1.bf16.xpose.msra.mxu0 %v2288
    %3376 = vmatprep.subr.bf16.mxu0 0
    %3377 = vmatpush1.bf16.xpose.msra.mxu0 %v2281
    %3378 = vmatprep.subr.bf16.mxu0 0
    %3379 = vmatpush1.bf16.xpose.msra.mxu0 %v2274
    %3380 = vmatprep.subr.bf16.mxu0 0
    %3381 = vmatpush1.bf16.xpose.msra.mxu0 %v2267
    %3382 = vmatprep.subr.bf16.mxu0 0
    %3383 = vmatpush1.bf16.xpose.msra.mxu0 %v2260
    %3384 = vmatprep.subr.bf16.mxu0 0
    %3385 = vmatpush1.bf16.xpose.msra.mxu0 %v2253
    %3386 = vmatprep.subr.bf16.mxu0 0
    %3387 = vmatpush2.bf16.xpose.msra.mxu0 %v2358
    %3388 = vmatprep.subr.bf16.mxu0 0
    %3389 = vmatpush2.bf16.xpose.msra.mxu0 %v2351
    %3390 = vmatprep.subr.bf16.mxu0 0
    %3391 = vmatpush2.bf16.xpose.msra.mxu0 %v2344
    %3392 = vmatprep.subr.bf16.mxu0 0
    %3393 = vmatpush2.bf16.xpose.msra.mxu0 %v2337
    %3394 = vmatprep.subr.bf16.mxu0 0
    %3395 = vmatpush2.bf16.xpose.msra.mxu0 %v2330
    %3396 = vmatprep.subr.bf16.mxu0 0
    %3397 = vmatpush2.bf16.xpose.msra.mxu0 %v2323
    %3398 = vmatprep.subr.bf16.mxu0 0
    %3399 = vmatpush2.bf16.xpose.msra.mxu0 %v2316
    %3400 = vmatprep.subr.bf16.mxu0 0
    %3401 = vmatpush2.bf16.xpose.msra.mxu0 %v2309
    %3402 = vmatprep.mubr.bf16.mxu0 0
    %3403 = vmatmul.mubr.bf16.gmra.mxu0 %v607
    %v3404 = vpop.f32.mrf.mxu0
    %v3405 = vadd.f32 %v3364, %v3404
    %v3406 = vpop.f32.mrf.mxu0
    %v3407 = vadd.f32 %v3366, %v3406
    %v3408 = vpop.f32.mrf.mxu0
    %v3409 = vpop.f32.mrf.mxu0
    %3410 = vdwg.mxu0
    %3411 = vmatprep.subr.bf16.mxu0 %v2409
    %3412 = vmatpush1.bf16.xpose.msra.mxu0 %v2408
    %3413 = vmatprep.subr.bf16.mxu0 %v2402
    %3414 = vmatpush1.bf16.xpose.msra.mxu0 %v2401
    %3415 = vmatprep.subr.bf16.mxu0 %v2395
    %3416 = vmatpush1.bf16.xpose.msra.mxu0 %v2394
    %3417 = vmatprep.subr.bf16.mxu0 %v2388
    %3418 = vmatpush1.bf16.xpose.msra.mxu0 %v2387
    %3419 = vmatprep.subr.bf16.mxu0 %v2381
    %3420 = vmatpush1.bf16.xpose.msra.mxu0 %v2380
    %3421 = vmatprep.subr.bf16.mxu0 %v2374
    %3422 = vmatpush1.bf16.xpose.msra.mxu0 %v2373
    %3423 = vmatprep.subr.bf16.mxu0 %v2367
    %3424 = vmatpush1.bf16.xpose.msra.mxu0 %v2366
    %3425 = vmatprep.subr.bf16.mxu0 %v2360
    %3426 = vmatpush1.bf16.xpose.msra.mxu0 %v2359
    %3427 = vmatprep.subr.bf16.mxu0 %v2465
    %3428 = vmatpush2.bf16.xpose.msra.mxu0 %v2464
    %3429 = vmatprep.subr.bf16.mxu0 %v2458
    %3430 = vmatpush2.bf16.xpose.msra.mxu0 %v2457
    %3431 = vmatprep.subr.bf16.mxu0 %v2451
    %3432 = vmatpush2.bf16.xpose.msra.mxu0 %v2450
    %3433 = vmatprep.subr.bf16.mxu0 %v2444
    %3434 = vmatpush2.bf16.xpose.msra.mxu0 %v2443
    %3435 = vmatprep.subr.bf16.mxu0 %v2437
    %3436 = vmatpush2.bf16.xpose.msra.mxu0 %v2436
    %3437 = vmatprep.subr.bf16.mxu0 %v2430
    %3438 = vmatpush2.bf16.xpose.msra.mxu0 %v2429
    %3439 = vmatprep.subr.bf16.mxu0 %v2423
    %3440 = vmatpush2.bf16.xpose.msra.mxu0 %v2422
    %3441 = vmatprep.subr.bf16.mxu0 %v2416
    %3442 = vmatpush2.bf16.xpose.msra.mxu0 %v2415
    %3443 = vmatprep.mubr.bf16.mxu0 %v602
    %3444 = vmatmul.mubr.bf16.gmra.mxu0 %v601
    %v3445 = vpop.f32.mrf.mxu0
    %v3446 = vadd.f32 0.0, %v3445
    %v3447 = vpop.f32.mrf.mxu0
    %v3448 = vadd.f32 0.0, %v3447
    %v3449 = vpop.f32.mrf.mxu0
    %v3450 = vpop.f32.mrf.mxu0
    %3451 = vdwg.mxu0
    %3452 = vmatprep.subr.bf16.mxu0 %v2411
    %3453 = vmatpush1.bf16.xpose.msra.mxu0 %v2410
    %3454 = vmatprep.subr.bf16.mxu0 %v2404
    %3455 = vmatpush1.bf16.xpose.msra.mxu0 %v2403
    %3456 = vmatprep.subr.bf16.mxu0 %v2397
    %3457 = vmatpush1.bf16.xpose.msra.mxu0 %v2396
    %3458 = vmatprep.subr.bf16.mxu0 %v2390
    %3459 = vmatpush1.bf16.xpose.msra.mxu0 %v2389
    %3460 = vmatprep.subr.bf16.mxu0 %v2383
    %3461 = vmatpush1.bf16.xpose.msra.mxu0 %v2382
    %3462 = vmatprep.subr.bf16.mxu0 %v2376
    %3463 = vmatpush1.bf16.xpose.msra.mxu0 %v2375
    %3464 = vmatprep.subr.bf16.mxu0 %v2369
    %3465 = vmatpush1.bf16.xpose.msra.mxu0 %v2368
    %3466 = vmatprep.subr.bf16.mxu0 %v2362
    %3467 = vmatpush1.bf16.xpose.msra.mxu0 %v2361
    %3468 = vmatprep.subr.bf16.mxu0 %v2467
    %3469 = vmatpush2.bf16.xpose.msra.mxu0 %v2466
    %3470 = vmatprep.subr.bf16.mxu0 %v2460
    %3471 = vmatpush2.bf16.xpose.msra.mxu0 %v2459
    %3472 = vmatprep.subr.bf16.mxu0 %v2453
    %3473 = vmatpush2.bf16.xpose.msra.mxu0 %v2452
    %3474 = vmatprep.subr.bf16.mxu0 %v2446
    %3475 = vmatpush2.bf16.xpose.msra.mxu0 %v2445
    %3476 = vmatprep.subr.bf16.mxu0 %v2439
    %3477 = vmatpush2.bf16.xpose.msra.mxu0 %v2438
    %3478 = vmatprep.subr.bf16.mxu0 %v2432
    %3479 = vmatpush2.bf16.xpose.msra.mxu0 %v2431
    %3480 = vmatprep.subr.bf16.mxu0 %v2425
    %3481 = vmatpush2.bf16.xpose.msra.mxu0 %v2424
    %3482 = vmatprep.subr.bf16.mxu0 %v2418
    %3483 = vmatpush2.bf16.xpose.msra.mxu0 %v2417
    %3484 = vmatprep.mubr.bf16.mxu0 %v604
    %3485 = vmatmul.mubr.bf16.gmra.mxu0 %v603
    %v3486 = vpop.f32.mrf.mxu0
    %v3487 = vadd.f32 %v3446, %v3486
    %v3488 = vpop.f32.mrf.mxu0
    %v3489 = vadd.f32 %v3448, %v3488
    %v3490 = vpop.f32.mrf.mxu0
    %v3491 = vpop.f32.mrf.mxu0
    %3492 = vdwg.mxu0
    %3493 = vmatprep.subr.bf16.mxu0 %v2413
    %3494 = vmatpush1.bf16.xpose.msra.mxu0 %v2412
    %3495 = vmatprep.subr.bf16.mxu0 %v2406
    %3496 = vmatpush1.bf16.xpose.msra.mxu0 %v2405
    %3497 = vmatprep.subr.bf16.mxu0 %v2399
    %3498 = vmatpush1.bf16.xpose.msra.mxu0 %v2398
    %3499 = vmatprep.subr.bf16.mxu0 %v2392
    %3500 = vmatpush1.bf16.xpose.msra.mxu0 %v2391
    %3501 = vmatprep.subr.bf16.mxu0 %v2385
    %3502 = vmatpush1.bf16.xpose.msra.mxu0 %v2384
    %3503 = vmatprep.subr.bf16.mxu0 %v2378
    %3504 = vmatpush1.bf16.xpose.msra.mxu0 %v2377
    %3505 = vmatprep.subr.bf16.mxu0 %v2371
    %3506 = vmatpush1.bf16.xpose.msra.mxu0 %v2370
    %3507 = vmatprep.subr.bf16.mxu0 %v2364
    %3508 = vmatpush1.bf16.xpose.msra.mxu0 %v2363
    %3509 = vmatprep.subr.bf16.mxu0 %v2469
    %3510 = vmatpush2.bf16.xpose.msra.mxu0 %v2468
    %3511 = vmatprep.subr.bf16.mxu0 %v2462
    %3512 = vmatpush2.bf16.xpose.msra.mxu0 %v2461
    %3513 = vmatprep.subr.bf16.mxu0 %v2455
    %3514 = vmatpush2.bf16.xpose.msra.mxu0 %v2454
    %3515 = vmatprep.subr.bf16.mxu0 %v2448
    %3516 = vmatpush2.bf16.xpose.msra.mxu0 %v2447
    %3517 = vmatprep.subr.bf16.mxu0 %v2441
    %3518 = vmatpush2.bf16.xpose.msra.mxu0 %v2440
    %3519 = vmatprep.subr.bf16.mxu0 %v2434
    %3520 = vmatpush2.bf16.xpose.msra.mxu0 %v2433
    %3521 = vmatprep.subr.bf16.mxu0 %v2427
    %3522 = vmatpush2.bf16.xpose.msra.mxu0 %v2426
    %3523 = vmatprep.subr.bf16.mxu0 %v2420
    %3524 = vmatpush2.bf16.xpose.msra.mxu0 %v2419
    %3525 = vmatprep.mubr.bf16.mxu0 %v606
    %3526 = vmatmul.mubr.bf16.gmra.mxu0 %v605
    %v3527 = vpop.f32.mrf.mxu0
    %v3528 = vadd.f32 %v3487, %v3527
    %v3529 = vpop.f32.mrf.mxu0
    %v3530 = vadd.f32 %v3489, %v3529
    %v3531 = vpop.f32.mrf.mxu0
    %v3532 = vpop.f32.mrf.mxu0
    %3533 = vdwg.mxu0
    %3534 = vmatprep.subr.bf16.mxu0 0
    %3535 = vmatpush1.bf16.xpose.msra.mxu0 %v2414
    %3536 = vmatprep.subr.bf16.mxu0 0
    %3537 = vmatpush1.bf16.xpose.msra.mxu0 %v2407
    %3538 = vmatprep.subr.bf16.mxu0 0
    %3539 = vmatpush1.bf16.xpose.msra.mxu0 %v2400
    %3540 = vmatprep.subr.bf16.mxu0 0
    %3541 = vmatpush1.bf16.xpose.msra.mxu0 %v2393
    %3542 = vmatprep.subr.bf16.mxu0 0
    %3543 = vmatpush1.bf16.xpose.msra.mxu0 %v2386
    %3544 = vmatprep.subr.bf16.mxu0 0
    %3545 = vmatpush1.bf16.xpose.msra.mxu0 %v2379
    %3546 = vmatprep.subr.bf16.mxu0 0
    %3547 = vmatpush1.bf16.xpose.msra.mxu0 %v2372
    %3548 = vmatprep.subr.bf16.mxu0 0
    %3549 = vmatpush1.bf16.xpose.msra.mxu0 %v2365
    %3550 = vmatprep.subr.bf16.mxu0 0
    %3551 = vmatpush2.bf16.xpose.msra.mxu0 %v2470
    %3552 = vmatprep.subr.bf16.mxu0 0
    %3553 = vmatpush2.bf16.xpose.msra.mxu0 %v2463
    %3554 = vmatprep.subr.bf16.mxu0 0
    %3555 = vmatpush2.bf16.xpose.msra.mxu0 %v2456
    %3556 = vmatprep.subr.bf16.mxu0 0
    %3557 = vmatpush2.bf16.xpose.msra.mxu0 %v2449
    %3558 = vmatprep.subr.bf16.mxu0 0
    %3559 = vmatpush2.bf16.xpose.msra.mxu0 %v2442
    %3560 = vmatprep.subr.bf16.mxu0 0
    %3561 = vmatpush2.bf16.xpose.msra.mxu0 %v2435
    %3562 = vmatprep.subr.bf16.mxu0 0
    %3563 = vmatpush2.bf16.xpose.msra.mxu0 %v2428
    %3564 = vmatprep.subr.bf16.mxu0 0
    %3565 = vmatpush2.bf16.xpose.msra.mxu0 %v2421
    %3566 = vmatprep.mubr.bf16.mxu0 0
    %3567 = vmatmul.mubr.bf16.gmra.mxu0 %v607
    %v3568 = vpop.f32.mrf.mxu0
    %v3569 = vadd.f32 %v3528, %v3568
    %v3570 = vpop.f32.mrf.mxu0
    %v3571 = vadd.f32 %v3530, %v3570
    %v3572 = vpop.f32.mrf.mxu0
    %v3573 = vpop.f32.mrf.mxu0
    %3574 = vdwg.mxu0
    %v3575 = vmax.f32 %v3077, 0.0
    %v3576 = vmax.f32 %v3079, 0.0
    %v3577 = vmax.f32 %v3241, 0.0
    %v3578 = vmax.f32 %v3243, 0.0
    %v3579 = vmax.f32 %v3405, 0.0
    %v3580 = vmax.f32 %v3407, 0.0
    %v3581 = vmax.f32 %v3569, 0.0
    %v3582 = vmax.f32 %v3571, 0.0
    %v3583 = vld [vmem:[#allocation8] sm:$0xff]
    %v3584 = vpack.c.bf16 %v3575, %v3575
    %v3585 = vpack.c.bf16 %v3576, %v3576
    %v3586 = vpack.c.bf16 %v3577, %v3577
    %v3587 = vpack.c.bf16 %v3578, %v3578
    %v3588 = vpack.c.bf16 %v3579, %v3579
    %v3589 = vpack.c.bf16 %v3580, %v3580
    %v3590 = vpack.c.bf16 %v3581, %v3581
    %v3591 = vpack.c.bf16 %v3582, %v3582
    %v3592 = vld [vmem:[#allocation7] sm:$0xff]
    %v3593 = vld [vmem:[#allocation7 + $0x8] sm:$0xff]
    %v3594 = vld [vmem:[#allocation7 + $0x10] sm:$0xff]
    %v3595 = vld [vmem:[#allocation7 + $0x18] sm:$0xff]
    %v3596 = vld [vmem:[#allocation7 + $0x20] sm:$0x11]
    %v3597 = vld [vmem:[#allocation7 + $0x28] sm:$0x11]
    %v3598 = vld [vmem:[#allocation7 + $0x30] sm:$0x11]
    %v3599 = vld [vmem:[#allocation7 + $0x38] sm:$0x11]
    %v3608 = vunpack.c.l.b16 %v3592
    %v3609 = vunpack.c.h.b16 %v3592
    %v3610 = vunpack.c.l.b16 %v3593
    %v3611 = vunpack.c.h.b16 %v3593
    %v3612 = vunpack.c.l.b16 %v3594
    %v3613 = vunpack.c.h.b16 %v3594
    %v3614 = vunpack.c.l.b16 %v3595
    %v3615 = vunpack.c.h.b16 %v3595
    %v3616 = vunpack.c.l.b16 %v3596
    %v3617 = vunpack.c.h.b16 %v3596
    %v3618 = vunpack.c.l.b16 %v3597
    %v3619 = vunpack.c.h.b16 %v3597
    %v3620 = vunpack.c.l.b16 %v3598
    %v3621 = vunpack.c.h.b16 %v3598
    %v3622 = vunpack.c.l.b16 %v3599
    %v3623 = vunpack.c.h.b16 %v3599
    %v3624 = vpack.c.b16 %v3616, %v3608
    %v3625 = vpack.c.b16 %v3617, %v3609
    %v3626 = vpack.c.b16 %v3618, %v3610
    %v3627 = vpack.c.b16 %v3619, %v3611
    %v3628 = vpack.c.b16 %v3620, %v3612
    %v3629 = vpack.c.b16 %v3621, %v3613
    %v3630 = vpack.c.b16 %v3622, %v3614
    %v3631 = vpack.c.b16 %v3623, %v3615
    %3640 = vmatprep.subr.bf16.mxu0 0
    %3641 = vmatpush1.bf16.xpose.msra.mxu0 0
    %3642 = vmatprep.subr.bf16.mxu0 0
    %3643 = vmatpush1.bf16.xpose.msra.mxu0 0
    %3644 = vmatprep.subr.bf16.mxu0 0
    %3645 = vmatpush1.bf16.xpose.msra.mxu0 0
    %3646 = vmatprep.subr.bf16.mxu0 0
    %3647 = vmatpush1.bf16.xpose.msra.mxu0 0
    %3648 = vmatprep.subr.bf16.mxu0 0
    %3649 = vmatpush1.bf16.xpose.msra.mxu0 0
    %3650 = vmatprep.subr.bf16.mxu0 0
    %3651 = vmatpush1.bf16.xpose.msra.mxu0 0
    %3652 = vmatprep.subr.bf16.mxu0 0
    %3653 = vmatpush1.bf16.xpose.msra.mxu0 0
    %3654 = vmatprep.subr.bf16.mxu0 %v3625
    %3655 = vmatpush1.bf16.xpose.msra.mxu0 %v3624
    %3656 = vmatprep.subr.bf16.mxu0 0
    %3657 = vmatpush2.bf16.xpose.msra.mxu0 0
    %3658 = vmatprep.subr.bf16.mxu0 0
    %3659 = vmatpush2.bf16.xpose.msra.mxu0 0
    %3660 = vmatprep.subr.bf16.mxu0 0
    %3661 = vmatpush2.bf16.xpose.msra.mxu0 0
    %3662 = vmatprep.subr.bf16.mxu0 0
    %3663 = vmatpush2.bf16.xpose.msra.mxu0 0
    %3664 = vmatprep.subr.bf16.mxu0 0
    %3665 = vmatpush2.bf16.xpose.msra.mxu0 0
    %3666 = vmatprep.subr.bf16.mxu0 0
    %3667 = vmatpush2.bf16.xpose.msra.mxu0 0
    %3668 = vmatprep.subr.bf16.mxu0 0
    %3669 = vmatpush2.bf16.xpose.msra.mxu0 0
    %3670 = vmatprep.subr.bf16.mxu0 0
    %3671 = vmatpush2.bf16.xpose.msra.mxu0 0
    %3672 = vmatprep.mubr.bf16.mxu0 %v3585
    %3673 = vmatmul.mubr.bf16.gmra.mxu0 %v3584
    %v3674 = vpop.f32.mrf.mxu0
    %v3675 = vadd.f32 0.0, %v3674
    %v3676 = vpop.f32.mrf.mxu0
    %v3677 = vpop.f32.mrf.mxu0
    %v3678 = vpop.f32.mrf.mxu0
    %3679 = vdwg.mxu0
    %3680 = vmatprep.subr.bf16.mxu0 0
    %3681 = vmatpush1.bf16.xpose.msra.mxu0 0
    %3682 = vmatprep.subr.bf16.mxu0 0
    %3683 = vmatpush1.bf16.xpose.msra.mxu0 0
    %3684 = vmatprep.subr.bf16.mxu0 0
    %3685 = vmatpush1.bf16.xpose.msra.mxu0 0
    %3686 = vmatprep.subr.bf16.mxu0 0
    %3687 = vmatpush1.bf16.xpose.msra.mxu0 0
    %3688 = vmatprep.subr.bf16.mxu0 0
    %3689 = vmatpush1.bf16.xpose.msra.mxu0 0
    %3690 = vmatprep.subr.bf16.mxu0 0
    %3691 = vmatpush1.bf16.xpose.msra.mxu0 0
    %3692 = vmatprep.subr.bf16.mxu0 0
    %3693 = vmatpush1.bf16.xpose.msra.mxu0 0
    %3694 = vmatprep.subr.bf16.mxu0 %v3627
    %3695 = vmatpush1.bf16.xpose.msra.mxu0 %v3626
    %3696 = vmatprep.subr.bf16.mxu0 0
    %3697 = vmatpush2.bf16.xpose.msra.mxu0 0
    %3698 = vmatprep.subr.bf16.mxu0 0
    %3699 = vmatpush2.bf16.xpose.msra.mxu0 0
    %3700 = vmatprep.subr.bf16.mxu0 0
    %3701 = vmatpush2.bf16.xpose.msra.mxu0 0
    %3702 = vmatprep.subr.bf16.mxu0 0
    %3703 = vmatpush2.bf16.xpose.msra.mxu0 0
    %3704 = vmatprep.subr.bf16.mxu0 0
    %3705 = vmatpush2.bf16.xpose.msra.mxu0 0
    %3706 = vmatprep.subr.bf16.mxu0 0
    %3707 = vmatpush2.bf16.xpose.msra.mxu0 0
    %3708 = vmatprep.subr.bf16.mxu0 0
    %3709 = vmatpush2.bf16.xpose.msra.mxu0 0
    %3710 = vmatprep.subr.bf16.mxu0 0
    %3711 = vmatpush2.bf16.xpose.msra.mxu0 0
    %3712 = vmatprep.mubr.bf16.mxu0 %v3587
    %3713 = vmatmul.mubr.bf16.gmra.mxu0 %v3586
    %v3714 = vpop.f32.mrf.mxu0
    %v3715 = vadd.f32 %v3675, %v3714
    %v3716 = vpop.f32.mrf.mxu0
    %v3717 = vpop.f32.mrf.mxu0
    %v3718 = vpop.f32.mrf.mxu0
    %3719 = vdwg.mxu0
    %3720 = vmatprep.subr.bf16.mxu0 0
    %3721 = vmatpush1.bf16.xpose.msra.mxu0 0
    %3722 = vmatprep.subr.bf16.mxu0 0
    %3723 = vmatpush1.bf16.xpose.msra.mxu0 0
    %3724 = vmatprep.subr.bf16.mxu0 0
    %3725 = vmatpush1.bf16.xpose.msra.mxu0 0
    %3726 = vmatprep.subr.bf16.mxu0 0
    %3727 = vmatpush1.bf16.xpose.msra.mxu0 0
    %3728 = vmatprep.subr.bf16.mxu0 0
    %3729 = vmatpush1.bf16.xpose.msra.mxu0 0
    %3730 = vmatprep.subr.bf16.mxu0 0
    %3731 = vmatpush1.bf16.xpose.msra.mxu0 0
    %3732 = vmatprep.subr.bf16.mxu0 0
    %3733 = vmatpush1.bf16.xpose.msra.mxu0 0
    %3734 = vmatprep.subr.bf16.mxu0 %v3629
    %3735 = vmatpush1.bf16.xpose.msra.mxu0 %v3628
    %3736 = vmatprep.subr.bf16.mxu0 0
    %3737 = vmatpush2.bf16.xpose.msra.mxu0 0
    %3738 = vmatprep.subr.bf16.mxu0 0
    %3739 = vmatpush2.bf16.xpose.msra.mxu0 0
    %3740 = vmatprep.subr.bf16.mxu0 0
    %3741 = vmatpush2.bf16.xpose.msra.mxu0 0
    %3742 = vmatprep.subr.bf16.mxu0 0
    %3743 = vmatpush2.bf16.xpose.msra.mxu0 0
    %3744 = vmatprep.subr.bf16.mxu0 0
    %3745 = vmatpush2.bf16.xpose.msra.mxu0 0
    %3746 = vmatprep.subr.bf16.mxu0 0
    %3747 = vmatpush2.bf16.xpose.msra.mxu0 0
    %3748 = vmatprep.subr.bf16.mxu0 0
    %3749 = vmatpush2.bf16.xpose.msra.mxu0 0
    %3750 = vmatprep.subr.bf16.mxu0 0
    %3751 = vmatpush2.bf16.xpose.msra.mxu0 0
    %3752 = vmatprep.mubr.bf16.mxu0 %v3589
    %3753 = vmatmul.mubr.bf16.gmra.mxu0 %v3588
    %v3754 = vpop.f32.mrf.mxu0
    %v3755 = vadd.f32 %v3715, %v3754
    %v3756 = vpop.f32.mrf.mxu0
    %v3757 = vpop.f32.mrf.mxu0
    %v3758 = vpop.f32.mrf.mxu0
    %3759 = vdwg.mxu0
    %3760 = vmatprep.subr.bf16.mxu0 0
    %3761 = vmatpush1.bf16.xpose.msra.mxu0 0
    %3762 = vmatprep.subr.bf16.mxu0 0
    %3763 = vmatpush1.bf16.xpose.msra.mxu0 0
    %3764 = vmatprep.subr.bf16.mxu0 0
    %3765 = vmatpush1.bf16.xpose.msra.mxu0 0
    %3766 = vmatprep.subr.bf16.mxu0 0
    %3767 = vmatpush1.bf16.xpose.msra.mxu0 0
    %3768 = vmatprep.subr.bf16.mxu0 0
    %3769 = vmatpush1.bf16.xpose.msra.mxu0 0
    %3770 = vmatprep.subr.bf16.mxu0 0
    %3771 = vmatpush1.bf16.xpose.msra.mxu0 0
    %3772 = vmatprep.subr.bf16.mxu0 0
    %3773 = vmatpush1.bf16.xpose.msra.mxu0 0
    %3774 = vmatprep.subr.bf16.mxu0 %v3631
    %3775 = vmatpush1.bf16.xpose.msra.mxu0 %v3630
    %3776 = vmatprep.subr.bf16.mxu0 0
    %3777 = vmatpush2.bf16.xpose.msra.mxu0 0
    %3778 = vmatprep.subr.bf16.mxu0 0
    %3779 = vmatpush2.bf16.xpose.msra.mxu0 0
    %3780 = vmatprep.subr.bf16.mxu0 0
    %3781 = vmatpush2.bf16.xpose.msra.mxu0 0
    %3782 = vmatprep.subr.bf16.mxu0 0
    %3783 = vmatpush2.bf16.xpose.msra.mxu0 0
    %3784 = vmatprep.subr.bf16.mxu0 0
    %3785 = vmatpush2.bf16.xpose.msra.mxu0 0
    %3786 = vmatprep.subr.bf16.mxu0 0
    %3787 = vmatpush2.bf16.xpose.msra.mxu0 0
    %3788 = vmatprep.subr.bf16.mxu0 0
    %3789 = vmatpush2.bf16.xpose.msra.mxu0 0
    %3790 = vmatprep.subr.bf16.mxu0 0
    %3791 = vmatpush2.bf16.xpose.msra.mxu0 0
    %3792 = vmatprep.mubr.bf16.mxu0 %v3591
    %3793 = vmatmul.mubr.bf16.gmra.mxu0 %v3590
    %v3794 = vpop.f32.mrf.mxu0
    %v3795 = vadd.f32 %v3755, %v3794
    %v3796 = vpop.f32.mrf.mxu0
    %v3797 = vpop.f32.mrf.mxu0
    %v3798 = vpop.f32.mrf.mxu0
    %3799 = vdwg.mxu0
    %v3800 = vadd.f32 %v3583, %v3795
    %vm3801 = vcmask 80896
    %3802 = vst.msk [vmem:[#allocation8] sm:$0xff] %vm3801, %v3800
    // Predicated region
    $region30: #{tpu_custom_call.1} parent=1 // pred_check
      %p3803 = pneg %p68
    $region31: #{tpu_custom_call.1} parent=1 // pred_check_branch
      %3805 = sbr.rel (%p3803) target = $region33
    $region32: #{tpu_custom_call.1} parent=1 // pred_region
      %v3806 = vld [vmem:[#allocation8] sm:$0xff]
      %v3807 = vsel %vm3801, %v3806, -inf
      %3808 = vmax.xlane.f32.xlu0 %v3807
      %v3809 = vpop.xlane.xlu0 %3808
      %v3810 = vsub.f32 %v3806, %v3809
      %v3811 = vmul.f32 %v3810, 1.442695
      %v3812 = vpow.pop %v3811
      %v3813 = vsel %vm3801, %v3812, 0.0
      %3814 = vadd.xlane.f32.xlu0 %v3813
      %v3815 = vpop.xlane.xlu0 %3814
      %v3816 = vlog2.pop %v3815
      %v3817 = vmul.f32 %v3816, 0.6931472
      %v3818 = vadd.f32 %v3817, %v3809
      %v3819 = vsub.f32 %v3806, %v3818
      %3820 = vst.msk [vmem:[#allocation8] sm:$0xff] %vm3801, %v3819
    $region33: #{tpu_custom_call.1} parent=1 // pred_fallthru
      _
    // Predicated region
    $region34: #{tpu_custom_call.1} parent=1 // pred_check
      _
    $region35: #{tpu_custom_call.1} parent=1 // pred_check_branch
      %3822 = sbr.rel (0) target = $region37
    $region36: #{tpu_custom_call.1} parent=1 // pred_region
      %s3824 = ssub.s32 128, 128
      %3825 = vsyncadd [#allocation4], %s3824
      %s3827 = sshll.u32 [#allocation8], 4
      %s3828 = int_to_ptr.vmem [resolvable:$true] %s3827
      %3830 = dma.vmem_to_hbm [thread:$0]  %s3828, 128, %s3, [#allocation4]
    $region37: #{tpu_custom_call.1} parent=1 // pred_fallthru
      _
    // Predicated region
    $region38: #{tpu_custom_call.1} parent=1 // pred_check
      _
    $region39: #{tpu_custom_call.1} parent=1 // pred_check_branch
      %3832 = sbr.rel (0) target = $region41
    $region40: #{tpu_custom_call.1} parent=1 // pred_region
      %3833 = dma.done [#allocation4], 128
    $region41: #{tpu_custom_call.1} parent=1 // pred_fallthru
      _
    %3834 = vsyncpa [#allocation3], 1
    %3835 = vsyncpa [#allocation6], 1
    %3836 = vsyncpa [#allocation4], 1

</llo_original>
